<compile_context>
chip_gen: v6e
topology: v6e:2x2x1
jax: 0.10.0
libtpu: 0.0.40
codegen_flags: <defaults>
</compile_context>

<pallas_src>
import functools

import jax
import jax.numpy as jnp
from jax import lax
from jax.experimental import pallas as pl
from jax.experimental.pallas import tpu as pltpu


# FSVAE global constants (glv in the reference code)
VTH = 0.2        # LIF / SpikeAct threshold
TAU = 0.25       # LIF membrane decay
BN_ALPHA = 2.0   # tdBatchNorm(alpha=2) as used in this module
BN_EPS = 1e-5

_NUM_PHASES = 4  # [mm1] -> [bn+lif1, mm2] -> [bn+lif2, mm3] -> [bn+lif3, store]


def _round_up(x, m):
    return (x + m - 1) // m * m


def _pick_tile_b(batch, t_steps):
    """Batch-tile size: multiple of 8 (sublane-dense per-t stores), divides B,
    targets ~512 matmul rows (T*TILE_B) so the MXU M dim is well filled."""
    if batch < 8 or batch % 8 != 0:
        return batch                      # single tile (toy / ragged shapes)
    target_rows = 512
    tb = max(8, min(batch, (target_rows // max(t_steps, 1)) // 8 * 8))
    while batch % tb != 0:
        tb -= 8
    return max(tb, 8)


def _matmul_stats(h_ref, w_ref, stats_ref, y_dst, is_first_tile):
    """y = h @ w (bf16 MXU, f32 accumulate); stats += [sum(y), sum(y*y)]; y_dst <- y."""
    y = jnp.dot(h_ref[...], w_ref[...], preferred_element_type=jnp.float32)

    @pl.when(is_first_tile)
    def _():
        stats_ref[...] = jnp.zeros_like(stats_ref)

    ssum = jnp.sum(y, axis=0, keepdims=True)
    ssq = jnp.sum(y * y, axis=0, keepdims=True)
    stats_ref[...] += jnp.concatenate([ssum, ssq], axis=0)
    y_dst[...] = y


def _bn_lif(y_src, stats_ref, gb_ref, n_rows, t_steps, tile_b, emit):
    """tdBatchNorm(alpha=2, training stats) + LIFSpike for one batch tile.

    y_src: (T*tile_b, C) f32 ref view of the pre-BN matmul output (read per t
    to bound live vregs).  stats_ref: (2, C) [sum, sumsq] over all B*T rows.
    gb_ref: (2, C) [gamma, beta].  emit(t, o) stores the (tile_b, C) spikes.
    """
    inv_n = 1.0 / float(n_rows)
    s = stats_ref[...]
    mean = s[0:1, :] * inv_n
    var = jnp.maximum(s[1:2, :] * inv_n - mean * mean, 0.0)   # single-pass variance
    gamma = gb_ref[0:1, :]
    beta = gb_ref[1:2, :]
    scale = (BN_ALPHA * VTH) * gamma * lax.rsqrt(var + BN_EPS)  # EUP rsqrt
    shift = beta - mean * scale

    cout = scale.shape[-1]
    u = jnp.zeros((tile_b, cout), jnp.float32)
    o = jnp.zeros((tile_b, cout), jnp.float32)
    for t in range(t_steps):                                  # static unroll: T small
        y_t = y_src[t * tile_b:(t + 1) * tile_b, :]
        u = TAU * u * (1.0 - o) + (y_t * scale + shift)
        o = (u > VTH).astype(jnp.float32)
        emit(t, o)                                            # per-t store bounds live ranges


def _prior_kernel(x_ref, w1_ref, gb1_ref, w2_ref, gb2_ref, w3_ref, gb3_ref,
                  out_ref,
                  y1_s, y2_s, y3_s, h0_s, h1_s, h2_s, s1_s, s2_s, s3_s,
                  *, t_steps, batch, tile_b):
    p = pl.program_id(0)            # phase axis (sequential)
    i = pl.program_id(1)            # batch-tile axis (sequential: carries BN stats)
    first = i == 0
    n_rows = t_steps * batch        # BN population: all of batch x time

    @pl.when(p == 0)
    def _phase0():
        # Stage the one-step-shifted input: t=0 -> initial_input zeros, else z[t-1].
        h0_s[0:tile_b, :] = jnp.zeros((tile_b, h0_s.shape[1]), jnp.bfloat16)
        for t in range(1, t_steps):
            h0_s[t * tile_b:(t + 1) * tile_b, :] = x_ref[t - 1]
        _matmul_stats(h0_s, w1_ref, s1_s, y1_s.at[i], first)

    @pl.when(p == 1)
    def _phase1():
        def emit(t, o):
            h1_s[t * tile_b:(t + 1) * tile_b, :] = o.astype(jnp.bfloat16)
        _bn_lif(y1_s.at[i], s1_s, gb1_ref, n_rows, t_steps, tile_b, emit)
        _matmul_stats(h1_s, w2_ref, s2_s, y2_s.at[i], first)

    @pl.when(p == 2)
    def _phase2():
        def emit(t, o):
            h2_s[t * tile_b:(t + 1) * tile_b, :] = o.astype(jnp.bfloat16)
        _bn_lif(y2_s.at[i], s2_s, gb2_ref, n_rows, t_steps, tile_b, emit)
        _matmul_stats(h2_s, w3_ref, s3_s, y3_s.at[i], first)

    @pl.when(p == _NUM_PHASES - 1)
    def _phase3():
        def emit(t, o):
            out_ref[t] = o          # sublane/lane-dense store of one timestep
        _bn_lif(y3_s.at[i], s3_s, gb3_ref, n_rows, t_steps, tile_b, emit)


@functools.partial(jax.jit, static_argnames=("k", "tile_b"))
def prior_bernoulli_stbp_forward(z, params, k, tile_b=None):
    """PriorBernoulliSTBP._forward: z (B, C, T) 0/1 spikes -> p_z (B, C, k, T).

    Training-mode tdBatchNorm (batch statistics).  The Linear bias is dropped
    because the per-channel mean subtraction cancels it exactly; this does NOT
    hold for eval-mode BN with running statistics.
    """
    B, C, T = z.shape
    (w1, _b1, g1, be1), (w2, _b2, g2, be2), (w3, _b3, g3, be3) = params
    c1, c2, c3 = w1.shape[0], w2.shape[0], w3.shape[0]

    cin_p = _round_up(C, 128)
    c1_p = _round_up(c1, 128)
    c2_p = _round_up(c2, 128)
    c3_p = _round_up(c3, 128)   # 320 -> 384 (keep multiples of 128; do NOT round to 512)

    if tile_b is None:
        tile_b = _pick_tile_b(B, T)
    assert B % tile_b == 0, (B, tile_b)
    nt = B // tile_b
    rows = T * tile_b

    # (B, C, T) -> (T, B, C) channel-last (lanes); zero-pad channels to 128 multiple.
    x = jnp.transpose(z.astype(jnp.float32), (2, 0, 1))
    x = jnp.pad(x, ((0, 0), (0, 0), (0, cin_p - C))).astype(jnp.bfloat16)   # 0/1 exact

    def pad_w(w, cin_pad, cout_pad):        # (Cout, Cin) -> bf16 (Cin_pad, Cout_pad)
        wt = w.T.astype(jnp.bfloat16)
        return jnp.pad(wt, ((0, cin_pad - wt.shape[0]), (0, cout_pad - wt.shape[1])))

    def pad_gb(g, be, cout_pad):            # -> f32 (2, Cout_pad); pad lanes stay 0
        gb = jnp.stack([g, be], axis=0).astype(jnp.float32)
        return jnp.pad(gb, ((0, 0), (0, cout_pad - gb.shape[1])))

    w1p, gb1 = pad_w(w1, cin_p, c1_p), pad_gb(g1, be1, c1_p)
    w2p, gb2 = pad_w(w2, c1_p, c2_p), pad_gb(g2, be2, c2_p)
    w3p, gb3 = pad_w(w3, c2_p, c3_p), pad_gb(g3, be3, c3_p)

    last = _NUM_PHASES - 1
    # Input is only consumed in phase 0, output only produced in the last phase;
    # phase-gated block indices keep the other phases on a single resident block
    # (no redundant DMAs, no junk output writebacks).
    x_map = lambda p, i: (0, jnp.where(p == 0, i, 0), 0)
    const = lambda p, i: (0, 0)                       # weights/gb stay VMEM-resident
    out_map = lambda p, i: (0, jnp.where(p == last, i, 0), 0)

    in_specs = [
        pl.BlockSpec((T, tile_b, cin_p), x_map),
        pl.BlockSpec((cin_p, c1_p), const), pl.BlockSpec((2, c1_p), const),
        pl.BlockSpec((c1_p, c2_p), const), pl.BlockSpec((2, c2_p), const),
        pl.BlockSpec((c2_p, c3_p), const), pl.BlockSpec((2, c3_p), const),
    ]
    out_spec = pl.BlockSpec((T, tile_b, c3_p), out_map)

    scratch = [
        pltpu.VMEM((nt, rows, c1_p), jnp.float32),   # pre-BN layer-1 output, all tiles
        pltpu.VMEM((nt, rows, c2_p), jnp.float32),   # pre-BN layer-2 output
        pltpu.VMEM((nt, rows, c3_p), jnp.float32),   # pre-BN layer-3 output
        pltpu.VMEM((rows, cin_p), jnp.bfloat16),     # shifted-input staging (per tile)
        pltpu.VMEM((rows, c1_p), jnp.bfloat16),      # layer-1 spike staging
        pltpu.VMEM((rows, c2_p), jnp.bfloat16),      # layer-2 spike staging
        pltpu.VMEM((2, c1_p), jnp.float32),          # [sum, sumsq] layer 1
        pltpu.VMEM((2, c2_p), jnp.float32),          # [sum, sumsq] layer 2
        pltpu.VMEM((2, c3_p), jnp.float32),          # [sum, sumsq] layer 3
    ]

    vmem_needed = (
        4 * T * B * (c1_p + c2_p + c3_p)                         # y scratches (f32)
        + 2 * rows * (cin_p + c1_p + c2_p)                       # spike staging (bf16)
        + 2 * (cin_p * c1_p + c1_p * c2_p + c2_p * c3_p)         # resident weights (bf16)
        + 16 * (c1_p + c2_p + c3_p)                              # stats + gamma/beta
        + 2 * 2 * rows * cin_p + 2 * 4 * rows * c3_p)            # in/out blocks (x2 buf)
    vmem_limit = int(min(100 * 2**20, max(2 * vmem_needed, 32 * 2**20)))

    flops = 2 * T * B * (cin_p * c1_p + c1_p * c2_p + c2_p * c3_p)
    bytes_accessed = int(x.size * 2
                         + (cin_p * c1_p + c1_p * c2_p + c2_p * c3_p) * 2
                         + 2 * 4 * (c1_p + c2_p + c3_p)
                         + T * B * c3_p * 4)

    out = pl.pallas_call(
        functools.partial(_prior_kernel, t_steps=T, batch=B, tile_b=tile_b),
        out_shape=jax.ShapeDtypeStruct((T, B, c3_p), jnp.float32),
        grid_spec=pltpu.PrefetchScalarGridSpec(
            num_scalar_prefetch=0,
            grid=(_NUM_PHASES, nt),
            in_specs=in_specs,
            out_specs=out_spec,
            scratch_shapes=scratch),
        compiler_params=pltpu.CompilerParams(
            # Both axes are sequential: the phase axis by construction, the tile
            # axis because the BN sum/sumsq accumulators live in shared scratch.
            dimension_semantics=("arbitrary", "arbitrary"),
            vmem_limit_bytes=vmem_limit),
        cost_estimate=pl.CostEstimate(flops=flops,
                                      transcendentals=nt * (c1_p + c2_p + c3_p),
                                      bytes_accessed=bytes_accessed),
    )(x, w1p, gb1, w2p, gb2, w3p, gb3)

    out = out[:, :, :c3]                                  # drop lane padding
    # (T, B, C*k) -> (B, C*k, T) -> (B, C, k, T)   (matches PyTorch .view)
    return jnp.transpose(out, (1, 2, 0)).reshape(B, C, k, T)


def ref_forward(z, params, k):
    """Pure-JAX reference replicating the PyTorch forward (training-mode BN).

    Matmul inputs are cast to bf16 (f32 accumulation) to match the kernel's MXU
    precision; the Linear bias is kept and cancels inside tdBatchNorm as in PyTorch.
    """
    B, C, T = z.shape
    z = z.astype(jnp.float32)
    h = jnp.concatenate([jnp.zeros((B, C, 1), jnp.float32), z[..., :-1]], axis=-1)
    for (w, b, g, be) in params:
        y = jnp.einsum('bct,oc->bot', h.astype(jnp.bfloat16), w.astype(jnp.bfloat16),
                       preferred_element_type=jnp.float32) + b[None, :, None]
        mean = jnp.mean(y, axis=(0, 2), keepdims=True)
        var = jnp.mean((y - mean) ** 2, axis=(0, 2), keepdims=True)
        y = BN_ALPHA * VTH * (y - mean) / jnp.sqrt(var + BN_EPS)
        y = y * g[None, :, None] + be[None, :, None]
        cout = y.shape[1]
        u = jnp.zeros((B, cout), jnp.float32)
        o = jnp.zeros((B, cout), jnp.float32)
        outs = []
        for t in range(T):
            u = TAU * u * (1.0 - o) + y[..., t]
            o = (u > VTH).astype(jnp.float32)
            outs.append(o)
        h = jnp.stack(outs, axis=-1)
    return h.reshape(B, C, k, T)


def _make_params(key, C, k):
    dims = [(2 * C, C), (4 * C, 2 * C), (k * C, 4 * C)]
    keys = jax.random.split(key, 2 * len(dims))
    params = []
    for i, (cout, cin) in enumerate(dims):
        bound = 1.0 / (cin ** 0.5)
        w = jax.random.uniform(keys[2 * i], (cout, cin), jnp.float32, -bound, bound)
        b = jax.random.uniform(keys[2 * i + 1], (cout,), jnp.float32, -bound, bound)
        g = jnp.ones((cout,), jnp.float32)
        be = jnp.zeros((cout,), jnp.float32)
        params.append((w, b, g, be))
    return params


if __name__ == "__main__":
    key = jax.random.PRNGKey(0)
    k1, k2, k3, k4 = jax.random.split(key, 4)

    # Outputs are hard-thresholded 0/1 spikes, so tiny bf16/f32 rounding
    # differences near Vth can flip a rare bit and cascade; a systematic kernel
    # bug produces mean-abs mismatch >= ~0.3, so a 0.05 budget cleanly separates
    # rounding-edge flips from real errors.
    BUDGET = 0.05

    # Case 1: toy shape (single batch tile; TILE_B == B == 2).
    B, C, T, K = 2, 16, 8, 20
    z = (jax.random.uniform(k1, (B, C, T)) > 0.5).astype(jnp.float32)
    params = _make_params(k2, C, K)
    p_z = jax.block_until_ready(prior_bernoulli_stbp_forward(z, params, K))
    assert p_z.shape == (B, C, K, T), p_z.shape
    assert p_z.dtype == jnp.float32
    ref = ref_forward(z, params, K)
    m1 = float(jnp.mean(jnp.abs(p_z - ref)))
    assert m1 < BUDGET, f"toy-shape mismatch fraction too large: {m1}"

    # Case 2: multi-tile batch — exercises the batch-tiled grid, cross-tile BN
    # sum/sumsq accumulation and sublane-aligned (TILE_B=8) per-timestep stores.
    B2 = 16
    z2 = (jax.random.uniform(k3, (B2, C, T)) > 0.5).astype(jnp.float32)
    params2 = _make_params(k4, C, K)
    p_z2 = jax.block_until_ready(
        prior_bernoulli_stbp_forward(z2, params2, K, tile_b=8))
    assert p_z2.shape == (B2, C, K, T), p_z2.shape
    ref2 = ref_forward(z2, params2, K)
    m2 = float(jnp.mean(jnp.abs(p_z2 - ref2)))
    assert m2 < BUDGET, f"multi-tile mismatch fraction too large: {m2}"

    print("KERNEL_OK")
</pallas_src>

<mosaic_0001>
module attributes {stable_mosaic.version = 11 : i64} {
  func.func @_prior_kernel(%arg0: i32, %arg1: i32, %arg2: memref<8x2x128xbf16, #tpu.memory_space<vmem>>, %arg3: memref<128x128xbf16, #tpu.memory_space<vmem>>, %arg4: memref<2x128xf32, #tpu.memory_space<vmem>>, %arg5: memref<128x128xbf16, #tpu.memory_space<vmem>>, %arg6: memref<2x128xf32, #tpu.memory_space<vmem>>, %arg7: memref<128x384xbf16, #tpu.memory_space<vmem>>, %arg8: memref<2x384xf32, #tpu.memory_space<vmem>>, %arg9: memref<8x2x384xf32, #tpu.memory_space<vmem>>, %arg10: memref<1x16x128xf32, #tpu.memory_space<vmem>>, %arg11: memref<1x16x128xf32, #tpu.memory_space<vmem>>, %arg12: memref<1x16x384xf32, #tpu.memory_space<vmem>>, %arg13: memref<16x128xbf16, #tpu.memory_space<vmem>>, %arg14: memref<16x128xbf16, #tpu.memory_space<vmem>>, %arg15: memref<16x128xbf16, #tpu.memory_space<vmem>>, %arg16: memref<2x128xf32, #tpu.memory_space<vmem>>, %arg17: memref<2x128xf32, #tpu.memory_space<vmem>>, %arg18: memref<2x384xf32, #tpu.memory_space<vmem>>) attributes {dimension_semantics = [#tpu.dimension_semantics<arbitrary>, #tpu.dimension_semantics<arbitrary>], iteration_bounds = array<i64: 4, 1>, scalar_prefetch = 0 : i64, scratch_operands = 9 : i64, tpu.core_type = #tpu.core_type<tc>, window_params = [{transform_indices = @transform_0, window_bounds = array<i64: 8, 2, 128>}, {pipeline_mode = #tpu.pipeline_mode<synchronous>, transform_indices = @transform_1, window_bounds = array<i64: 128, 128>}, {pipeline_mode = #tpu.pipeline_mode<synchronous>, transform_indices = @transform_2, window_bounds = array<i64: 2, 128>}, {pipeline_mode = #tpu.pipeline_mode<synchronous>, transform_indices = @transform_3, window_bounds = array<i64: 128, 128>}, {pipeline_mode = #tpu.pipeline_mode<synchronous>, transform_indices = @transform_4, window_bounds = array<i64: 2, 128>}, {pipeline_mode = #tpu.pipeline_mode<synchronous>, transform_indices = @transform_5, window_bounds = array<i64: 128, 384>}, {pipeline_mode = #tpu.pipeline_mode<synchronous>, transform_indices = @transform_6, window_bounds = array<i64: 2, 384>}, {transform_indices = @transform_7, window_bounds = array<i64: 8, 2, 384>}]} {
    %c0_i32 = arith.constant 0 : i32
    %0 = arith.cmpi eq, %arg1, %c0_i32 : i32
    %c0_i32_0 = arith.constant 0 : i32
    %1 = arith.cmpi eq, %arg0, %c0_i32_0 : i32
    %2 = arith.extui %1 : i1 to i32
    %c0_i32_1 = arith.constant 0 : i32
    %3 = arith.cmpi ne, %2, %c0_i32_1 : i32
    scf.if %3 {
      %cst = arith.constant 0.000000e+00 : bf16
      %13 = vector.broadcast %cst : bf16 to vector<2x128xbf16>
      %c0 = arith.constant 0 : index
      %c0_5 = arith.constant 0 : index
      %14 = vector.load %arg13[%c0, %c0_5] : memref<16x128xbf16, #tpu.memory_space<vmem>>, vector<2x128xbf16>
      tpu.vector_store %arg13[%c0, %c0_5], %13 {strides = array<i32>} : memref<16x128xbf16, #tpu.memory_space<vmem>>, vector<2x128xbf16>,
      %c0_6 = arith.constant 0 : index
      %c0_7 = arith.constant 0 : index
      %c0_8 = arith.constant 0 : index
      %15 = vector.load %arg2[%c0_6, %c0_7, %c0_8] : memref<8x2x128xbf16, #tpu.memory_space<vmem>>, vector<1x2x128xbf16>
      %16 = vector.shape_cast %15 : vector<1x2x128xbf16> to vector<2x128xbf16>
      %c2 = arith.constant 2 : index
      %c0_9 = arith.constant 0 : index
      %17 = vector.load %arg13[%c2, %c0_9] : memref<16x128xbf16, #tpu.memory_space<vmem>>, vector<2x128xbf16>
      tpu.vector_store %arg13[%c2, %c0_9], %16 {strides = array<i32>} : memref<16x128xbf16, #tpu.memory_space<vmem>>, vector<2x128xbf16>,
      %c1 = arith.constant 1 : index
      %c0_10 = arith.constant 0 : index
      %c0_11 = arith.constant 0 : index
      %18 = vector.load %arg2[%c1, %c0_10, %c0_11] : memref<8x2x128xbf16, #tpu.memory_space<vmem>>, vector<1x2x128xbf16>
      %19 = vector.shape_cast %18 : vector<1x2x128xbf16> to vector<2x128xbf16>
      %c4 = arith.constant 4 : index
      %c0_12 = arith.constant 0 : index
      %20 = vector.load %arg13[%c4, %c0_12] : memref<16x128xbf16, #tpu.memory_space<vmem>>, vector<2x128xbf16>
      tpu.vector_store %arg13[%c4, %c0_12], %19 {strides = array<i32>} : memref<16x128xbf16, #tpu.memory_space<vmem>>, vector<2x128xbf16>,
      %c2_13 = arith.constant 2 : index
      %c0_14 = arith.constant 0 : index
      %c0_15 = arith.constant 0 : index
      %21 = vector.load %arg2[%c2_13, %c0_14, %c0_15] : memref<8x2x128xbf16, #tpu.memory_space<vmem>>, vector<1x2x128xbf16>
      %22 = vector.shape_cast %21 : vector<1x2x128xbf16> to vector<2x128xbf16>
      %c6 = arith.constant 6 : index
      %c0_16 = arith.constant 0 : index
      %23 = vector.load %arg13[%c6, %c0_16] : memref<16x128xbf16, #tpu.memory_space<vmem>>, vector<2x128xbf16>
      tpu.vector_store %arg13[%c6, %c0_16], %22 {strides = array<i32>} : memref<16x128xbf16, #tpu.memory_space<vmem>>, vector<2x128xbf16>,
      %c3 = arith.constant 3 : index
      %c0_17 = arith.constant 0 : index
      %c0_18 = arith.constant 0 : index
      %24 = vector.load %arg2[%c3, %c0_17, %c0_18] : memref<8x2x128xbf16, #tpu.memory_space<vmem>>, vector<1x2x128xbf16>
      %25 = vector.shape_cast %24 : vector<1x2x128xbf16> to vector<2x128xbf16>
      %c8 = arith.constant 8 : index
      %c0_19 = arith.constant 0 : index
      %26 = vector.load %arg13[%c8, %c0_19] : memref<16x128xbf16, #tpu.memory_space<vmem>>, vector<2x128xbf16>
      tpu.vector_store %arg13[%c8, %c0_19], %25 {strides = array<i32>} : memref<16x128xbf16, #tpu.memory_space<vmem>>, vector<2x128xbf16>,
      %c4_20 = arith.constant 4 : index
      %c0_21 = arith.constant 0 : index
      %c0_22 = arith.constant 0 : index
      %27 = vector.load %arg2[%c4_20, %c0_21, %c0_22] : memref<8x2x128xbf16, #tpu.memory_space<vmem>>, vector<1x2x128xbf16>
      %28 = vector.shape_cast %27 : vector<1x2x128xbf16> to vector<2x128xbf16>
      %c10 = arith.constant 10 : index
      %c0_23 = arith.constant 0 : index
      %29 = vector.load %arg13[%c10, %c0_23] : memref<16x128xbf16, #tpu.memory_space<vmem>>, vector<2x128xbf16>
      tpu.vector_store %arg13[%c10, %c0_23], %28 {strides = array<i32>} : memref<16x128xbf16, #tpu.memory_space<vmem>>, vector<2x128xbf16>,
      %c5 = arith.constant 5 : index
      %c0_24 = arith.constant 0 : index
      %c0_25 = arith.constant 0 : index
      %30 = vector.load %arg2[%c5, %c0_24, %c0_25] : memref<8x2x128xbf16, #tpu.memory_space<vmem>>, vector<1x2x128xbf16>
      %31 = vector.shape_cast %30 : vector<1x2x128xbf16> to vector<2x128xbf16>
      %c12 = arith.constant 12 : index
      %c0_26 = arith.constant 0 : index
      %32 = vector.load %arg13[%c12, %c0_26] : memref<16x128xbf16, #tpu.memory_space<vmem>>, vector<2x128xbf16>
      tpu.vector_store %arg13[%c12, %c0_26], %31 {strides = array<i32>} : memref<16x128xbf16, #tpu.memory_space<vmem>>, vector<2x128xbf16>,
      %c6_27 = arith.constant 6 : index
      %c0_28 = arith.constant 0 : index
      %c0_29 = arith.constant 0 : index
      %33 = vector.load %arg2[%c6_27, %c0_28, %c0_29] : memref<8x2x128xbf16, #tpu.memory_space<vmem>>, vector<1x2x128xbf16>
      %34 = vector.shape_cast %33 : vector<1x2x128xbf16> to vector<2x128xbf16>
      %c14 = arith.constant 14 : index
      %c0_30 = arith.constant 0 : index
      %35 = vector.load %arg13[%c14, %c0_30] : memref<16x128xbf16, #tpu.memory_space<vmem>>, vector<2x128xbf16>
      tpu.vector_store %arg13[%c14, %c0_30], %34 {strides = array<i32>} : memref<16x128xbf16, #tpu.memory_space<vmem>>, vector<2x128xbf16>,
      %c0_31 = arith.constant 0 : index
      %c0_32 = arith.constant 0 : index
      %36 = vector.load %arg13[%c0_31, %c0_32] : memref<16x128xbf16, #tpu.memory_space<vmem>>, vector<16x128xbf16>
      %c0_33 = arith.constant 0 : index
      %c0_34 = arith.constant 0 : index
      %37 = vector.load %arg3[%c0_33, %c0_34] : memref<128x128xbf16, #tpu.memory_space<vmem>>, vector<128x128xbf16>
      %cst_35 = arith.constant dense<0.000000e+00> : vector<16x128xf32>
      %38 = tpu.matmul %36, %37, %cst_35 {dimension_numbers = #tpu.dot_dimension_numbers<[1], [0], [0], [1], [0, 0, 1, 1], [], []>} : vector<16x128xbf16>, vector<128x128xbf16>, vector<16x128xf32> -> vector<16x128xf32>
      %39 = arith.extui %0 : i1 to i32
      %c0_i32_36 = arith.constant 0 : i32
      %40 = arith.cmpi ne, %39, %c0_i32_36 : i32
      scf.if %40 {
        %cst_45 = arith.constant 0.000000e+00 : f32
        %54 = vector.broadcast %cst_45 : f32 to vector<2x128xf32>
        %c0_46 = arith.constant 0 : index
        %c0_47 = arith.constant 0 : index
        %55 = vector.load %arg16[%c0_46, %c0_47] : memref<2x128xf32, #tpu.memory_space<vmem>>, vector<2x128xf32>
        tpu.vector_store %arg16[%c0_46, %c0_47], %54 {strides = array<i32>} : memref<2x128xf32, #tpu.memory_space<vmem>>, vector<2x128xf32>,
      } else {
      }
      %cst_37 = arith.constant dense<0.000000e+00> : vector<128xf32>
      %41 = vector.multi_reduction <add>, %38, %cst_37 [0] : vector<16x128xf32> to vector<128xf32>
      %42 = vector.shape_cast %41 : vector<128xf32> to vector<1x128xf32>
      %43 = arith.mulf %38, %38 : vector<16x128xf32>
      %cst_38 = arith.constant dense<0.000000e+00> : vector<128xf32>
      %44 = vector.multi_reduction <add>, %43, %cst_38 [0] : vector<16x128xf32> to vector<128xf32>
      %45 = vector.shape_cast %44 : vector<128xf32> to vector<1x128xf32>
      %c0_39 = arith.constant 0 : index
      %c0_40 = arith.constant 0 : index
      %46 = vector.load %arg16[%c0_39, %c0_40] : memref<2x128xf32, #tpu.memory_space<vmem>>, vector<2x128xf32>
      %47 = tpu.concatenate %42, %45 in 0 : vector<1x128xf32>, vector<1x128xf32> -> vector<2x128xf32>
      %48 = arith.addf %46, %47 : vector<2x128xf32>
      %c0_41 = arith.constant 0 : index
      %c0_42 = arith.constant 0 : index
      %49 = vector.load %arg16[%c0_41, %c0_42] : memref<2x128xf32, #tpu.memory_space<vmem>>, vector<2x128xf32>
      tpu.vector_store %arg16[%c0_41, %c0_42], %48 {strides = array<i32>} : memref<2x128xf32, #tpu.memory_space<vmem>>, vector<2x128xf32>,
      %50 = arith.index_cast %arg1 : i32 to index
      %c0_43 = arith.constant 0 : index
      %c0_44 = arith.constant 0 : index
      %51 = vector.load %arg10[%50, %c0_43, %c0_44] : memref<1x16x128xf32, #tpu.memory_space<vmem>>, vector<1x16x128xf32>
      %52 = vector.shape_cast %51 : vector<1x16x128xf32> to vector<16x128xf32>
      %53 = vector.shape_cast %38 : vector<16x128xf32> to vector<1x16x128xf32>
      tpu.vector_store %arg10[%50, %c0_43, %c0_44], %53 {strides = array<i32>} : memref<1x16x128xf32, #tpu.memory_space<vmem>>, vector<1x16x128xf32>,
    } else {
    }
    %c1_i32 = arith.constant 1 : i32
    %4 = arith.cmpi eq, %arg0, %c1_i32 : i32
    %5 = arith.extui %4 : i1 to i32
    %c0_i32_2 = arith.constant 0 : i32
    %6 = arith.cmpi ne, %5, %c0_i32_2 : i32
    scf.if %6 {
      %c0 = arith.constant 0 : index
      %c0_5 = arith.constant 0 : index
      %13 = vector.load %arg16[%c0, %c0_5] : memref<2x128xf32, #tpu.memory_space<vmem>>, vector<2x128xf32>
      %14 = vector.extract_strided_slice %13 {offsets = [0, 0], sizes = [1, 128], strides = [1, 1]} : vector<2x128xf32> to vector<1x128xf32>
      %cst = arith.constant 6.250000e-02 : f32
      %15 = vector.broadcast %cst : f32 to vector<1x128xf32>
      %16 = arith.mulf %14, %15 : vector<1x128xf32>
      %17 = vector.extract_strided_slice %13 {offsets = [1, 0], sizes = [1, 128], strides = [1, 1]} : vector<2x128xf32> to vector<1x128xf32>
      %cst_6 = arith.constant 6.250000e-02 : f32
      %18 = vector.broadcast %cst_6 : f32 to vector<1x128xf32>
      %19 = arith.mulf %17, %18 : vector<1x128xf32>
      %20 = arith.mulf %16, %16 : vector<1x128xf32>
      %21 = arith.subf %19, %20 : vector<1x128xf32>
      %cst_7 = arith.constant 0.000000e+00 : f32
      %22 = vector.broadcast %cst_7 : f32 to vector<1x128xf32>
      %23 = arith.maximumf %21, %22 : vector<1x128xf32>
      %c0_8 = arith.constant 0 : index
      %c0_9 = arith.constant 0 : index
      %24 = vector.load %arg4[%c0_8, %c0_9] : memref<2x128xf32, #tpu.memory_space<vmem>>, vector<1x128xf32>
      %c1 = arith.constant 1 : index
      %c0_10 = arith.constant 0 : index
      %25 = vector.load %arg4[%c1, %c0_10] : memref<2x128xf32, #tpu.memory_space<vmem>>, vector<1x128xf32>
      %cst_11 = arith.constant 4.000000e-01 : f32
      %26 = vector.broadcast %cst_11 : f32 to vector<1x128xf32>
      %27 = arith.mulf %26, %24 : vector<1x128xf32>
      %cst_12 = arith.constant 9.99999974E-6 : f32
      %28 = vector.broadcast %cst_12 : f32 to vector<1x128xf32>
      %29 = arith.addf %23, %28 : vector<1x128xf32>
      %30 = math.rsqrt %29 : vector<1x128xf32>
      %31 = arith.mulf %27, %30 : vector<1x128xf32>
      %32 = arith.mulf %16, %31 : vector<1x128xf32>
      %33 = arith.subf %25, %32 : vector<1x128xf32>
      %cst_13 = arith.constant 0.000000e+00 : f32
      %34 = vector.broadcast %cst_13 : f32 to vector<2x128xf32>
      %cst_14 = arith.constant 0.000000e+00 : f32
      %35 = vector.broadcast %cst_14 : f32 to vector<2x128xf32>
      %c0_i32_15 = arith.constant 0 : i32
      %c0_i32_16 = arith.constant 0 : i32
      %36 = tpu.memref_slice %arg10[%arg1, %c0_i32_15, %c0_i32_16] : memref<1x16x128xf32, #tpu.memory_space<vmem>> -> memref<1x16x128xf32, #tpu.memory_space<vmem>>
      %37 = tpu.memref_squeeze %36 : memref<1x16x128xf32, #tpu.memory_space<vmem>> -> memref<16x128xf32, #tpu.memory_space<vmem>>
      %c0_17 = arith.constant 0 : index
      %c0_18 = arith.constant 0 : index
      %38 = vector.load %37[%c0_17, %c0_18] : memref<16x128xf32, #tpu.memory_space<vmem>>, vector<2x128xf32>
      %cst_19 = arith.constant 2.500000e-01 : f32
      %39 = vector.broadcast %cst_19 : f32 to vector<2x128xf32>
      %40 = arith.mulf %39, %34 : vector<2x128xf32>
      %cst_20 = arith.constant 1.000000e+00 : f32
      %41 = vector.broadcast %cst_20 : f32 to vector<2x128xf32>
      %42 = arith.subf %41, %35 : vector<2x128xf32>
      %43 = arith.mulf %40, %42 : vector<2x128xf32>
      %44 = vector.broadcast %31 : vector<1x128xf32> to vector<2x128xf32>
      %45 = arith.mulf %38, %44 : vector<2x128xf32>
      %46 = vector.broadcast %33 : vector<1x128xf32> to vector<2x128xf32>
      %47 = arith.addf %45, %46 : vector<2x128xf32>
      %48 = arith.addf %43, %47 : vector<2x128xf32>
      %cst_21 = arith.constant 2.000000e-01 : f32
      %49 = vector.broadcast %cst_21 : f32 to vector<2x128xf32>
      %50 = arith.cmpf ogt, %48, %49 : vector<2x128xf32>
      %51 = arith.extui %50 : vector<2x128xi1> to vector<2x128xi32>
      %52 = arith.sitofp %51 : vector<2x128xi32> to vector<2x128xf32>
      %53 = arith.truncf %52 : vector<2x128xf32> to vector<2x128xbf16>
      %c0_22 = arith.constant 0 : index
      %c0_23 = arith.constant 0 : index
      %54 = vector.load %arg14[%c0_22, %c0_23] : memref<16x128xbf16, #tpu.memory_space<vmem>>, vector<2x128xbf16>
      tpu.vector_store %arg14[%c0_22, %c0_23], %53 {strides = array<i32>} : memref<16x128xbf16, #tpu.memory_space<vmem>>, vector<2x128xbf16>,
      %c0_i32_24 = arith.constant 0 : i32
      %c0_i32_25 = arith.constant 0 : i32
      %55 = tpu.memref_slice %arg10[%arg1, %c0_i32_24, %c0_i32_25] : memref<1x16x128xf32, #tpu.memory_space<vmem>> -> memref<1x16x128xf32, #tpu.memory_space<vmem>>
      %56 = tpu.memref_squeeze %55 : memref<1x16x128xf32, #tpu.memory_space<vmem>> -> memref<16x128xf32, #tpu.memory_space<vmem>>
      %c2 = arith.constant 2 : index
      %c0_26 = arith.constant 0 : index
      %57 = vector.load %56[%c2, %c0_26] : memref<16x128xf32, #tpu.memory_space<vmem>>, vector<2x128xf32>
      %cst_27 = arith.constant 2.500000e-01 : f32
      %58 = vector.broadcast %cst_27 : f32 to vector<2x128xf32>
      %59 = arith.mulf %58, %48 : vector<2x128xf32>
      %cst_28 = arith.constant 1.000000e+00 : f32
      %60 = vector.broadcast %cst_28 : f32 to vector<2x128xf32>
      %61 = arith.subf %60, %52 : vector<2x128xf32>
      %62 = arith.mulf %59, %61 : vector<2x128xf32>
      %63 = vector.broadcast %31 : vector<1x128xf32> to vector<2x128xf32>
      %64 = arith.mulf %57, %63 : vector<2x128xf32>
      %65 = vector.broadcast %33 : vector<1x128xf32> to vector<2x128xf32>
      %66 = arith.addf %64, %65 : vector<2x128xf32>
      %67 = arith.addf %62, %66 : vector<2x128xf32>
      %cst_29 = arith.constant 2.000000e-01 : f32
      %68 = vector.broadcast %cst_29 : f32 to vector<2x128xf32>
      %69 = arith.cmpf ogt, %67, %68 : vector<2x128xf32>
      %70 = arith.extui %69 : vector<2x128xi1> to vector<2x128xi32>
      %71 = arith.sitofp %70 : vector<2x128xi32> to vector<2x128xf32>
      %72 = arith.truncf %71 : vector<2x128xf32> to vector<2x128xbf16>
      %c2_30 = arith.constant 2 : index
      %c0_31 = arith.constant 0 : index
      %73 = vector.load %arg14[%c2_30, %c0_31] : memref<16x128xbf16, #tpu.memory_space<vmem>>, vector<2x128xbf16>
      tpu.vector_store %arg14[%c2_30, %c0_31], %72 {strides = array<i32>} : memref<16x128xbf16, #tpu.memory_space<vmem>>, vector<2x128xbf16>,
      %c0_i32_32 = arith.constant 0 : i32
      %c0_i32_33 = arith.constant 0 : i32
      %74 = tpu.memref_slice %arg10[%arg1, %c0_i32_32, %c0_i32_33] : memref<1x16x128xf32, #tpu.memory_space<vmem>> -> memref<1x16x128xf32, #tpu.memory_space<vmem>>
      %75 = tpu.memref_squeeze %74 : memref<1x16x128xf32, #tpu.memory_space<vmem>> -> memref<16x128xf32, #tpu.memory_space<vmem>>
      %c4 = arith.constant 4 : index
      %c0_34 = arith.constant 0 : index
      %76 = vector.load %75[%c4, %c0_34] : memref<16x128xf32, #tpu.memory_space<vmem>>, vector<2x128xf32>
      %cst_35 = arith.constant 2.500000e-01 : f32
      %77 = vector.broadcast %cst_35 : f32 to vector<2x128xf32>
      %78 = arith.mulf %77, %67 : vector<2x128xf32>
      %cst_36 = arith.constant 1.000000e+00 : f32
      %79 = vector.broadcast %cst_36 : f32 to vector<2x128xf32>
      %80 = arith.subf %79, %71 : vector<2x128xf32>
      %81 = arith.mulf %78, %80 : vector<2x128xf32>
      %82 = vector.broadcast %31 : vector<1x128xf32> to vector<2x128xf32>
      %83 = arith.mulf %76, %82 : vector<2x128xf32>
      %84 = vector.broadcast %33 : vector<1x128xf32> to vector<2x128xf32>
      %85 = arith.addf %83, %84 : vector<2x128xf32>
      %86 = arith.addf %81, %85 : vector<2x128xf32>
      %cst_37 = arith.constant 2.000000e-01 : f32
      %87 = vector.broadcast %cst_37 : f32 to vector<2x128xf32>
      %88 = arith.cmpf ogt, %86, %87 : vector<2x128xf32>
      %89 = arith.extui %88 : vector<2x128xi1> to vector<2x128xi32>
      %90 = arith.sitofp %89 : vector<2x128xi32> to vector<2x128xf32>
      %91 = arith.truncf %90 : vector<2x128xf32> to vector<2x128xbf16>
      %c4_38 = arith.constant 4 : index
      %c0_39 = arith.constant 0 : index
      %92 = vector.load %arg14[%c4_38, %c0_39] : memref<16x128xbf16, #tpu.memory_space<vmem>>, vector<2x128xbf16>
      tpu.vector_store %arg14[%c4_38, %c0_39], %91 {strides = array<i32>} : memref<16x128xbf16, #tpu.memory_space<vmem>>, vector<2x128xbf16>,
      %c0_i32_40 = arith.constant 0 : i32
      %c0_i32_41 = arith.constant 0 : i32
      %93 = tpu.memref_slice %arg10[%arg1, %c0_i32_40, %c0_i32_41] : memref<1x16x128xf32, #tpu.memory_space<vmem>> -> memref<1x16x128xf32, #tpu.memory_space<vmem>>
      %94 = tpu.memref_squeeze %93 : memref<1x16x128xf32, #tpu.memory_space<vmem>> -> memref<16x128xf32, #tpu.memory_space<vmem>>
      %c6 = arith.constant 6 : index
      %c0_42 = arith.constant 0 : index
      %95 = vector.load %94[%c6, %c0_42] : memref<16x128xf32, #tpu.memory_space<vmem>>, vector<2x128xf32>
      %cst_43 = arith.constant 2.500000e-01 : f32
      %96 = vector.broadcast %cst_43 : f32 to vector<2x128xf32>
      %97 = arith.mulf %96, %86 : vector<2x128xf32>
      %cst_44 = arith.constant 1.000000e+00 : f32
      %98 = vector.broadcast %cst_44 : f32 to vector<2x128xf32>
      %99 = arith.subf %98, %90 : vector<2x128xf32>
      %100 = arith.mulf %97, %99 : vector<2x128xf32>
      %101 = vector.broadcast %31 : vector<1x128xf32> to vector<2x128xf32>
      %102 = arith.mulf %95, %101 : vector<2x128xf32>
      %103 = vector.broadcast %33 : vector<1x128xf32> to vector<2x128xf32>
      %104 = arith.addf %102, %103 : vector<2x128xf32>
      %105 = arith.addf %100, %104 : vector<2x128xf32>
      %cst_45 = arith.constant 2.000000e-01 : f32
      %106 = vector.broadcast %cst_45 : f32 to vector<2x128xf32>
      %107 = arith.cmpf ogt, %105, %106 : vector<2x128xf32>
      %108 = arith.extui %107 : vector<2x128xi1> to vector<2x128xi32>
      %109 = arith.sitofp %108 : vector<2x128xi32> to vector<2x128xf32>
      %110 = arith.truncf %109 : vector<2x128xf32> to vector<2x128xbf16>
      %c6_46 = arith.constant 6 : index
      %c0_47 = arith.constant 0 : index
      %111 = vector.load %arg14[%c6_46, %c0_47] : memref<16x128xbf16, #tpu.memory_space<vmem>>, vector<2x128xbf16>
      tpu.vector_store %arg14[%c6_46, %c0_47], %110 {strides = array<i32>} : memref<16x128xbf16, #tpu.memory_space<vmem>>, vector<2x128xbf16>,
      %c0_i32_48 = arith.constant 0 : i32
      %c0_i32_49 = arith.constant 0 : i32
      %112 = tpu.memref_slice %arg10[%arg1, %c0_i32_48, %c0_i32_49] : memref<1x16x128xf32, #tpu.memory_space<vmem>> -> memref<1x16x128xf32, #tpu.memory_space<vmem>>
      %113 = tpu.memref_squeeze %112 : memref<1x16x128xf32, #tpu.memory_space<vmem>> -> memref<16x128xf32, #tpu.memory_space<vmem>>
      %c8 = arith.constant 8 : index
      %c0_50 = arith.constant 0 : index
      %114 = vector.load %113[%c8, %c0_50] : memref<16x128xf32, #tpu.memory_space<vmem>>, vector<2x128xf32>
      %cst_51 = arith.constant 2.500000e-01 : f32
      %115 = vector.broadcast %cst_51 : f32 to vector<2x128xf32>
      %116 = arith.mulf %115, %105 : vector<2x128xf32>
      %cst_52 = arith.constant 1.000000e+00 : f32
      %117 = vector.broadcast %cst_52 : f32 to vector<2x128xf32>
      %118 = arith.subf %117, %109 : vector<2x128xf32>
      %119 = arith.mulf %116, %118 : vector<2x128xf32>
      %120 = vector.broadcast %31 : vector<1x128xf32> to vector<2x128xf32>
      %121 = arith.mulf %114, %120 : vector<2x128xf32>
      %122 = vector.broadcast %33 : vector<1x128xf32> to vector<2x128xf32>
      %123 = arith.addf %121, %122 : vector<2x128xf32>
      %124 = arith.addf %119, %123 : vector<2x128xf32>
      %cst_53 = arith.constant 2.000000e-01 : f32
      %125 = vector.broadcast %cst_53 : f32 to vector<2x128xf32>
      %126 = arith.cmpf ogt, %124, %125 : vector<2x128xf32>
      %127 = arith.extui %126 : vector<2x128xi1> to vector<2x128xi32>
      %128 = arith.sitofp %127 : vector<2x128xi32> to vector<2x128xf32>
      %129 = arith.truncf %128 : vector<2x128xf32> to vector<2x128xbf16>
      %c8_54 = arith.constant 8 : index
      %c0_55 = arith.constant 0 : index
      %130 = vector.load %arg14[%c8_54, %c0_55] : memref<16x128xbf16, #tpu.memory_space<vmem>>, vector<2x128xbf16>
      tpu.vector_store %arg14[%c8_54, %c0_55], %129 {strides = array<i32>} : memref<16x128xbf16, #tpu.memory_space<vmem>>, vector<2x128xbf16>,
      %c0_i32_56 = arith.constant 0 : i32
      %c0_i32_57 = arith.constant 0 : i32
      %131 = tpu.memref_slice %arg10[%arg1, %c0_i32_56, %c0_i32_57] : memref<1x16x128xf32, #tpu.memory_space<vmem>> -> memref<1x16x128xf32, #tpu.memory_space<vmem>>
      %132 = tpu.memref_squeeze %131 : memref<1x16x128xf32, #tpu.memory_space<vmem>> -> memref<16x128xf32, #tpu.memory_space<vmem>>
      %c10 = arith.constant 10 : index
      %c0_58 = arith.constant 0 : index
      %133 = vector.load %132[%c10, %c0_58] : memref<16x128xf32, #tpu.memory_space<vmem>>, vector<2x128xf32>
      %cst_59 = arith.constant 2.500000e-01 : f32
      %134 = vector.broadcast %cst_59 : f32 to vector<2x128xf32>
      %135 = arith.mulf %134, %124 : vector<2x128xf32>
      %cst_60 = arith.constant 1.000000e+00 : f32
      %136 = vector.broadcast %cst_60 : f32 to vector<2x128xf32>
      %137 = arith.subf %136, %128 : vector<2x128xf32>
      %138 = arith.mulf %135, %137 : vector<2x128xf32>
      %139 = vector.broadcast %31 : vector<1x128xf32> to vector<2x128xf32>
      %140 = arith.mulf %133, %139 : vector<2x128xf32>
      %141 = vector.broadcast %33 : vector<1x128xf32> to vector<2x128xf32>
      %142 = arith.addf %140, %141 : vector<2x128xf32>
      %143 = arith.addf %138, %142 : vector<2x128xf32>
      %cst_61 = arith.constant 2.000000e-01 : f32
      %144 = vector.broadcast %cst_61 : f32 to vector<2x128xf32>
      %145 = arith.cmpf ogt, %143, %144 : vector<2x128xf32>
      %146 = arith.extui %145 : vector<2x128xi1> to vector<2x128xi32>
      %147 = arith.sitofp %146 : vector<2x128xi32> to vector<2x128xf32>
      %148 = arith.truncf %147 : vector<2x128xf32> to vector<2x128xbf16>
      %c10_62 = arith.constant 10 : index
      %c0_63 = arith.constant 0 : index
      %149 = vector.load %arg14[%c10_62, %c0_63] : memref<16x128xbf16, #tpu.memory_space<vmem>>, vector<2x128xbf16>
      tpu.vector_store %arg14[%c10_62, %c0_63], %148 {strides = array<i32>} : memref<16x128xbf16, #tpu.memory_space<vmem>>, vector<2x128xbf16>,
      %c0_i32_64 = arith.constant 0 : i32
      %c0_i32_65 = arith.constant 0 : i32
      %150 = tpu.memref_slice %arg10[%arg1, %c0_i32_64, %c0_i32_65] : memref<1x16x128xf32, #tpu.memory_space<vmem>> -> memref<1x16x128xf32, #tpu.memory_space<vmem>>
      %151 = tpu.memref_squeeze %150 : memref<1x16x128xf32, #tpu.memory_space<vmem>> -> memref<16x128xf32, #tpu.memory_space<vmem>>
      %c12 = arith.constant 12 : index
      %c0_66 = arith.constant 0 : index
      %152 = vector.load %151[%c12, %c0_66] : memref<16x128xf32, #tpu.memory_space<vmem>>, vector<2x128xf32>
      %cst_67 = arith.constant 2.500000e-01 : f32
      %153 = vector.broadcast %cst_67 : f32 to vector<2x128xf32>
      %154 = arith.mulf %153, %143 : vector<2x128xf32>
      %cst_68 = arith.constant 1.000000e+00 : f32
      %155 = vector.broadcast %cst_68 : f32 to vector<2x128xf32>
      %156 = arith.subf %155, %147 : vector<2x128xf32>
      %157 = arith.mulf %154, %156 : vector<2x128xf32>
      %158 = vector.broadcast %31 : vector<1x128xf32> to vector<2x128xf32>
      %159 = arith.mulf %152, %158 : vector<2x128xf32>
      %160 = vector.broadcast %33 : vector<1x128xf32> to vector<2x128xf32>
      %161 = arith.addf %159, %160 : vector<2x128xf32>
      %162 = arith.addf %157, %161 : vector<2x128xf32>
      %cst_69 = arith.constant 2.000000e-01 : f32
      %163 = vector.broadcast %cst_69 : f32 to vector<2x128xf32>
      %164 = arith.cmpf ogt, %162, %163 : vector<2x128xf32>
      %165 = arith.extui %164 : vector<2x128xi1> to vector<2x128xi32>
      %166 = arith.sitofp %165 : vector<2x128xi32> to vector<2x128xf32>
      %167 = arith.truncf %166 : vector<2x128xf32> to vector<2x128xbf16>
      %c12_70 = arith.constant 12 : index
      %c0_71 = arith.constant 0 : index
      %168 = vector.load %arg14[%c12_70, %c0_71] : memref<16x128xbf16, #tpu.memory_space<vmem>>, vector<2x128xbf16>
      tpu.vector_store %arg14[%c12_70, %c0_71], %167 {strides = array<i32>} : memref<16x128xbf16, #tpu.memory_space<vmem>>, vector<2x128xbf16>,
      %c0_i32_72 = arith.constant 0 : i32
      %c0_i32_73 = arith.constant 0 : i32
      %169 = tpu.memref_slice %arg10[%arg1, %c0_i32_72, %c0_i32_73] : memref<1x16x128xf32, #tpu.memory_space<vmem>> -> memref<1x16x128xf32, #tpu.memory_space<vmem>>
      %170 = tpu.memref_squeeze %169 : memref<1x16x128xf32, #tpu.memory_space<vmem>> -> memref<16x128xf32, #tpu.memory_space<vmem>>
      %c14 = arith.constant 14 : index
      %c0_74 = arith.constant 0 : index
      %171 = vector.load %170[%c14, %c0_74] : memref<16x128xf32, #tpu.memory_space<vmem>>, vector<2x128xf32>
      %cst_75 = arith.constant 2.500000e-01 : f32
      %172 = vector.broadcast %cst_75 : f32 to vector<2x128xf32>
      %173 = arith.mulf %172, %162 : vector<2x128xf32>
      %cst_76 = arith.constant 1.000000e+00 : f32
      %174 = vector.broadcast %cst_76 : f32 to vector<2x128xf32>
      %175 = arith.subf %174, %166 : vector<2x128xf32>
      %176 = arith.mulf %173, %175 : vector<2x128xf32>
      %177 = vector.broadcast %31 : vector<1x128xf32> to vector<2x128xf32>
      %178 = arith.mulf %171, %177 : vector<2x128xf32>
      %179 = vector.broadcast %33 : vector<1x128xf32> to vector<2x128xf32>
      %180 = arith.addf %178, %179 : vector<2x128xf32>
      %181 = arith.addf %176, %180 : vector<2x128xf32>
      %cst_77 = arith.constant 2.000000e-01 : f32
      %182 = vector.broadcast %cst_77 : f32 to vector<2x128xf32>
      %183 = arith.cmpf ogt, %181, %182 : vector<2x128xf32>
      %184 = arith.extui %183 : vector<2x128xi1> to vector<2x128xi32>
      %185 = arith.sitofp %184 : vector<2x128xi32> to vector<2x128xf32>
      %186 = arith.truncf %185 : vector<2x128xf32> to vector<2x128xbf16>
      %c14_78 = arith.constant 14 : index
      %c0_79 = arith.constant 0 : index
      %187 = vector.load %arg14[%c14_78, %c0_79] : memref<16x128xbf16, #tpu.memory_space<vmem>>, vector<2x128xbf16>
      tpu.vector_store %arg14[%c14_78, %c0_79], %186 {strides = array<i32>} : memref<16x128xbf16, #tpu.memory_space<vmem>>, vector<2x128xbf16>,
      %c0_80 = arith.constant 0 : index
      %c0_81 = arith.constant 0 : index
      %188 = vector.load %arg14[%c0_80, %c0_81] : memref<16x128xbf16, #tpu.memory_space<vmem>>, vector<16x128xbf16>
      %c0_82 = arith.constant 0 : index
      %c0_83 = arith.constant 0 : index
      %189 = vector.load %arg5[%c0_82, %c0_83] : memref<128x128xbf16, #tpu.memory_space<vmem>>, vector<128x128xbf16>
      %cst_84 = arith.constant dense<0.000000e+00> : vector<16x128xf32>
      %190 = tpu.matmul %188, %189, %cst_84 {dimension_numbers = #tpu.dot_dimension_numbers<[1], [0], [0], [1], [0, 0, 1, 1], [], []>} : vector<16x128xbf16>, vector<128x128xbf16>, vector<16x128xf32> -> vector<16x128xf32>
      %191 = arith.extui %0 : i1 to i32
      %c0_i32_85 = arith.constant 0 : i32
      %192 = arith.cmpi ne, %191, %c0_i32_85 : i32
      scf.if %192 {
        %cst_94 = arith.constant 0.000000e+00 : f32
        %206 = vector.broadcast %cst_94 : f32 to vector<2x128xf32>
        %c0_95 = arith.constant 0 : index
        %c0_96 = arith.constant 0 : index
        %207 = vector.load %arg17[%c0_95, %c0_96] : memref<2x128xf32, #tpu.memory_space<vmem>>, vector<2x128xf32>
        tpu.vector_store %arg17[%c0_95, %c0_96], %206 {strides = array<i32>} : memref<2x128xf32, #tpu.memory_space<vmem>>, vector<2x128xf32>,
      } else {
      }
      %cst_86 = arith.constant dense<0.000000e+00> : vector<128xf32>
      %193 = vector.multi_reduction <add>, %190, %cst_86 [0] : vector<16x128xf32> to vector<128xf32>
      %194 = vector.shape_cast %193 : vector<128xf32> to vector<1x128xf32>
      %195 = arith.mulf %190, %190 : vector<16x128xf32>
      %cst_87 = arith.constant dense<0.000000e+00> : vector<128xf32>
      %196 = vector.multi_reduction <add>, %195, %cst_87 [0] : vector<16x128xf32> to vector<128xf32>
      %197 = vector.shape_cast %196 : vector<128xf32> to vector<1x128xf32>
      %c0_88 = arith.constant 0 : index
      %c0_89 = arith.constant 0 : index
      %198 = vector.load %arg17[%c0_88, %c0_89] : memref<2x128xf32, #tpu.memory_space<vmem>>, vector<2x128xf32>
      %199 = tpu.concatenate %194, %197 in 0 : vector<1x128xf32>, vector<1x128xf32> -> vector<2x128xf32>
      %200 = arith.addf %198, %199 : vector<2x128xf32>
      %c0_90 = arith.constant 0 : index
      %c0_91 = arith.constant 0 : index
      %201 = vector.load %arg17[%c0_90, %c0_91] : memref<2x128xf32, #tpu.memory_space<vmem>>, vector<2x128xf32>
      tpu.vector_store %arg17[%c0_90, %c0_91], %200 {strides = array<i32>} : memref<2x128xf32, #tpu.memory_space<vmem>>, vector<2x128xf32>,
      %202 = arith.index_cast %arg1 : i32 to index
      %c0_92 = arith.constant 0 : index
      %c0_93 = arith.constant 0 : index
      %203 = vector.load %arg11[%202, %c0_92, %c0_93] : memref<1x16x128xf32, #tpu.memory_space<vmem>>, vector<1x16x128xf32>
      %204 = vector.shape_cast %203 : vector<1x16x128xf32> to vector<16x128xf32>
      %205 = vector.shape_cast %190 : vector<16x128xf32> to vector<1x16x128xf32>
      tpu.vector_store %arg11[%202, %c0_92, %c0_93], %205 {strides = array<i32>} : memref<1x16x128xf32, #tpu.memory_space<vmem>>, vector<1x16x128xf32>,
    } else {
    }
    %c2_i32 = arith.constant 2 : i32
    %7 = arith.cmpi eq, %arg0, %c2_i32 : i32
    %8 = arith.extui %7 : i1 to i32
    %c0_i32_3 = arith.constant 0 : i32
    %9 = arith.cmpi ne, %8, %c0_i32_3 : i32
    scf.if %9 {
      %c0 = arith.constant 0 : index
      %c0_5 = arith.constant 0 : index
      %13 = vector.load %arg17[%c0, %c0_5] : memref<2x128xf32, #tpu.memory_space<vmem>>, vector<2x128xf32>
      %14 = vector.extract_strided_slice %13 {offsets = [0, 0], sizes = [1, 128], strides = [1, 1]} : vector<2x128xf32> to vector<1x128xf32>
      %cst = arith.constant 6.250000e-02 : f32
      %15 = vector.broadcast %cst : f32 to vector<1x128xf32>
      %16 = arith.mulf %14, %15 : vector<1x128xf32>
      %17 = vector.extract_strided_slice %13 {offsets = [1, 0], sizes = [1, 128], strides = [1, 1]} : vector<2x128xf32> to vector<1x128xf32>
      %cst_6 = arith.constant 6.250000e-02 : f32
      %18 = vector.broadcast %cst_6 : f32 to vector<1x128xf32>
      %19 = arith.mulf %17, %18 : vector<1x128xf32>
      %20 = arith.mulf %16, %16 : vector<1x128xf32>
      %21 = arith.subf %19, %20 : vector<1x128xf32>
      %cst_7 = arith.constant 0.000000e+00 : f32
      %22 = vector.broadcast %cst_7 : f32 to vector<1x128xf32>
      %23 = arith.maximumf %21, %22 : vector<1x128xf32>
      %c0_8 = arith.constant 0 : index
      %c0_9 = arith.constant 0 : index
      %24 = vector.load %arg6[%c0_8, %c0_9] : memref<2x128xf32, #tpu.memory_space<vmem>>, vector<1x128xf32>
      %c1 = arith.constant 1 : index
      %c0_10 = arith.constant 0 : index
      %25 = vector.load %arg6[%c1, %c0_10] : memref<2x128xf32, #tpu.memory_space<vmem>>, vector<1x128xf32>
      %cst_11 = arith.constant 4.000000e-01 : f32
      %26 = vector.broadcast %cst_11 : f32 to vector<1x128xf32>
      %27 = arith.mulf %26, %24 : vector<1x128xf32>
      %cst_12 = arith.constant 9.99999974E-6 : f32
      %28 = vector.broadcast %cst_12 : f32 to vector<1x128xf32>
      %29 = arith.addf %23, %28 : vector<1x128xf32>
      %30 = math.rsqrt %29 : vector<1x128xf32>
      %31 = arith.mulf %27, %30 : vector<1x128xf32>
      %32 = arith.mulf %16, %31 : vector<1x128xf32>
      %33 = arith.subf %25, %32 : vector<1x128xf32>
      %cst_13 = arith.constant 0.000000e+00 : f32
      %34 = vector.broadcast %cst_13 : f32 to vector<2x128xf32>
      %cst_14 = arith.constant 0.000000e+00 : f32
      %35 = vector.broadcast %cst_14 : f32 to vector<2x128xf32>
      %c0_i32_15 = arith.constant 0 : i32
      %c0_i32_16 = arith.constant 0 : i32
      %36 = tpu.memref_slice %arg11[%arg1, %c0_i32_15, %c0_i32_16] : memref<1x16x128xf32, #tpu.memory_space<vmem>> -> memref<1x16x128xf32, #tpu.memory_space<vmem>>
      %37 = tpu.memref_squeeze %36 : memref<1x16x128xf32, #tpu.memory_space<vmem>> -> memref<16x128xf32, #tpu.memory_space<vmem>>
      %c0_17 = arith.constant 0 : index
      %c0_18 = arith.constant 0 : index
      %38 = vector.load %37[%c0_17, %c0_18] : memref<16x128xf32, #tpu.memory_space<vmem>>, vector<2x128xf32>
      %cst_19 = arith.constant 2.500000e-01 : f32
      %39 = vector.broadcast %cst_19 : f32 to vector<2x128xf32>
      %40 = arith.mulf %39, %34 : vector<2x128xf32>
      %cst_20 = arith.constant 1.000000e+00 : f32
      %41 = vector.broadcast %cst_20 : f32 to vector<2x128xf32>
      %42 = arith.subf %41, %35 : vector<2x128xf32>
      %43 = arith.mulf %40, %42 : vector<2x128xf32>
      %44 = vector.broadcast %31 : vector<1x128xf32> to vector<2x128xf32>
      %45 = arith.mulf %38, %44 : vector<2x128xf32>
      %46 = vector.broadcast %33 : vector<1x128xf32> to vector<2x128xf32>
      %47 = arith.addf %45, %46 : vector<2x128xf32>
      %48 = arith.addf %43, %47 : vector<2x128xf32>
      %cst_21 = arith.constant 2.000000e-01 : f32
      %49 = vector.broadcast %cst_21 : f32 to vector<2x128xf32>
      %50 = arith.cmpf ogt, %48, %49 : vector<2x128xf32>
      %51 = arith.extui %50 : vector<2x128xi1> to vector<2x128xi32>
      %52 = arith.sitofp %51 : vector<2x128xi32> to vector<2x128xf32>
      %53 = arith.truncf %52 : vector<2x128xf32> to vector<2x128xbf16>
      %c0_22 = arith.constant 0 : index
      %c0_23 = arith.constant 0 : index
      %54 = vector.load %arg15[%c0_22, %c0_23] : memref<16x128xbf16, #tpu.memory_space<vmem>>, vector<2x128xbf16>
      tpu.vector_store %arg15[%c0_22, %c0_23], %53 {strides = array<i32>} : memref<16x128xbf16, #tpu.memory_space<vmem>>, vector<2x128xbf16>,
      %c0_i32_24 = arith.constant 0 : i32
      %c0_i32_25 = arith.constant 0 : i32
      %55 = tpu.memref_slice %arg11[%arg1, %c0_i32_24, %c0_i32_25] : memref<1x16x128xf32, #tpu.memory_space<vmem>> -> memref<1x16x128xf32, #tpu.memory_space<vmem>>
      %56 = tpu.memref_squeeze %55 : memref<1x16x128xf32, #tpu.memory_space<vmem>> -> memref<16x128xf32, #tpu.memory_space<vmem>>
      %c2 = arith.constant 2 : index
      %c0_26 = arith.constant 0 : index
      %57 = vector.load %56[%c2, %c0_26] : memref<16x128xf32, #tpu.memory_space<vmem>>, vector<2x128xf32>
      %cst_27 = arith.constant 2.500000e-01 : f32
      %58 = vector.broadcast %cst_27 : f32 to vector<2x128xf32>
      %59 = arith.mulf %58, %48 : vector<2x128xf32>
      %cst_28 = arith.constant 1.000000e+00 : f32
      %60 = vector.broadcast %cst_28 : f32 to vector<2x128xf32>
      %61 = arith.subf %60, %52 : vector<2x128xf32>
      %62 = arith.mulf %59, %61 : vector<2x128xf32>
      %63 = vector.broadcast %31 : vector<1x128xf32> to vector<2x128xf32>
      %64 = arith.mulf %57, %63 : vector<2x128xf32>
      %65 = vector.broadcast %33 : vector<1x128xf32> to vector<2x128xf32>
      %66 = arith.addf %64, %65 : vector<2x128xf32>
      %67 = arith.addf %62, %66 : vector<2x128xf32>
      %cst_29 = arith.constant 2.000000e-01 : f32
      %68 = vector.broadcast %cst_29 : f32 to vector<2x128xf32>
      %69 = arith.cmpf ogt, %67, %68 : vector<2x128xf32>
      %70 = arith.extui %69 : vector<2x128xi1> to vector<2x128xi32>
      %71 = arith.sitofp %70 : vector<2x128xi32> to vector<2x128xf32>
      %72 = arith.truncf %71 : vector<2x128xf32> to vector<2x128xbf16>
      %c2_30 = arith.constant 2 : index
      %c0_31 = arith.constant 0 : index
      %73 = vector.load %arg15[%c2_30, %c0_31] : memref<16x128xbf16, #tpu.memory_space<vmem>>, vector<2x128xbf16>
      tpu.vector_store %arg15[%c2_30, %c0_31], %72 {strides = array<i32>} : memref<16x128xbf16, #tpu.memory_space<vmem>>, vector<2x128xbf16>,
      %c0_i32_32 = arith.constant 0 : i32
      %c0_i32_33 = arith.constant 0 : i32
      %74 = tpu.memref_slice %arg11[%arg1, %c0_i32_32, %c0_i32_33] : memref<1x16x128xf32, #tpu.memory_space<vmem>> -> memref<1x16x128xf32, #tpu.memory_space<vmem>>
      %75 = tpu.memref_squeeze %74 : memref<1x16x128xf32, #tpu.memory_space<vmem>> -> memref<16x128xf32, #tpu.memory_space<vmem>>
      %c4 = arith.constant 4 : index
      %c0_34 = arith.constant 0 : index
      %76 = vector.load %75[%c4, %c0_34] : memref<16x128xf32, #tpu.memory_space<vmem>>, vector<2x128xf32>
      %cst_35 = arith.constant 2.500000e-01 : f32
      %77 = vector.broadcast %cst_35 : f32 to vector<2x128xf32>
      %78 = arith.mulf %77, %67 : vector<2x128xf32>
      %cst_36 = arith.constant 1.000000e+00 : f32
      %79 = vector.broadcast %cst_36 : f32 to vector<2x128xf32>
      %80 = arith.subf %79, %71 : vector<2x128xf32>
      %81 = arith.mulf %78, %80 : vector<2x128xf32>
      %82 = vector.broadcast %31 : vector<1x128xf32> to vector<2x128xf32>
      %83 = arith.mulf %76, %82 : vector<2x128xf32>
      %84 = vector.broadcast %33 : vector<1x128xf32> to vector<2x128xf32>
      %85 = arith.addf %83, %84 : vector<2x128xf32>
      %86 = arith.addf %81, %85 : vector<2x128xf32>
      %cst_37 = arith.constant 2.000000e-01 : f32
      %87 = vector.broadcast %cst_37 : f32 to vector<2x128xf32>
      %88 = arith.cmpf ogt, %86, %87 : vector<2x128xf32>
      %89 = arith.extui %88 : vector<2x128xi1> to vector<2x128xi32>
      %90 = arith.sitofp %89 : vector<2x128xi32> to vector<2x128xf32>
      %91 = arith.truncf %90 : vector<2x128xf32> to vector<2x128xbf16>
      %c4_38 = arith.constant 4 : index
      %c0_39 = arith.constant 0 : index
      %92 = vector.load %arg15[%c4_38, %c0_39] : memref<16x128xbf16, #tpu.memory_space<vmem>>, vector<2x128xbf16>
      tpu.vector_store %arg15[%c4_38, %c0_39], %91 {strides = array<i32>} : memref<16x128xbf16, #tpu.memory_space<vmem>>, vector<2x128xbf16>,
      %c0_i32_40 = arith.constant 0 : i32
      %c0_i32_41 = arith.constant 0 : i32
      %93 = tpu.memref_slice %arg11[%arg1, %c0_i32_40, %c0_i32_41] : memref<1x16x128xf32, #tpu.memory_space<vmem>> -> memref<1x16x128xf32, #tpu.memory_space<vmem>>
      %94 = tpu.memref_squeeze %93 : memref<1x16x128xf32, #tpu.memory_space<vmem>> -> memref<16x128xf32, #tpu.memory_space<vmem>>
      %c6 = arith.constant 6 : index
      %c0_42 = arith.constant 0 : index
      %95 = vector.load %94[%c6, %c0_42] : memref<16x128xf32, #tpu.memory_space<vmem>>, vector<2x128xf32>
      %cst_43 = arith.constant 2.500000e-01 : f32
      %96 = vector.broadcast %cst_43 : f32 to vector<2x128xf32>
      %97 = arith.mulf %96, %86 : vector<2x128xf32>
      %cst_44 = arith.constant 1.000000e+00 : f32
      %98 = vector.broadcast %cst_44 : f32 to vector<2x128xf32>
      %99 = arith.subf %98, %90 : vector<2x128xf32>
      %100 = arith.mulf %97, %99 : vector<2x128xf32>
      %101 = vector.broadcast %31 : vector<1x128xf32> to vector<2x128xf32>
      %102 = arith.mulf %95, %101 : vector<2x128xf32>
      %103 = vector.broadcast %33 : vector<1x128xf32> to vector<2x128xf32>
      %104 = arith.addf %102, %103 : vector<2x128xf32>
      %105 = arith.addf %100, %104 : vector<2x128xf32>
      %cst_45 = arith.constant 2.000000e-01 : f32
      %106 = vector.broadcast %cst_45 : f32 to vector<2x128xf32>
      %107 = arith.cmpf ogt, %105, %106 : vector<2x128xf32>
      %108 = arith.extui %107 : vector<2x128xi1> to vector<2x128xi32>
      %109 = arith.sitofp %108 : vector<2x128xi32> to vector<2x128xf32>
      %110 = arith.truncf %109 : vector<2x128xf32> to vector<2x128xbf16>
      %c6_46 = arith.constant 6 : index
      %c0_47 = arith.constant 0 : index
      %111 = vector.load %arg15[%c6_46, %c0_47] : memref<16x128xbf16, #tpu.memory_space<vmem>>, vector<2x128xbf16>
      tpu.vector_store %arg15[%c6_46, %c0_47], %110 {strides = array<i32>} : memref<16x128xbf16, #tpu.memory_space<vmem>>, vector<2x128xbf16>,
      %c0_i32_48 = arith.constant 0 : i32
      %c0_i32_49 = arith.constant 0 : i32
      %112 = tpu.memref_slice %arg11[%arg1, %c0_i32_48, %c0_i32_49] : memref<1x16x128xf32, #tpu.memory_space<vmem>> -> memref<1x16x128xf32, #tpu.memory_space<vmem>>
      %113 = tpu.memref_squeeze %112 : memref<1x16x128xf32, #tpu.memory_space<vmem>> -> memref<16x128xf32, #tpu.memory_space<vmem>>
      %c8 = arith.constant 8 : index
      %c0_50 = arith.constant 0 : index
      %114 = vector.load %113[%c8, %c0_50] : memref<16x128xf32, #tpu.memory_space<vmem>>, vector<2x128xf32>
      %cst_51 = arith.constant 2.500000e-01 : f32
      %115 = vector.broadcast %cst_51 : f32 to vector<2x128xf32>
      %116 = arith.mulf %115, %105 : vector<2x128xf32>
      %cst_52 = arith.constant 1.000000e+00 : f32
      %117 = vector.broadcast %cst_52 : f32 to vector<2x128xf32>
      %118 = arith.subf %117, %109 : vector<2x128xf32>
      %119 = arith.mulf %116, %118 : vector<2x128xf32>
      %120 = vector.broadcast %31 : vector<1x128xf32> to vector<2x128xf32>
      %121 = arith.mulf %114, %120 : vector<2x128xf32>
      %122 = vector.broadcast %33 : vector<1x128xf32> to vector<2x128xf32>
      %123 = arith.addf %121, %122 : vector<2x128xf32>
      %124 = arith.addf %119, %123 : vector<2x128xf32>
      %cst_53 = arith.constant 2.000000e-01 : f32
      %125 = vector.broadcast %cst_53 : f32 to vector<2x128xf32>
      %126 = arith.cmpf ogt, %124, %125 : vector<2x128xf32>
      %127 = arith.extui %126 : vector<2x128xi1> to vector<2x128xi32>
      %128 = arith.sitofp %127 : vector<2x128xi32> to vector<2x128xf32>
      %129 = arith.truncf %128 : vector<2x128xf32> to vector<2x128xbf16>
      %c8_54 = arith.constant 8 : index
      %c0_55 = arith.constant 0 : index
      %130 = vector.load %arg15[%c8_54, %c0_55] : memref<16x128xbf16, #tpu.memory_space<vmem>>, vector<2x128xbf16>
      tpu.vector_store %arg15[%c8_54, %c0_55], %129 {strides = array<i32>} : memref<16x128xbf16, #tpu.memory_space<vmem>>, vector<2x128xbf16>,
      %c0_i32_56 = arith.constant 0 : i32
      %c0_i32_57 = arith.constant 0 : i32
      %131 = tpu.memref_slice %arg11[%arg1, %c0_i32_56, %c0_i32_57] : memref<1x16x128xf32, #tpu.memory_space<vmem>> -> memref<1x16x128xf32, #tpu.memory_space<vmem>>
      %132 = tpu.memref_squeeze %131 : memref<1x16x128xf32, #tpu.memory_space<vmem>> -> memref<16x128xf32, #tpu.memory_space<vmem>>
      %c10 = arith.constant 10 : index
      %c0_58 = arith.constant 0 : index
      %133 = vector.load %132[%c10, %c0_58] : memref<16x128xf32, #tpu.memory_space<vmem>>, vector<2x128xf32>
      %cst_59 = arith.constant 2.500000e-01 : f32
      %134 = vector.broadcast %cst_59 : f32 to vector<2x128xf32>
      %135 = arith.mulf %134, %124 : vector<2x128xf32>
      %cst_60 = arith.constant 1.000000e+00 : f32
      %136 = vector.broadcast %cst_60 : f32 to vector<2x128xf32>
      %137 = arith.subf %136, %128 : vector<2x128xf32>
      %138 = arith.mulf %135, %137 : vector<2x128xf32>
      %139 = vector.broadcast %31 : vector<1x128xf32> to vector<2x128xf32>
      %140 = arith.mulf %133, %139 : vector<2x128xf32>
      %141 = vector.broadcast %33 : vector<1x128xf32> to vector<2x128xf32>
      %142 = arith.addf %140, %141 : vector<2x128xf32>
      %143 = arith.addf %138, %142 : vector<2x128xf32>
      %cst_61 = arith.constant 2.000000e-01 : f32
      %144 = vector.broadcast %cst_61 : f32 to vector<2x128xf32>
      %145 = arith.cmpf ogt, %143, %144 : vector<2x128xf32>
      %146 = arith.extui %145 : vector<2x128xi1> to vector<2x128xi32>
      %147 = arith.sitofp %146 : vector<2x128xi32> to vector<2x128xf32>
      %148 = arith.truncf %147 : vector<2x128xf32> to vector<2x128xbf16>
      %c10_62 = arith.constant 10 : index
      %c0_63 = arith.constant 0 : index
      %149 = vector.load %arg15[%c10_62, %c0_63] : memref<16x128xbf16, #tpu.memory_space<vmem>>, vector<2x128xbf16>
      tpu.vector_store %arg15[%c10_62, %c0_63], %148 {strides = array<i32>} : memref<16x128xbf16, #tpu.memory_space<vmem>>, vector<2x128xbf16>,
      %c0_i32_64 = arith.constant 0 : i32
      %c0_i32_65 = arith.constant 0 : i32
      %150 = tpu.memref_slice %arg11[%arg1, %c0_i32_64, %c0_i32_65] : memref<1x16x128xf32, #tpu.memory_space<vmem>> -> memref<1x16x128xf32, #tpu.memory_space<vmem>>
      %151 = tpu.memref_squeeze %150 : memref<1x16x128xf32, #tpu.memory_space<vmem>> -> memref<16x128xf32, #tpu.memory_space<vmem>>
      %c12 = arith.constant 12 : index
      %c0_66 = arith.constant 0 : index
      %152 = vector.load %151[%c12, %c0_66] : memref<16x128xf32, #tpu.memory_space<vmem>>, vector<2x128xf32>
      %cst_67 = arith.constant 2.500000e-01 : f32
      %153 = vector.broadcast %cst_67 : f32 to vector<2x128xf32>
      %154 = arith.mulf %153, %143 : vector<2x128xf32>
      %cst_68 = arith.constant 1.000000e+00 : f32
      %155 = vector.broadcast %cst_68 : f32 to vector<2x128xf32>
      %156 = arith.subf %155, %147 : vector<2x128xf32>
      %157 = arith.mulf %154, %156 : vector<2x128xf32>
      %158 = vector.broadcast %31 : vector<1x128xf32> to vector<2x128xf32>
      %159 = arith.mulf %152, %158 : vector<2x128xf32>
      %160 = vector.broadcast %33 : vector<1x128xf32> to vector<2x128xf32>
      %161 = arith.addf %159, %160 : vector<2x128xf32>
      %162 = arith.addf %157, %161 : vector<2x128xf32>
      %cst_69 = arith.constant 2.000000e-01 : f32
      %163 = vector.broadcast %cst_69 : f32 to vector<2x128xf32>
      %164 = arith.cmpf ogt, %162, %163 : vector<2x128xf32>
      %165 = arith.extui %164 : vector<2x128xi1> to vector<2x128xi32>
      %166 = arith.sitofp %165 : vector<2x128xi32> to vector<2x128xf32>
      %167 = arith.truncf %166 : vector<2x128xf32> to vector<2x128xbf16>
      %c12_70 = arith.constant 12 : index
      %c0_71 = arith.constant 0 : index
      %168 = vector.load %arg15[%c12_70, %c0_71] : memref<16x128xbf16, #tpu.memory_space<vmem>>, vector<2x128xbf16>
      tpu.vector_store %arg15[%c12_70, %c0_71], %167 {strides = array<i32>} : memref<16x128xbf16, #tpu.memory_space<vmem>>, vector<2x128xbf16>,
      %c0_i32_72 = arith.constant 0 : i32
      %c0_i32_73 = arith.constant 0 : i32
      %169 = tpu.memref_slice %arg11[%arg1, %c0_i32_72, %c0_i32_73] : memref<1x16x128xf32, #tpu.memory_space<vmem>> -> memref<1x16x128xf32, #tpu.memory_space<vmem>>
      %170 = tpu.memref_squeeze %169 : memref<1x16x128xf32, #tpu.memory_space<vmem>> -> memref<16x128xf32, #tpu.memory_space<vmem>>
      %c14 = arith.constant 14 : index
      %c0_74 = arith.constant 0 : index
      %171 = vector.load %170[%c14, %c0_74] : memref<16x128xf32, #tpu.memory_space<vmem>>, vector<2x128xf32>
      %cst_75 = arith.constant 2.500000e-01 : f32
      %172 = vector.broadcast %cst_75 : f32 to vector<2x128xf32>
      %173 = arith.mulf %172, %162 : vector<2x128xf32>
      %cst_76 = arith.constant 1.000000e+00 : f32
      %174 = vector.broadcast %cst_76 : f32 to vector<2x128xf32>
      %175 = arith.subf %174, %166 : vector<2x128xf32>
      %176 = arith.mulf %173, %175 : vector<2x128xf32>
      %177 = vector.broadcast %31 : vector<1x128xf32> to vector<2x128xf32>
      %178 = arith.mulf %171, %177 : vector<2x128xf32>
      %179 = vector.broadcast %33 : vector<1x128xf32> to vector<2x128xf32>
      %180 = arith.addf %178, %179 : vector<2x128xf32>
      %181 = arith.addf %176, %180 : vector<2x128xf32>
      %cst_77 = arith.constant 2.000000e-01 : f32
      %182 = vector.broadcast %cst_77 : f32 to vector<2x128xf32>
      %183 = arith.cmpf ogt, %181, %182 : vector<2x128xf32>
      %184 = arith.extui %183 : vector<2x128xi1> to vector<2x128xi32>
      %185 = arith.sitofp %184 : vector<2x128xi32> to vector<2x128xf32>
      %186 = arith.truncf %185 : vector<2x128xf32> to vector<2x128xbf16>
      %c14_78 = arith.constant 14 : index
      %c0_79 = arith.constant 0 : index
      %187 = vector.load %arg15[%c14_78, %c0_79] : memref<16x128xbf16, #tpu.memory_space<vmem>>, vector<2x128xbf16>
      tpu.vector_store %arg15[%c14_78, %c0_79], %186 {strides = array<i32>} : memref<16x128xbf16, #tpu.memory_space<vmem>>, vector<2x128xbf16>,
      %c0_80 = arith.constant 0 : index
      %c0_81 = arith.constant 0 : index
      %188 = vector.load %arg15[%c0_80, %c0_81] : memref<16x128xbf16, #tpu.memory_space<vmem>>, vector<16x128xbf16>
      %c0_82 = arith.constant 0 : index
      %c0_83 = arith.constant 0 : index
      %189 = vector.load %arg7[%c0_82, %c0_83] : memref<128x384xbf16, #tpu.memory_space<vmem>>, vector<128x384xbf16>
      %cst_84 = arith.constant dense<0.000000e+00> : vector<16x384xf32>
      %190 = tpu.matmul %188, %189, %cst_84 {dimension_numbers = #tpu.dot_dimension_numbers<[1], [0], [0], [1], [0, 0, 1, 1], [], []>} : vector<16x128xbf16>, vector<128x384xbf16>, vector<16x384xf32> -> vector<16x384xf32>
      %191 = arith.extui %0 : i1 to i32
      %c0_i32_85 = arith.constant 0 : i32
      %192 = arith.cmpi ne, %191, %c0_i32_85 : i32
      scf.if %192 {
        %cst_94 = arith.constant 0.000000e+00 : f32
        %206 = vector.broadcast %cst_94 : f32 to vector<2x384xf32>
        %c0_95 = arith.constant 0 : index
        %c0_96 = arith.constant 0 : index
        %207 = vector.load %arg18[%c0_95, %c0_96] : memref<2x384xf32, #tpu.memory_space<vmem>>, vector<2x384xf32>
        tpu.vector_store %arg18[%c0_95, %c0_96], %206 {strides = array<i32>} : memref<2x384xf32, #tpu.memory_space<vmem>>, vector<2x384xf32>,
      } else {
      }
      %cst_86 = arith.constant dense<0.000000e+00> : vector<384xf32>
      %193 = vector.multi_reduction <add>, %190, %cst_86 [0] : vector<16x384xf32> to vector<384xf32>
      %194 = vector.shape_cast %193 : vector<384xf32> to vector<1x384xf32>
      %195 = arith.mulf %190, %190 : vector<16x384xf32>
      %cst_87 = arith.constant dense<0.000000e+00> : vector<384xf32>
      %196 = vector.multi_reduction <add>, %195, %cst_87 [0] : vector<16x384xf32> to vector<384xf32>
      %197 = vector.shape_cast %196 : vector<384xf32> to vector<1x384xf32>
      %c0_88 = arith.constant 0 : index
      %c0_89 = arith.constant 0 : index
      %198 = vector.load %arg18[%c0_88, %c0_89] : memref<2x384xf32, #tpu.memory_space<vmem>>, vector<2x384xf32>
      %199 = tpu.concatenate %194, %197 in 0 : vector<1x384xf32>, vector<1x384xf32> -> vector<2x384xf32>
      %200 = arith.addf %198, %199 : vector<2x384xf32>
      %c0_90 = arith.constant 0 : index
      %c0_91 = arith.constant 0 : index
      %201 = vector.load %arg18[%c0_90, %c0_91] : memref<2x384xf32, #tpu.memory_space<vmem>>, vector<2x384xf32>
      tpu.vector_store %arg18[%c0_90, %c0_91], %200 {strides = array<i32>} : memref<2x384xf32, #tpu.memory_space<vmem>>, vector<2x384xf32>,
      %202 = arith.index_cast %arg1 : i32 to index
      %c0_92 = arith.constant 0 : index
      %c0_93 = arith.constant 0 : index
      %203 = vector.load %arg12[%202, %c0_92, %c0_93] : memref<1x16x384xf32, #tpu.memory_space<vmem>>, vector<1x16x384xf32>
      %204 = vector.shape_cast %203 : vector<1x16x384xf32> to vector<16x384xf32>
      %205 = vector.shape_cast %190 : vector<16x384xf32> to vector<1x16x384xf32>
      tpu.vector_store %arg12[%202, %c0_92, %c0_93], %205 {strides = array<i32>} : memref<1x16x384xf32, #tpu.memory_space<vmem>>, vector<1x16x384xf32>,
    } else {
    }
    %c3_i32 = arith.constant 3 : i32
    %10 = arith.cmpi eq, %arg0, %c3_i32 : i32
    %11 = arith.extui %10 : i1 to i32
    %c0_i32_4 = arith.constant 0 : i32
    %12 = arith.cmpi ne, %11, %c0_i32_4 : i32
    scf.if %12 {
      %c0 = arith.constant 0 : index
      %c0_5 = arith.constant 0 : index
      %13 = vector.load %arg18[%c0, %c0_5] : memref<2x384xf32, #tpu.memory_space<vmem>>, vector<2x384xf32>
      %14 = vector.extract_strided_slice %13 {offsets = [0, 0], sizes = [1, 384], strides = [1, 1]} : vector<2x384xf32> to vector<1x384xf32>
      %cst = arith.constant 6.250000e-02 : f32
      %15 = vector.broadcast %cst : f32 to vector<1x384xf32>
      %16 = arith.mulf %14, %15 : vector<1x384xf32>
      %17 = vector.extract_strided_slice %13 {offsets = [1, 0], sizes = [1, 384], strides = [1, 1]} : vector<2x384xf32> to vector<1x384xf32>
      %cst_6 = arith.constant 6.250000e-02 : f32
      %18 = vector.broadcast %cst_6 : f32 to vector<1x384xf32>
      %19 = arith.mulf %17, %18 : vector<1x384xf32>
      %20 = arith.mulf %16, %16 : vector<1x384xf32>
      %21 = arith.subf %19, %20 : vector<1x384xf32>
      %cst_7 = arith.constant 0.000000e+00 : f32
      %22 = vector.broadcast %cst_7 : f32 to vector<1x384xf32>
      %23 = arith.maximumf %21, %22 : vector<1x384xf32>
      %c0_8 = arith.constant 0 : index
      %c0_9 = arith.constant 0 : index
      %24 = vector.load %arg8[%c0_8, %c0_9] : memref<2x384xf32, #tpu.memory_space<vmem>>, vector<1x384xf32>
      %c1 = arith.constant 1 : index
      %c0_10 = arith.constant 0 : index
      %25 = vector.load %arg8[%c1, %c0_10] : memref<2x384xf32, #tpu.memory_space<vmem>>, vector<1x384xf32>
      %cst_11 = arith.constant 4.000000e-01 : f32
      %26 = vector.broadcast %cst_11 : f32 to vector<1x384xf32>
      %27 = arith.mulf %26, %24 : vector<1x384xf32>
      %cst_12 = arith.constant 9.99999974E-6 : f32
      %28 = vector.broadcast %cst_12 : f32 to vector<1x384xf32>
      %29 = arith.addf %23, %28 : vector<1x384xf32>
      %30 = math.rsqrt %29 : vector<1x384xf32>
      %31 = arith.mulf %27, %30 : vector<1x384xf32>
      %32 = arith.mulf %16, %31 : vector<1x384xf32>
      %33 = arith.subf %25, %32 : vector<1x384xf32>
      %cst_13 = arith.constant 0.000000e+00 : f32
      %34 = vector.broadcast %cst_13 : f32 to vector<2x384xf32>
      %cst_14 = arith.constant 0.000000e+00 : f32
      %35 = vector.broadcast %cst_14 : f32 to vector<2x384xf32>
      %c0_i32_15 = arith.constant 0 : i32
      %c0_i32_16 = arith.constant 0 : i32
      %36 = tpu.memref_slice %arg12[%arg1, %c0_i32_15, %c0_i32_16] : memref<1x16x384xf32, #tpu.memory_space<vmem>> -> memref<1x16x384xf32, #tpu.memory_space<vmem>>
      %37 = tpu.memref_squeeze %36 : memref<1x16x384xf32, #tpu.memory_space<vmem>> -> memref<16x384xf32, #tpu.memory_space<vmem>>
      %c0_17 = arith.constant 0 : index
      %c0_18 = arith.constant 0 : index
      %38 = vector.load %37[%c0_17, %c0_18] : memref<16x384xf32, #tpu.memory_space<vmem>>, vector<2x384xf32>
      %cst_19 = arith.constant 2.500000e-01 : f32
      %39 = vector.broadcast %cst_19 : f32 to vector<2x384xf32>
      %40 = arith.mulf %39, %34 : vector<2x384xf32>
      %cst_20 = arith.constant 1.000000e+00 : f32
      %41 = vector.broadcast %cst_20 : f32 to vector<2x384xf32>
      %42 = arith.subf %41, %35 : vector<2x384xf32>
      %43 = arith.mulf %40, %42 : vector<2x384xf32>
      %44 = vector.broadcast %31 : vector<1x384xf32> to vector<2x384xf32>
      %45 = arith.mulf %38, %44 : vector<2x384xf32>
      %46 = vector.broadcast %33 : vector<1x384xf32> to vector<2x384xf32>
      %47 = arith.addf %45, %46 : vector<2x384xf32>
      %48 = arith.addf %43, %47 : vector<2x384xf32>
      %cst_21 = arith.constant 2.000000e-01 : f32
      %49 = vector.broadcast %cst_21 : f32 to vector<2x384xf32>
      %50 = arith.cmpf ogt, %48, %49 : vector<2x384xf32>
      %51 = arith.extui %50 : vector<2x384xi1> to vector<2x384xi32>
      %52 = arith.sitofp %51 : vector<2x384xi32> to vector<2x384xf32>
      %c0_22 = arith.constant 0 : index
      %c0_23 = arith.constant 0 : index
      %c0_24 = arith.constant 0 : index
      %53 = vector.load %arg9[%c0_22, %c0_23, %c0_24] : memref<8x2x384xf32, #tpu.memory_space<vmem>>, vector<1x2x384xf32>
      %54 = vector.shape_cast %53 : vector<1x2x384xf32> to vector<2x384xf32>
      %55 = vector.shape_cast %52 : vector<2x384xf32> to vector<1x2x384xf32>
      tpu.vector_store %arg9[%c0_22, %c0_23, %c0_24], %55 {strides = array<i32>} : memref<8x2x384xf32, #tpu.memory_space<vmem>>, vector<1x2x384xf32>,
      %c0_i32_25 = arith.constant 0 : i32
      %c0_i32_26 = arith.constant 0 : i32
      %56 = tpu.memref_slice %arg12[%arg1, %c0_i32_25, %c0_i32_26] : memref<1x16x384xf32, #tpu.memory_space<vmem>> -> memref<1x16x384xf32, #tpu.memory_space<vmem>>
      %57 = tpu.memref_squeeze %56 : memref<1x16x384xf32, #tpu.memory_space<vmem>> -> memref<16x384xf32, #tpu.memory_space<vmem>>
      %c2 = arith.constant 2 : index
      %c0_27 = arith.constant 0 : index
      %58 = vector.load %57[%c2, %c0_27] : memref<16x384xf32, #tpu.memory_space<vmem>>, vector<2x384xf32>
      %cst_28 = arith.constant 2.500000e-01 : f32
      %59 = vector.broadcast %cst_28 : f32 to vector<2x384xf32>
      %60 = arith.mulf %59, %48 : vector<2x384xf32>
      %cst_29 = arith.constant 1.000000e+00 : f32
      %61 = vector.broadcast %cst_29 : f32 to vector<2x384xf32>
      %62 = arith.subf %61, %52 : vector<2x384xf32>
      %63 = arith.mulf %60, %62 : vector<2x384xf32>
      %64 = vector.broadcast %31 : vector<1x384xf32> to vector<2x384xf32>
      %65 = arith.mulf %58, %64 : vector<2x384xf32>
      %66 = vector.broadcast %33 : vector<1x384xf32> to vector<2x384xf32>
      %67 = arith.addf %65, %66 : vector<2x384xf32>
      %68 = arith.addf %63, %67 : vector<2x384xf32>
      %cst_30 = arith.constant 2.000000e-01 : f32
      %69 = vector.broadcast %cst_30 : f32 to vector<2x384xf32>
      %70 = arith.cmpf ogt, %68, %69 : vector<2x384xf32>
      %71 = arith.extui %70 : vector<2x384xi1> to vector<2x384xi32>
      %72 = arith.sitofp %71 : vector<2x384xi32> to vector<2x384xf32>
      %c1_31 = arith.constant 1 : index
      %c0_32 = arith.constant 0 : index
      %c0_33 = arith.constant 0 : index
      %73 = vector.load %arg9[%c1_31, %c0_32, %c0_33] : memref<8x2x384xf32, #tpu.memory_space<vmem>>, vector<1x2x384xf32>
      %74 = vector.shape_cast %73 : vector<1x2x384xf32> to vector<2x384xf32>
      %75 = vector.shape_cast %72 : vector<2x384xf32> to vector<1x2x384xf32>
      tpu.vector_store %arg9[%c1_31, %c0_32, %c0_33], %75 {strides = array<i32>} : memref<8x2x384xf32, #tpu.memory_space<vmem>>, vector<1x2x384xf32>,
      %c0_i32_34 = arith.constant 0 : i32
      %c0_i32_35 = arith.constant 0 : i32
      %76 = tpu.memref_slice %arg12[%arg1, %c0_i32_34, %c0_i32_35] : memref<1x16x384xf32, #tpu.memory_space<vmem>> -> memref<1x16x384xf32, #tpu.memory_space<vmem>>
      %77 = tpu.memref_squeeze %76 : memref<1x16x384xf32, #tpu.memory_space<vmem>> -> memref<16x384xf32, #tpu.memory_space<vmem>>
      %c4 = arith.constant 4 : index
      %c0_36 = arith.constant 0 : index
      %78 = vector.load %77[%c4, %c0_36] : memref<16x384xf32, #tpu.memory_space<vmem>>, vector<2x384xf32>
      %cst_37 = arith.constant 2.500000e-01 : f32
      %79 = vector.broadcast %cst_37 : f32 to vector<2x384xf32>
      %80 = arith.mulf %79, %68 : vector<2x384xf32>
      %cst_38 = arith.constant 1.000000e+00 : f32
      %81 = vector.broadcast %cst_38 : f32 to vector<2x384xf32>
      %82 = arith.subf %81, %72 : vector<2x384xf32>
      %83 = arith.mulf %80, %82 : vector<2x384xf32>
      %84 = vector.broadcast %31 : vector<1x384xf32> to vector<2x384xf32>
      %85 = arith.mulf %78, %84 : vector<2x384xf32>
      %86 = vector.broadcast %33 : vector<1x384xf32> to vector<2x384xf32>
      %87 = arith.addf %85, %86 : vector<2x384xf32>
      %88 = arith.addf %83, %87 : vector<2x384xf32>
      %cst_39 = arith.constant 2.000000e-01 : f32
      %89 = vector.broadcast %cst_39 : f32 to vector<2x384xf32>
      %90 = arith.cmpf ogt, %88, %89 : vector<2x384xf32>
      %91 = arith.extui %90 : vector<2x384xi1> to vector<2x384xi32>
      %92 = arith.sitofp %91 : vector<2x384xi32> to vector<2x384xf32>
      %c2_40 = arith.constant 2 : index
      %c0_41 = arith.constant 0 : index
      %c0_42 = arith.constant 0 : index
      %93 = vector.load %arg9[%c2_40, %c0_41, %c0_42] : memref<8x2x384xf32, #tpu.memory_space<vmem>>, vector<1x2x384xf32>
      %94 = vector.shape_cast %93 : vector<1x2x384xf32> to vector<2x384xf32>
      %95 = vector.shape_cast %92 : vector<2x384xf32> to vector<1x2x384xf32>
      tpu.vector_store %arg9[%c2_40, %c0_41, %c0_42], %95 {strides = array<i32>} : memref<8x2x384xf32, #tpu.memory_space<vmem>>, vector<1x2x384xf32>,
      %c0_i32_43 = arith.constant 0 : i32
      %c0_i32_44 = arith.constant 0 : i32
      %96 = tpu.memref_slice %arg12[%arg1, %c0_i32_43, %c0_i32_44] : memref<1x16x384xf32, #tpu.memory_space<vmem>> -> memref<1x16x384xf32, #tpu.memory_space<vmem>>
      %97 = tpu.memref_squeeze %96 : memref<1x16x384xf32, #tpu.memory_space<vmem>> -> memref<16x384xf32, #tpu.memory_space<vmem>>
      %c6 = arith.constant 6 : index
      %c0_45 = arith.constant 0 : index
      %98 = vector.load %97[%c6, %c0_45] : memref<16x384xf32, #tpu.memory_space<vmem>>, vector<2x384xf32>
      %cst_46 = arith.constant 2.500000e-01 : f32
      %99 = vector.broadcast %cst_46 : f32 to vector<2x384xf32>
      %100 = arith.mulf %99, %88 : vector<2x384xf32>
      %cst_47 = arith.constant 1.000000e+00 : f32
      %101 = vector.broadcast %cst_47 : f32 to vector<2x384xf32>
      %102 = arith.subf %101, %92 : vector<2x384xf32>
      %103 = arith.mulf %100, %102 : vector<2x384xf32>
      %104 = vector.broadcast %31 : vector<1x384xf32> to vector<2x384xf32>
      %105 = arith.mulf %98, %104 : vector<2x384xf32>
      %106 = vector.broadcast %33 : vector<1x384xf32> to vector<2x384xf32>
      %107 = arith.addf %105, %106 : vector<2x384xf32>
      %108 = arith.addf %103, %107 : vector<2x384xf32>
      %cst_48 = arith.constant 2.000000e-01 : f32
      %109 = vector.broadcast %cst_48 : f32 to vector<2x384xf32>
      %110 = arith.cmpf ogt, %108, %109 : vector<2x384xf32>
      %111 = arith.extui %110 : vector<2x384xi1> to vector<2x384xi32>
      %112 = arith.sitofp %111 : vector<2x384xi32> to vector<2x384xf32>
      %c3 = arith.constant 3 : index
      %c0_49 = arith.constant 0 : index
      %c0_50 = arith.constant 0 : index
      %113 = vector.load %arg9[%c3, %c0_49, %c0_50] : memref<8x2x384xf32, #tpu.memory_space<vmem>>, vector<1x2x384xf32>
      %114 = vector.shape_cast %113 : vector<1x2x384xf32> to vector<2x384xf32>
      %115 = vector.shape_cast %112 : vector<2x384xf32> to vector<1x2x384xf32>
      tpu.vector_store %arg9[%c3, %c0_49, %c0_50], %115 {strides = array<i32>} : memref<8x2x384xf32, #tpu.memory_space<vmem>>, vector<1x2x384xf32>,
      %c0_i32_51 = arith.constant 0 : i32
      %c0_i32_52 = arith.constant 0 : i32
      %116 = tpu.memref_slice %arg12[%arg1, %c0_i32_51, %c0_i32_52] : memref<1x16x384xf32, #tpu.memory_space<vmem>> -> memref<1x16x384xf32, #tpu.memory_space<vmem>>
      %117 = tpu.memref_squeeze %116 : memref<1x16x384xf32, #tpu.memory_space<vmem>> -> memref<16x384xf32, #tpu.memory_space<vmem>>
      %c8 = arith.constant 8 : index
      %c0_53 = arith.constant 0 : index
      %118 = vector.load %117[%c8, %c0_53] : memref<16x384xf32, #tpu.memory_space<vmem>>, vector<2x384xf32>
      %cst_54 = arith.constant 2.500000e-01 : f32
      %119 = vector.broadcast %cst_54 : f32 to vector<2x384xf32>
      %120 = arith.mulf %119, %108 : vector<2x384xf32>
      %cst_55 = arith.constant 1.000000e+00 : f32
      %121 = vector.broadcast %cst_55 : f32 to vector<2x384xf32>
      %122 = arith.subf %121, %112 : vector<2x384xf32>
      %123 = arith.mulf %120, %122 : vector<2x384xf32>
      %124 = vector.broadcast %31 : vector<1x384xf32> to vector<2x384xf32>
      %125 = arith.mulf %118, %124 : vector<2x384xf32>
      %126 = vector.broadcast %33 : vector<1x384xf32> to vector<2x384xf32>
      %127 = arith.addf %125, %126 : vector<2x384xf32>
      %128 = arith.addf %123, %127 : vector<2x384xf32>
      %cst_56 = arith.constant 2.000000e-01 : f32
      %129 = vector.broadcast %cst_56 : f32 to vector<2x384xf32>
      %130 = arith.cmpf ogt, %128, %129 : vector<2x384xf32>
      %131 = arith.extui %130 : vector<2x384xi1> to vector<2x384xi32>
      %132 = arith.sitofp %131 : vector<2x384xi32> to vector<2x384xf32>
      %c4_57 = arith.constant 4 : index
      %c0_58 = arith.constant 0 : index
      %c0_59 = arith.constant 0 : index
      %133 = vector.load %arg9[%c4_57, %c0_58, %c0_59] : memref<8x2x384xf32, #tpu.memory_space<vmem>>, vector<1x2x384xf32>
      %134 = vector.shape_cast %133 : vector<1x2x384xf32> to vector<2x384xf32>
      %135 = vector.shape_cast %132 : vector<2x384xf32> to vector<1x2x384xf32>
      tpu.vector_store %arg9[%c4_57, %c0_58, %c0_59], %135 {strides = array<i32>} : memref<8x2x384xf32, #tpu.memory_space<vmem>>, vector<1x2x384xf32>,
      %c0_i32_60 = arith.constant 0 : i32
      %c0_i32_61 = arith.constant 0 : i32
      %136 = tpu.memref_slice %arg12[%arg1, %c0_i32_60, %c0_i32_61] : memref<1x16x384xf32, #tpu.memory_space<vmem>> -> memref<1x16x384xf32, #tpu.memory_space<vmem>>
      %137 = tpu.memref_squeeze %136 : memref<1x16x384xf32, #tpu.memory_space<vmem>> -> memref<16x384xf32, #tpu.memory_space<vmem>>
      %c10 = arith.constant 10 : index
      %c0_62 = arith.constant 0 : index
      %138 = vector.load %137[%c10, %c0_62] : memref<16x384xf32, #tpu.memory_space<vmem>>, vector<2x384xf32>
      %cst_63 = arith.constant 2.500000e-01 : f32
      %139 = vector.broadcast %cst_63 : f32 to vector<2x384xf32>
      %140 = arith.mulf %139, %128 : vector<2x384xf32>
      %cst_64 = arith.constant 1.000000e+00 : f32
      %141 = vector.broadcast %cst_64 : f32 to vector<2x384xf32>
      %142 = arith.subf %141, %132 : vector<2x384xf32>
      %143 = arith.mulf %140, %142 : vector<2x384xf32>
      %144 = vector.broadcast %31 : vector<1x384xf32> to vector<2x384xf32>
      %145 = arith.mulf %138, %144 : vector<2x384xf32>
      %146 = vector.broadcast %33 : vector<1x384xf32> to vector<2x384xf32>
      %147 = arith.addf %145, %146 : vector<2x384xf32>
      %148 = arith.addf %143, %147 : vector<2x384xf32>
      %cst_65 = arith.constant 2.000000e-01 : f32
      %149 = vector.broadcast %cst_65 : f32 to vector<2x384xf32>
      %150 = arith.cmpf ogt, %148, %149 : vector<2x384xf32>
      %151 = arith.extui %150 : vector<2x384xi1> to vector<2x384xi32>
      %152 = arith.sitofp %151 : vector<2x384xi32> to vector<2x384xf32>
      %c5 = arith.constant 5 : index
      %c0_66 = arith.constant 0 : index
      %c0_67 = arith.constant 0 : index
      %153 = vector.load %arg9[%c5, %c0_66, %c0_67] : memref<8x2x384xf32, #tpu.memory_space<vmem>>, vector<1x2x384xf32>
      %154 = vector.shape_cast %153 : vector<1x2x384xf32> to vector<2x384xf32>
      %155 = vector.shape_cast %152 : vector<2x384xf32> to vector<1x2x384xf32>
      tpu.vector_store %arg9[%c5, %c0_66, %c0_67], %155 {strides = array<i32>} : memref<8x2x384xf32, #tpu.memory_space<vmem>>, vector<1x2x384xf32>,
      %c0_i32_68 = arith.constant 0 : i32
      %c0_i32_69 = arith.constant 0 : i32
      %156 = tpu.memref_slice %arg12[%arg1, %c0_i32_68, %c0_i32_69] : memref<1x16x384xf32, #tpu.memory_space<vmem>> -> memref<1x16x384xf32, #tpu.memory_space<vmem>>
      %157 = tpu.memref_squeeze %156 : memref<1x16x384xf32, #tpu.memory_space<vmem>> -> memref<16x384xf32, #tpu.memory_space<vmem>>
      %c12 = arith.constant 12 : index
      %c0_70 = arith.constant 0 : index
      %158 = vector.load %157[%c12, %c0_70] : memref<16x384xf32, #tpu.memory_space<vmem>>, vector<2x384xf32>
      %cst_71 = arith.constant 2.500000e-01 : f32
      %159 = vector.broadcast %cst_71 : f32 to vector<2x384xf32>
      %160 = arith.mulf %159, %148 : vector<2x384xf32>
      %cst_72 = arith.constant 1.000000e+00 : f32
      %161 = vector.broadcast %cst_72 : f32 to vector<2x384xf32>
      %162 = arith.subf %161, %152 : vector<2x384xf32>
      %163 = arith.mulf %160, %162 : vector<2x384xf32>
      %164 = vector.broadcast %31 : vector<1x384xf32> to vector<2x384xf32>
      %165 = arith.mulf %158, %164 : vector<2x384xf32>
      %166 = vector.broadcast %33 : vector<1x384xf32> to vector<2x384xf32>
      %167 = arith.addf %165, %166 : vector<2x384xf32>
      %168 = arith.addf %163, %167 : vector<2x384xf32>
      %cst_73 = arith.constant 2.000000e-01 : f32
      %169 = vector.broadcast %cst_73 : f32 to vector<2x384xf32>
      %170 = arith.cmpf ogt, %168, %169 : vector<2x384xf32>
      %171 = arith.extui %170 : vector<2x384xi1> to vector<2x384xi32>
      %172 = arith.sitofp %171 : vector<2x384xi32> to vector<2x384xf32>
      %c6_74 = arith.constant 6 : index
      %c0_75 = arith.constant 0 : index
      %c0_76 = arith.constant 0 : index
      %173 = vector.load %arg9[%c6_74, %c0_75, %c0_76] : memref<8x2x384xf32, #tpu.memory_space<vmem>>, vector<1x2x384xf32>
      %174 = vector.shape_cast %173 : vector<1x2x384xf32> to vector<2x384xf32>
      %175 = vector.shape_cast %172 : vector<2x384xf32> to vector<1x2x384xf32>
      tpu.vector_store %arg9[%c6_74, %c0_75, %c0_76], %175 {strides = array<i32>} : memref<8x2x384xf32, #tpu.memory_space<vmem>>, vector<1x2x384xf32>,
      %c0_i32_77 = arith.constant 0 : i32
      %c0_i32_78 = arith.constant 0 : i32
      %176 = tpu.memref_slice %arg12[%arg1, %c0_i32_77, %c0_i32_78] : memref<1x16x384xf32, #tpu.memory_space<vmem>> -> memref<1x16x384xf32, #tpu.memory_space<vmem>>
      %177 = tpu.memref_squeeze %176 : memref<1x16x384xf32, #tpu.memory_space<vmem>> -> memref<16x384xf32, #tpu.memory_space<vmem>>
      %c14 = arith.constant 14 : index
      %c0_79 = arith.constant 0 : index
      %178 = vector.load %177[%c14, %c0_79] : memref<16x384xf32, #tpu.memory_space<vmem>>, vector<2x384xf32>
      %cst_80 = arith.constant 2.500000e-01 : f32
      %179 = vector.broadcast %cst_80 : f32 to vector<2x384xf32>
      %180 = arith.mulf %179, %168 : vector<2x384xf32>
      %cst_81 = arith.constant 1.000000e+00 : f32
      %181 = vector.broadcast %cst_81 : f32 to vector<2x384xf32>
      %182 = arith.subf %181, %172 : vector<2x384xf32>
      %183 = arith.mulf %180, %182 : vector<2x384xf32>
      %184 = vector.broadcast %31 : vector<1x384xf32> to vector<2x384xf32>
      %185 = arith.mulf %178, %184 : vector<2x384xf32>
      %186 = vector.broadcast %33 : vector<1x384xf32> to vector<2x384xf32>
      %187 = arith.addf %185, %186 : vector<2x384xf32>
      %188 = arith.addf %183, %187 : vector<2x384xf32>
      %cst_82 = arith.constant 2.000000e-01 : f32
      %189 = vector.broadcast %cst_82 : f32 to vector<2x384xf32>
      %190 = arith.cmpf ogt, %188, %189 : vector<2x384xf32>
      %191 = arith.extui %190 : vector<2x384xi1> to vector<2x384xi32>
      %192 = arith.sitofp %191 : vector<2x384xi32> to vector<2x384xf32>
      %c7 = arith.constant 7 : index
      %c0_83 = arith.constant 0 : index
      %c0_84 = arith.constant 0 : index
      %193 = vector.load %arg9[%c7, %c0_83, %c0_84] : memref<8x2x384xf32, #tpu.memory_space<vmem>>, vector<1x2x384xf32>
      %194 = vector.shape_cast %193 : vector<1x2x384xf32> to vector<2x384xf32>
      %195 = vector.shape_cast %192 : vector<2x384xf32> to vector<1x2x384xf32>
      tpu.vector_store %arg9[%c7, %c0_83, %c0_84], %195 {strides = array<i32>} : memref<8x2x384xf32, #tpu.memory_space<vmem>>, vector<1x2x384xf32>,
    } else {
    }
    return
  }
  func.func @transform_0(%arg0: i32, %arg1: i32) -> (i32, i32, i32) {
    %c0_i32 = arith.constant 0 : i32
    %0 = arith.cmpi eq, %arg0, %c0_i32 : i32
    %c0_i32_0 = arith.constant 0 : i32
    %1 = arith.select %0, %arg1, %c0_i32_0 : i32
    %c0_i32_1 = arith.constant 0 : i32
    %c0_i32_2 = arith.constant 0 : i32
    %c0_i32_3 = arith.constant 0 : i32
    return %c0_i32_1, %1, %c0_i32_2 : i32, i32, i32
  }
  func.func @transform_1(%arg0: i32, %arg1: i32) -> (i32, i32) {
    %c0_i32 = arith.constant 0 : i32
    %c0_i32_0 = arith.constant 0 : i32
    %c0_i32_1 = arith.constant 0 : i32
    return %c0_i32, %c0_i32_0 : i32, i32
  }
  func.func @transform_2(%arg0: i32, %arg1: i32) -> (i32, i32) {
    %c0_i32 = arith.constant 0 : i32
    %c0_i32_0 = arith.constant 0 : i32
    %c0_i32_1 = arith.constant 0 : i32
    return %c0_i32, %c0_i32_0 : i32, i32
  }
  func.func @transform_3(%arg0: i32, %arg1: i32) -> (i32, i32) {
    %c0_i32 = arith.constant 0 : i32
    %c0_i32_0 = arith.constant 0 : i32
    %c0_i32_1 = arith.constant 0 : i32
    return %c0_i32, %c0_i32_0 : i32, i32
  }
  func.func @transform_4(%arg0: i32, %arg1: i32) -> (i32, i32) {
    %c0_i32 = arith.constant 0 : i32
    %c0_i32_0 = arith.constant 0 : i32
    %c0_i32_1 = arith.constant 0 : i32
    return %c0_i32, %c0_i32_0 : i32, i32
  }
  func.func @transform_5(%arg0: i32, %arg1: i32) -> (i32, i32) {
    %c0_i32 = arith.constant 0 : i32
    %c0_i32_0 = arith.constant 0 : i32
    %c0_i32_1 = arith.constant 0 : i32
    return %c0_i32, %c0_i32_0 : i32, i32
  }
  func.func @transform_6(%arg0: i32, %arg1: i32) -> (i32, i32) {
    %c0_i32 = arith.constant 0 : i32
    %c0_i32_0 = arith.constant 0 : i32
    %c0_i32_1 = arith.constant 0 : i32
    return %c0_i32, %c0_i32_0 : i32, i32
  }
  func.func @transform_7(%arg0: i32, %arg1: i32) -> (i32, i32, i32) {
    %c3_i32 = arith.constant 3 : i32
    %0 = arith.cmpi eq, %arg0, %c3_i32 : i32
    %c0_i32 = arith.constant 0 : i32
    %1 = arith.select %0, %arg1, %c0_i32 : i32
    %c0_i32_0 = arith.constant 0 : i32
    %c0_i32_1 = arith.constant 0 : i32
    %c0_i32_2 = arith.constant 0 : i32
    return %c0_i32_0, %1, %c0_i32_1 : i32, i32, i32
  }
}

</mosaic_0001>

<llo_original>
// kernel: prior_bernoulli_stbp_forward.1
$region0: #{prior_bernoulli_stbp_forward.1}
  #allocation0 [shape = 'u32[]', space=smem, size = 0x4, offset = 0x4, fixed_abs, tag = 'smem constant byte address 0x4 - core index']
  #allocation1 [shape = 'u32[144,128]{1,0:T(1,128)}', space=vmem, size = 0x12000, scoped, tag = 'internal scratch']
  #allocation2 [shape = 'f32[1,16,128]{2,1,0:T(8,128)}', space=vmem, size = 0x2000, scoped, tag = 'scratch operand']
  #allocation3 [shape = 'f32[1,16,128]{2,1,0:T(8,128)}', space=vmem, size = 0x2000, scoped, tag = 'scratch operand']
  #allocation4 [shape = 'f32[1,16,384]{2,1,0:T(8,128)}', space=vmem, size = 0x6000, scoped, tag = 'scratch operand']
  #allocation5 [shape = 'bf16[16,128]{1,0:T(8,128)(2,1)}', space=vmem, size = 0x1000, scoped, tag = 'scratch operand']
  #allocation6 [shape = 'bf16[16,128]{1,0:T(8,128)(2,1)}', space=vmem, size = 0x1000, scoped, tag = 'scratch operand']
  #allocation7 [shape = 'bf16[16,128]{1,0:T(8,128)(2,1)}', space=vmem, size = 0x1000, scoped, tag = 'scratch operand']
  #allocation8 [shape = 'f32[2,128]{1,0:T(2,128)}', space=vmem, size = 0x400, scoped, tag = 'scratch operand']
  #allocation9 [shape = 'f32[2,128]{1,0:T(2,128)}', space=vmem, size = 0x400, scoped, tag = 'scratch operand']
  #allocation10 [shape = 'f32[2,384]{1,0:T(2,128)}', space=vmem, size = 0xc00, scoped, tag = 'scratch operand']
  %s0 = inlined_call_operand.vmem [shape: bf16[8,2,128], index: 0, kind: input, shape index: {}]
  %s1 = inlined_call_operand.vmem [shape: bf16[128,128], index: 1, kind: input, shape index: {}]
  %s2 = inlined_call_operand.vmem [shape: f32[2,128], index: 2, kind: input, shape index: {}]
  %s3 = inlined_call_operand.vmem [shape: bf16[128,128], index: 3, kind: input, shape index: {}]
  %s4 = inlined_call_operand.vmem [shape: f32[2,128], index: 4, kind: input, shape index: {}]
  %s5 = inlined_call_operand.vmem [shape: bf16[128,384], index: 5, kind: input, shape index: {}]
  %s6 = inlined_call_operand.vmem [shape: f32[2,384], index: 6, kind: input, shape index: {}]
  %s7 = inlined_call_operand.vmem [shape: f32[8,2,384], index: 7, kind: output, shape index: {}]
  %s8 = sld [smem:[#allocation0]]
  $region89: #{prior_bernoulli_stbp_forward.1} parent=0
    _
  %s10 = ssub.s32 1, %s8
  %s11 = scalar_select 0, %s10, %s8
  loop: start=0, step=1, limit=6
  $region2: #{prior_bernoulli_stbp_forward.1} parent=0 // loop_pre_header
    _
  $region3: #{prior_bernoulli_stbp_forward.1} parent=0 // loop_header
    %s13 = sphi 0, %s17
    %p14 = scmp.ge.s32.totalorder %s13, 6
    %s20 = sphi 0, %s32
    %s21 = sphi 0, %s28
    %s22 = sphi 0, %s20
    %s23 = sphi 0, %s21
    %s24 = sphi 0, %s22
    %s25 = sphi 0, %s23
    %s39 = sphi 0, %s41
    %s42 = sphi 0, %s39
    %s43 = sphi 0, %s42
    %s59 = sphi 0, %s43
    %s63 = sphi 0, %s63
    %s65 = sphi 0, %s63
    %s66 = sphi 0, %s65
    %s80 = sphi 0, %s66
    %s84 = sphi 0, %s84
    %s86 = sphi 0, %s84
    %s87 = sphi 0, %s86
    %s101 = sphi 0, %s87
    %s105 = sphi 0, %s105
    %s107 = sphi 0, %s105
    %s108 = sphi 0, %s107
    %s122 = sphi 0, %s108
    %s126 = sphi 0, %s126
    %s128 = sphi 0, %s126
    %s129 = sphi 0, %s128
    %s143 = sphi 0, %s129
    %s147 = sphi 0, %s147
    %s149 = sphi 0, %s147
    %s150 = sphi 0, %s149
    %s164 = sphi 0, %s150
    %s168 = sphi 0, %s168
    %s170 = sphi 0, %s168
    %s171 = sphi 0, %s170
    %s185 = sphi 0, %s171
    %s195 = sphi 0, %s197
    %s198 = sphi 0, %s195
    %s199 = sphi 0, %s198
    %s215 = sphi 0, %s199
  $region4: #{prior_bernoulli_stbp_forward.1} parent=0 // loop_header_branch
    %16 = sbr.rel (%p14) target = $region8
  $region5: #{prior_bernoulli_stbp_forward.1} parent=0 // loop_body
    %s18 = ssub.s32 %s13, 1
    %s19 = ssub.s32 %s13, 2
    %s26 = sadd.s32 1, %s21
    %p27 = scmp.ge.s32.totalorder %s26, 1
    %s28 = scalar_select %p27, 0, %s26
    %s29 = sadd.s32 1, %s20
    %s30 = scalar_select %p27, %s29, %s20
    %p31 = scmp.ge.s32.totalorder %s30, 4
    %s32 = scalar_select %p31, 0, %s30
    %p33 = scmp.eq.s32.totalorder %s20, 0
    %s34 = scalar_select %p33, %s21, 0
    %p35 = scmp.eq.s32.totalorder %s32, 0
    %s36 = scalar_select %p35, %s28, 0
    %s37 = ssub.s32 %s34, %s36
    %p38 = scmp.eq.s32.totalorder %s37, 0
    %s40 = sadd.s32 %s39, 1
    %s41 = scalar_select %p38, %s39, %s40
    %p44 = pneg %p38
    %p45 = scmp.eq.s32.totalorder %s13, 3
    %p46 = por %p44, %p45
    %p47 = scmp.ne.s32.totalorder %s39, %s42
    %p48 = scmp.eq.s32.totalorder %s13, 0
    %p49 = por %p47, %p48
    %p50 = scmp.ne.s32.totalorder %s39, %s42
    %p51 = scmp.eq.s32.totalorder %s18, 3
    %p52 = por %p50, %p51
    %p53 = scmp.ne.s32.totalorder %s42, %s43
    %p54 = scmp.eq.s32.totalorder %s18, 0
    %p55 = por %p53, %p54
    %p56 = scmp.ne.s32.totalorder %s42, %s43
    %p57 = scmp.eq.s32.totalorder %s19, 3
    %p58 = por %p56, %p57
    %p60 = scmp.ne.s32.totalorder %s43, %s59
    %p61 = scmp.eq.s32.totalorder %s19, 0
    %p62 = por %p60, %p61
    %s64 = sadd.s32 %s63, 1
    %p67 = scmp.eq.s32.totalorder %s13, 3
    %p68 = scmp.ne.s32.totalorder %s63, %s65
    %p69 = scmp.eq.s32.totalorder %s13, 0
    %p70 = por %p68, %p69
    %p71 = scmp.ne.s32.totalorder %s63, %s65
    %p72 = scmp.eq.s32.totalorder %s18, 3
    %p73 = por %p71, %p72
    %p74 = scmp.ne.s32.totalorder %s65, %s66
    %p75 = scmp.eq.s32.totalorder %s18, 0
    %p76 = por %p74, %p75
    %p77 = scmp.ne.s32.totalorder %s65, %s66
    %p78 = scmp.eq.s32.totalorder %s19, 3
    %p79 = por %p77, %p78
    %p81 = scmp.ne.s32.totalorder %s66, %s80
    %p82 = scmp.eq.s32.totalorder %s19, 0
    %p83 = por %p81, %p82
    %s85 = sadd.s32 %s84, 1
    %p88 = scmp.eq.s32.totalorder %s13, 3
    %p89 = scmp.ne.s32.totalorder %s84, %s86
    %p90 = scmp.eq.s32.totalorder %s13, 0
    %p91 = por %p89, %p90
    %p92 = scmp.ne.s32.totalorder %s84, %s86
    %p93 = scmp.eq.s32.totalorder %s18, 3
    %p94 = por %p92, %p93
    %p95 = scmp.ne.s32.totalorder %s86, %s87
    %p96 = scmp.eq.s32.totalorder %s18, 0
    %p97 = por %p95, %p96
    %p98 = scmp.ne.s32.totalorder %s86, %s87
    %p99 = scmp.eq.s32.totalorder %s19, 3
    %p100 = por %p98, %p99
    %p102 = scmp.ne.s32.totalorder %s87, %s101
    %p103 = scmp.eq.s32.totalorder %s19, 0
    %p104 = por %p102, %p103
    %s106 = sadd.s32 %s105, 1
    %p109 = scmp.eq.s32.totalorder %s13, 3
    %p110 = scmp.ne.s32.totalorder %s105, %s107
    %p111 = scmp.eq.s32.totalorder %s13, 0
    %p112 = por %p110, %p111
    %p113 = scmp.ne.s32.totalorder %s105, %s107
    %p114 = scmp.eq.s32.totalorder %s18, 3
    %p115 = por %p113, %p114
    %p116 = scmp.ne.s32.totalorder %s107, %s108
    %p117 = scmp.eq.s32.totalorder %s18, 0
    %p118 = por %p116, %p117
    %p119 = scmp.ne.s32.totalorder %s107, %s108
    %p120 = scmp.eq.s32.totalorder %s19, 3
    %p121 = por %p119, %p120
    %p123 = scmp.ne.s32.totalorder %s108, %s122
    %p124 = scmp.eq.s32.totalorder %s19, 0
    %p125 = por %p123, %p124
    %s127 = sadd.s32 %s126, 1
    %p130 = scmp.eq.s32.totalorder %s13, 3
    %p131 = scmp.ne.s32.totalorder %s126, %s128
    %p132 = scmp.eq.s32.totalorder %s13, 0
    %p133 = por %p131, %p132
    %p134 = scmp.ne.s32.totalorder %s126, %s128
    %p135 = scmp.eq.s32.totalorder %s18, 3
    %p136 = por %p134, %p135
    %p137 = scmp.ne.s32.totalorder %s128, %s129
    %p138 = scmp.eq.s32.totalorder %s18, 0
    %p139 = por %p137, %p138
    %p140 = scmp.ne.s32.totalorder %s128, %s129
    %p141 = scmp.eq.s32.totalorder %s19, 3
    %p142 = por %p140, %p141
    %p144 = scmp.ne.s32.totalorder %s129, %s143
    %p145 = scmp.eq.s32.totalorder %s19, 0
    %p146 = por %p144, %p145
    %s148 = sadd.s32 %s147, 1
    %p151 = scmp.eq.s32.totalorder %s13, 3
    %p152 = scmp.ne.s32.totalorder %s147, %s149
    %p153 = scmp.eq.s32.totalorder %s13, 0
    %p154 = por %p152, %p153
    %p155 = scmp.ne.s32.totalorder %s147, %s149
    %p156 = scmp.eq.s32.totalorder %s18, 3
    %p157 = por %p155, %p156
    %p158 = scmp.ne.s32.totalorder %s149, %s150
    %p159 = scmp.eq.s32.totalorder %s18, 0
    %p160 = por %p158, %p159
    %p161 = scmp.ne.s32.totalorder %s149, %s150
    %p162 = scmp.eq.s32.totalorder %s19, 3
    %p163 = por %p161, %p162
    %p165 = scmp.ne.s32.totalorder %s150, %s164
    %p166 = scmp.eq.s32.totalorder %s19, 0
    %p167 = por %p165, %p166
    %s169 = sadd.s32 %s168, 1
    %p172 = scmp.eq.s32.totalorder %s13, 3
    %p173 = scmp.ne.s32.totalorder %s168, %s170
    %p174 = scmp.eq.s32.totalorder %s13, 0
    %p175 = por %p173, %p174
    %p176 = scmp.ne.s32.totalorder %s168, %s170
    %p177 = scmp.eq.s32.totalorder %s18, 3
    %p178 = por %p176, %p177
    %p179 = scmp.ne.s32.totalorder %s170, %s171
    %p180 = scmp.eq.s32.totalorder %s18, 0
    %p181 = por %p179, %p180
    %p182 = scmp.ne.s32.totalorder %s170, %s171
    %p183 = scmp.eq.s32.totalorder %s19, 3
    %p184 = por %p182, %p183
    %p186 = scmp.ne.s32.totalorder %s171, %s185
    %p187 = scmp.eq.s32.totalorder %s19, 0
    %p188 = por %p186, %p187
    %p189 = scmp.eq.s32.totalorder %s20, 3
    %s190 = scalar_select %p189, %s21, 0
    %p191 = scmp.eq.s32.totalorder %s32, 3
    %s192 = scalar_select %p191, %s28, 0
    %s193 = ssub.s32 %s190, %s192
    %p194 = scmp.eq.s32.totalorder %s193, 0
    %s196 = sadd.s32 %s195, 1
    %s197 = scalar_select %p194, %s195, %s196
    %p200 = pneg %p194
    %p201 = scmp.eq.s32.totalorder %s13, 3
    %p202 = por %p200, %p201
    %p203 = scmp.ne.s32.totalorder %s195, %s198
    %p204 = scmp.eq.s32.totalorder %s13, 0
    %p205 = por %p203, %p204
    %p206 = scmp.ne.s32.totalorder %s195, %s198
    %p207 = scmp.eq.s32.totalorder %s18, 3
    %p208 = por %p206, %p207
    %p209 = scmp.ne.s32.totalorder %s198, %s199
    %p210 = scmp.eq.s32.totalorder %s18, 0
    %p211 = por %p209, %p210
    %p212 = scmp.ne.s32.totalorder %s198, %s199
    %p213 = scmp.eq.s32.totalorder %s19, 3
    %p214 = por %p212, %p213
    %p216 = scmp.ne.s32.totalorder %s199, %s215
    %p217 = scmp.eq.s32.totalorder %s19, 0
    %p218 = por %p216, %p217
    %p219 = scmp.le.s32.totalorder 1, %s13
    %p220 = scmp.lt.s32.totalorder %s13, 5
    %p221 = pnand %p219, %p220
    %p222 = pneg %p221
    // Predicated region
    $region9: #{prior_bernoulli_stbp_forward.1} parent=5 // pred_check
      _
    $region10: #{prior_bernoulli_stbp_forward.1} parent=5 // pred_check_branch
      %224 = sbr.rel (%p221) target = $region12
    $region11: #{prior_bernoulli_stbp_forward.1} parent=5 // pred_region
      %s225 = ssub.s32 %s13, 1
      // Predicated region
      $region13: #{prior_bernoulli_stbp_forward.1} parent=11 // pred_check
        %p226 = pneg %p76
      $region14: #{prior_bernoulli_stbp_forward.1} parent=11 // pred_check_branch
        %228 = sbr.rel (%p226) target = $region16
      $region15: #{prior_bernoulli_stbp_forward.1} parent=11 // pred_region
        _
      $region16: #{prior_bernoulli_stbp_forward.1} parent=11 // pred_fallthru
        _
      // Predicated region
      $region17: #{prior_bernoulli_stbp_forward.1} parent=11 // pred_check
        %p229 = pneg %p97
      $region18: #{prior_bernoulli_stbp_forward.1} parent=11 // pred_check_branch
        %231 = sbr.rel (%p229) target = $region20
      $region19: #{prior_bernoulli_stbp_forward.1} parent=11 // pred_region
        _
      $region20: #{prior_bernoulli_stbp_forward.1} parent=11 // pred_fallthru
        _
      // Predicated region
      $region21: #{prior_bernoulli_stbp_forward.1} parent=11 // pred_check
        %p232 = pneg %p118
      $region22: #{prior_bernoulli_stbp_forward.1} parent=11 // pred_check_branch
        %234 = sbr.rel (%p232) target = $region24
      $region23: #{prior_bernoulli_stbp_forward.1} parent=11 // pred_region
        _
      $region24: #{prior_bernoulli_stbp_forward.1} parent=11 // pred_fallthru
        _
      // Predicated region
      $region25: #{prior_bernoulli_stbp_forward.1} parent=11 // pred_check
        %p235 = pneg %p139
      $region26: #{prior_bernoulli_stbp_forward.1} parent=11 // pred_check_branch
        %237 = sbr.rel (%p235) target = $region28
      $region27: #{prior_bernoulli_stbp_forward.1} parent=11 // pred_region
        _
      $region28: #{prior_bernoulli_stbp_forward.1} parent=11 // pred_fallthru
        _
      // Predicated region
      $region29: #{prior_bernoulli_stbp_forward.1} parent=11 // pred_check
        %p238 = pneg %p160
      $region30: #{prior_bernoulli_stbp_forward.1} parent=11 // pred_check_branch
        %240 = sbr.rel (%p238) target = $region32
      $region31: #{prior_bernoulli_stbp_forward.1} parent=11 // pred_region
        _
      $region32: #{prior_bernoulli_stbp_forward.1} parent=11 // pred_fallthru
        _
      // Predicated region
      $region33: #{prior_bernoulli_stbp_forward.1} parent=11 // pred_check
        %p241 = pneg %p181
      $region34: #{prior_bernoulli_stbp_forward.1} parent=11 // pred_check_branch
        %243 = sbr.rel (%p241) target = $region36
      $region35: #{prior_bernoulli_stbp_forward.1} parent=11 // pred_region
        _
      $region36: #{prior_bernoulli_stbp_forward.1} parent=11 // pred_fallthru
        _
    $region12: #{prior_bernoulli_stbp_forward.1} parent=5 // pred_fallthru
      _
    %p244 = scmp.lt.s32.totalorder %s13, 4
    // Predicated region
    $region37: #{prior_bernoulli_stbp_forward.1} parent=5 // pred_check
      %p245 = pneg %p244
    $region38: #{prior_bernoulli_stbp_forward.1} parent=5 // pred_check_branch
      %247 = sbr.rel (%p245) target = $region40
    $region39: #{prior_bernoulli_stbp_forward.1} parent=5 // pred_region
      // Predicated region
      $region41: #{prior_bernoulli_stbp_forward.1} parent=39 // pred_check
        %p248 = pneg %p49
      $region42: #{prior_bernoulli_stbp_forward.1} parent=39 // pred_check_branch
        %250 = sbr.rel (%p248) target = $region44
      $region43: #{prior_bernoulli_stbp_forward.1} parent=39 // pred_region
        %p251 = scmp.eq.s32.totalorder %s20, 0
        %s252 = scalar_select %p251, %s21, 0
        %p253 = scmp.lt.s32.totalorder %s252, 0
        %s254 = scalar_select %p253, %s252, 0
        %s255 = scalar_lea.vmem %s0, %s254
        %p256 = scmp.eq.s32.totalorder %s20, 0
        %s257 = scalar_select %p256, %s21, 0
      $region44: #{prior_bernoulli_stbp_forward.1} parent=39 // pred_fallthru
        _
    $region40: #{prior_bernoulli_stbp_forward.1} parent=5 // pred_fallthru
      _
    %p258 = scmp.le.s32.totalorder 1, %s13
    %p259 = scmp.lt.s32.totalorder %s13, 5
    %p260 = pnand %p258, %p259
    %p261 = pneg %p260
    // Predicated region
    $region45: #{prior_bernoulli_stbp_forward.1} parent=5 // pred_check
      _
    $region46: #{prior_bernoulli_stbp_forward.1} parent=5 // pred_check_branch
      %263 = sbr.rel (%p260) target = $region48
    $region47: #{prior_bernoulli_stbp_forward.1} parent=5 // pred_region
      %s264 = ssub.s32 %s13, 1
      %p265 = scmp.eq.s32.totalorder %s22, 0
      %s266 = scalar_select %p265, %s23, 0
      %p267 = scmp.lt.s32.totalorder %s266, 0
      %s268 = scalar_select %p267, %s266, 0
      %s269 = scalar_lea.vmem %s0, %s268
      %p270 = pneg %p55
      %p271 = pneg %p52
      %p272 = pneg %p76
      %p273 = pneg %p73
      %p274 = pneg %p97
      %p275 = pneg %p94
      %p276 = pneg %p118
      %p277 = pneg %p115
      %p278 = pneg %p139
      %p279 = pneg %p136
      %p280 = pneg %p160
      %p281 = pneg %p157
      %p282 = pneg %p181
      %p283 = pneg %p178
      %p284 = pneg %p211
      %p285 = pneg %p208
      %p286 = scmp.eq.s32.totalorder %s22, 3
      %s287 = scalar_select %p286, %s23, 0
      %p288 = scmp.lt.s32.totalorder %s287, 0
      %s289 = scalar_select %p288, %s287, 0
      %s290 = smul.addr %s289, 3
      %s291 = smul.addr %s290, 2
      %s292 = scalar_lea.vmem %s7, %s291
      %p293 = scmp.eq.s32.totalorder %s22, 0
      %s294 = scalar_select %p293, %s23, 0
      %p295 = scmp.lt.s32.totalorder %s294, 0
      %s296 = scalar_select %p295, %s294, 0
      %s297 = scalar_lea.vmem %s0, %s296
      %p298 = scmp.eq.s32.totalorder %s22, 0
      %s299 = scalar_select %p298, %s23, 0
      %p300 = scmp.eq.s32.totalorder %s22, 3
      %s301 = scalar_select %p300, %s23, 0
      %p302 = scmp.lt.s32.totalorder %s301, 0
      %s303 = scalar_select %p302, %s301, 0
      %s304 = smul.addr %s303, 3
      %s305 = smul.addr %s304, 2
      %s306 = scalar_lea.vmem %s7, %s305
      %p307 = scmp.eq.s32.totalorder %s22, 3
      %s308 = scalar_select %p307, %s23, 0
      %p310 = scmp.eq.s32.totalorder %s23, 0
      %p311 = scmp.eq.s32.totalorder %s22, 0
      // Predicated region
      $region49: #{prior_bernoulli_stbp_forward.1} parent=47 // pred_check
        %p312 = pneg %p311
      $region50: #{prior_bernoulli_stbp_forward.1} parent=47 // pred_check_branch
        %314 = sbr.rel (%p312) target = $region52
      $region51: #{prior_bernoulli_stbp_forward.1} parent=47 // pred_region
        %315 = vst [vmem:[#allocation5] sm:$0x1] 0
        %v316 = vld [vmem:[%s297] sm:$0x1]
        %v319 = vunpack.c.l.s4 1935823168
        %v320 = vunpack.c.0.s8 %v319
        %v321 = vlaneseq
        %v322 = vshrl.u32 %v321, 7
        %v323 = vsub.s32 %v320, %v322
        %v324 = vrot.slane %v316, %v323
        %v325 = vcombine.low %v324, %v324
        %v327 = vunpack.c.l.s4 1935823168
        %v328 = vunpack.c.0.s8 %v327
        %v329 = vlaneseq
        %v330 = vshrl.u32 %v329, 7
        %v331 = vsub.s32 %v328, %v330
        %v332 = vrot.slane %v325, %v331
        %334 = vst [vmem:[#allocation5] sm:$0x2] %v332
        %s335 = scalar_lea.vmem %s297, 1
        %v336 = vld [vmem:[%s335] sm:$0x1]
        %v338 = vcombine.low %v336, %v336
        %v340 = vunpack.c.l.s4 1935823168
        %v341 = vunpack.c.0.s8 %v340
        %v342 = vlaneseq
        %v343 = vshrl.u32 %v342, 7
        %v344 = vsub.s32 %v341, %v343
        %v345 = vrot.slane %v338, %v344
        %v347 = vunpack.c.l.s4 1935823168
        %v348 = vunpack.c.0.s8 %v347
        %v349 = vlaneseq
        %v350 = vshrl.u32 %v349, 7
        %v351 = vsub.s32 %v348, %v350
        %v352 = vrot.slane %v345, %v351
        %354 = vst [vmem:[#allocation5] sm:$0x4] %v352
        %s355 = scalar_lea.vmem %s297, 2
        %v356 = vld [vmem:[%s355] sm:$0x1]
        %v358 = vcombine.low %v356, %v356
        %v360 = vunpack.c.l.s4 1935823168
        %v361 = vunpack.c.0.s8 %v360
        %v362 = vlaneseq
        %v363 = vshrl.u32 %v362, 7
        %v364 = vsub.s32 %v361, %v363
        %v365 = vrot.slane %v358, %v364
        %v366 = vcombine.low %v365, %v365
        %v368 = vunpack.c.l.s4 1935823168
        %v369 = vunpack.c.0.s8 %v368
        %v370 = vlaneseq
        %v371 = vshrl.u32 %v370, 7
        %v372 = vsub.s32 %v369, %v371
        %v373 = vrot.slane %v366, %v372
        %375 = vst [vmem:[#allocation5] sm:$0x8] %v373
        %s376 = scalar_lea.vmem %s297, 3
        %v377 = vld [vmem:[%s376] sm:$0x1]
        %378 = vst [vmem:[#allocation5 + $0x4] sm:$0x1] %v377
        %s379 = scalar_lea.vmem %s297, 4
        %v380 = vld [vmem:[%s379] sm:$0x1]
        %v383 = vunpack.c.l.s4 1935823168
        %v384 = vunpack.c.0.s8 %v383
        %v385 = vlaneseq
        %v386 = vshrl.u32 %v385, 7
        %v387 = vsub.s32 %v384, %v386
        %v388 = vrot.slane %v380, %v387
        %v389 = vcombine.low %v388, %v388
        %v391 = vunpack.c.l.s4 1935823168
        %v392 = vunpack.c.0.s8 %v391
        %v393 = vlaneseq
        %v394 = vshrl.u32 %v393, 7
        %v395 = vsub.s32 %v392, %v394
        %v396 = vrot.slane %v389, %v395
        %398 = vst [vmem:[#allocation5 + $0x4] sm:$0x2] %v396
        %s399 = scalar_lea.vmem %s297, 5
        %v400 = vld [vmem:[%s399] sm:$0x1]
        %v402 = vcombine.low %v400, %v400
        %v404 = vunpack.c.l.s4 1935823168
        %v405 = vunpack.c.0.s8 %v404
        %v406 = vlaneseq
        %v407 = vshrl.u32 %v406, 7
        %v408 = vsub.s32 %v405, %v407
        %v409 = vrot.slane %v402, %v408
        %v411 = vunpack.c.l.s4 1935823168
        %v412 = vunpack.c.0.s8 %v411
        %v413 = vlaneseq
        %v414 = vshrl.u32 %v413, 7
        %v415 = vsub.s32 %v412, %v414
        %v416 = vrot.slane %v409, %v415
        %418 = vst [vmem:[#allocation5 + $0x4] sm:$0x4] %v416
        %s419 = scalar_lea.vmem %s297, 6
        %v420 = vld [vmem:[%s419] sm:$0x1]
        %v422 = vcombine.low %v420, %v420
        %v424 = vunpack.c.l.s4 1935823168
        %v425 = vunpack.c.0.s8 %v424
        %v426 = vlaneseq
        %v427 = vshrl.u32 %v426, 7
        %v428 = vsub.s32 %v425, %v427
        %v429 = vrot.slane %v422, %v428
        %v430 = vcombine.low %v429, %v429
        %v432 = vunpack.c.l.s4 1935823168
        %v433 = vunpack.c.0.s8 %v432
        %v434 = vlaneseq
        %v435 = vshrl.u32 %v434, 7
        %v436 = vsub.s32 %v433, %v435
        %v437 = vrot.slane %v430, %v436
        %439 = vst [vmem:[#allocation5 + $0x4] sm:$0x8] %v437
        %v440 = vld [vmem:[#allocation5] sm:$0xf]
        %v441 = vld [vmem:[#allocation5 + $0x4] sm:$0xf]
        %v442 = vld [vmem:[%s1] sm:$0xf]
        %v443 = vld [vmem:[%s1 + $0x4] sm:$0xf]
        %v444 = vld [vmem:[%s1 + $0x8] sm:$0xf]
        %v445 = vld [vmem:[%s1 + $0xc] sm:$0xf]
        %v446 = vld [vmem:[%s1 + $0x10] sm:$0xf]
        %v447 = vld [vmem:[%s1 + $0x14] sm:$0xf]
        %v448 = vld [vmem:[%s1 + $0x18] sm:$0xf]
        %v449 = vld [vmem:[%s1 + $0x1c] sm:$0xf]
        %v450 = vld [vmem:[%s1 + $0x20] sm:$0xf]
        %v451 = vld [vmem:[%s1 + $0x24] sm:$0xf]
        %v452 = vld [vmem:[%s1 + $0x28] sm:$0xf]
        %v453 = vld [vmem:[%s1 + $0x2c] sm:$0xf]
        %v454 = vld [vmem:[%s1 + $0x30] sm:$0xf]
        %v455 = vld [vmem:[%s1 + $0x34] sm:$0xf]
        %v456 = vld [vmem:[%s1 + $0x38] sm:$0xf]
        %v457 = vld [vmem:[%s1 + $0x3c] sm:$0xf]
        %v460 = vunpack.c.l.b16 %v440
        %v461 = vunpack.c.l.b16 %v441
        %v462 = vpack.c.b16 %v461, %v460
        %v480 = vunpack.c.l.b16 %v442
        %v481 = vunpack.c.l.b16 %v443
        %v482 = vunpack.c.l.b16 %v444
        %v483 = vunpack.c.l.b16 %v445
        %v484 = vunpack.c.l.b16 %v446
        %v485 = vunpack.c.l.b16 %v447
        %v486 = vunpack.c.l.b16 %v448
        %v487 = vunpack.c.l.b16 %v449
        %v488 = vunpack.c.l.b16 %v450
        %v489 = vunpack.c.l.b16 %v451
        %v490 = vunpack.c.l.b16 %v452
        %v491 = vunpack.c.l.b16 %v453
        %v492 = vunpack.c.l.b16 %v454
        %v493 = vunpack.c.l.b16 %v455
        %v494 = vunpack.c.l.b16 %v456
        %v495 = vunpack.c.l.b16 %v457
        %v496 = vpack.c.b16 %v481, %v480
        %v497 = vpack.c.b16 %v483, %v482
        %v498 = vpack.c.b16 %v485, %v484
        %v499 = vpack.c.b16 %v487, %v486
        %v500 = vpack.c.b16 %v489, %v488
        %v501 = vpack.c.b16 %v491, %v490
        %v502 = vpack.c.b16 %v493, %v492
        %v503 = vpack.c.b16 %v495, %v494
        %512 = vmatprep.subr.bf16.mxu0 0
        %513 = vmatpush1.bf16.msra.mxu0 %v503
        %514 = vmatprep.subr.bf16.mxu0 0
        %515 = vmatpush1.bf16.msra.mxu0 %v502
        %516 = vmatprep.subr.bf16.mxu0 0
        %517 = vmatpush1.bf16.msra.mxu0 %v501
        %518 = vmatprep.subr.bf16.mxu0 0
        %519 = vmatpush1.bf16.msra.mxu0 %v500
        %520 = vmatprep.subr.bf16.mxu0 0
        %521 = vmatpush1.bf16.msra.mxu0 %v499
        %522 = vmatprep.subr.bf16.mxu0 0
        %523 = vmatpush1.bf16.msra.mxu0 %v498
        %524 = vmatprep.subr.bf16.mxu0 0
        %525 = vmatpush1.bf16.msra.mxu0 %v497
        %526 = vmatprep.subr.bf16.mxu0 0
        %527 = vmatpush1.bf16.msra.mxu0 %v496
        %528 = vmatprep.subr.bf16.mxu0 0
        %529 = vmatpush2.bf16.msra.mxu0 0
        %530 = vmatprep.subr.bf16.mxu0 0
        %531 = vmatpush2.bf16.msra.mxu0 0
        %532 = vmatprep.subr.bf16.mxu0 0
        %533 = vmatpush2.bf16.msra.mxu0 0
        %534 = vmatprep.subr.bf16.mxu0 0
        %535 = vmatpush2.bf16.msra.mxu0 0
        %536 = vmatprep.subr.bf16.mxu0 0
        %537 = vmatpush2.bf16.msra.mxu0 0
        %538 = vmatprep.subr.bf16.mxu0 0
        %539 = vmatpush2.bf16.msra.mxu0 0
        %540 = vmatprep.subr.bf16.mxu0 0
        %541 = vmatpush2.bf16.msra.mxu0 0
        %542 = vmatprep.subr.bf16.mxu0 0
        %543 = vmatpush2.bf16.msra.mxu0 0
        %544 = vmatprep.mubr.bf16.mxu0 0
        %545 = vmatmul.mubr.bf16.gmra.mxu0 %v462
        %v546 = vpop.f32.mrf.mxu0
        %v547 = vadd.f32 0.0, %v546
        %v548 = vpop.f32.mrf.mxu0
        %v549 = vpop.f32.mrf.mxu0
        %v550 = vadd.f32 0.0, %v549
        %v551 = vpop.f32.mrf.mxu0
        %552 = vdwg.mxu0
        // Predicated region
        $region53: #{prior_bernoulli_stbp_forward.1} parent=51 // pred_check
          %p553 = pneg %p310
        $region54: #{prior_bernoulli_stbp_forward.1} parent=51 // pred_check_branch
          %555 = sbr.rel (%p553) target = $region56
        $region55: #{prior_bernoulli_stbp_forward.1} parent=51 // pred_region
          %556 = vst [vmem:[#allocation8] sm:$0x3] 0.0
        $region56: #{prior_bernoulli_stbp_forward.1} parent=51 // pred_fallthru
          _
        %v557 = vadd.f32 %v547, %v550
        %v558 = vrot.slane %v557, 4
        %v559 = vadd.f32 %v557, %v558
        %v560 = vrot.slane %v559, 2
        %v561 = vadd.f32 %v559, %v560
        %v562 = vrot.slane %v561, 1
        %v563 = vadd.f32 %v561, %v562
        %v564 = vmul.f32 %v547, %v547
        %v565 = vmul.f32 %v550, %v550
        %v566 = vadd.f32 %v564, %v565
        %v567 = vrot.slane %v566, 4
        %v568 = vadd.f32 %v566, %v567
        %v569 = vrot.slane %v568, 2
        %v570 = vadd.f32 %v568, %v569
        %v571 = vrot.slane %v570, 1
        %v572 = vadd.f32 %v570, %v571
        %v573 = vld [vmem:[#allocation8] sm:$0x3]
        %vm574 = vcmask 1040384
        %v575 = vsel %vm574, %v563, %v572
        %v576 = vadd.f32 %v573, %v575
        %577 = vst [vmem:[#allocation8] sm:$0x3] %v576
        %s578 = smul.u32 %s23, 16
        %s579 = scalar_lea.vmem [#allocation2], %s578
        %580 = vst [vmem:[%s579] sm:$0xff] %v547
        %581 = vst [vmem:[%s579 + $0x8] sm:$0xff] %v550
      $region52: #{prior_bernoulli_stbp_forward.1} parent=47 // pred_fallthru
        _
      %p582 = scmp.eq.s32.totalorder %s22, 1
      // Predicated region
      $region57: #{prior_bernoulli_stbp_forward.1} parent=47 // pred_check
        %p583 = pneg %p582
      $region58: #{prior_bernoulli_stbp_forward.1} parent=47 // pred_check_branch
        %585 = sbr.rel (%p583) target = $region60
      $region59: #{prior_bernoulli_stbp_forward.1} parent=47 // pred_region
        %v586 = vld [vmem:[#allocation8] sm:$0x3]
        %v587 = vmul.f32 %v586, 0.0625
        %v588 = vmul.f32 %v587, %v587
        %v590 = vrot.slane %v588, 7
        %v592 = vsub.f32 %v587, %v590
        %v593 = vmax.f32 %v592, 0.0
        %v594 = vld [vmem:[%s2] sm:$0x1]
        %v595 = vld [vmem:[%s2 + $0x1] sm:$0x1]
        %v596 = vmul.f32 %v594, 0.4
        %v597 = vadd.f32 %v593, 1e-05
        %v598 = vrsqrt.pop %v597
        %v600 = vrot.slane %v598, 1
        %v602 = vmul.f32 %v596, %v600
        %v603 = vmul.f32 %v587, %v602
        %v604 = vsub.f32 %v595, %v603
        %s605 = smul.u32 %s23, 16
        %s606 = scalar_lea.vmem [#allocation2], %s605
        %v607 = vld [vmem:[%s606] sm:$0x3]
        %v608 = vlaneseq
        %v609 = vshrl.u32 %v608, 7
        %v610 = vsub.s32 0, %v609
        %v611 = vrot.slane %v602, %v610
        %v612 = vmul.f32 %v607, %v611
        %v613 = vlaneseq
        %v614 = vshrl.u32 %v613, 7
        %v615 = vsub.s32 0, %v614
        %v616 = vrot.slane %v604, %v615
        %v617 = vadd.f32 %v612, %v616
        %v618 = vadd.f32 %v617, 0.0
        %vm619 = vcmp.gt.f32.partialorder %v618, 0.2
        %v620 = vsel %vm619, 1, 0
        %v621 = vcvt.s32.f32 %v620
        %v622 = vpack.c.bf16 %v621, %v621
        %623 = vst [vmem:[#allocation6] sm:$0x1] %v622
        %v624 = vld [vmem:[%s606 + $0x2] sm:$0x3]
        %v625 = vmul.f32 %v618, 0.25
        %v626 = vsub.f32 1.0, %v621
        %v627 = vmul.f32 %v625, %v626
        %v628 = vmul.f32 %v624, %v611
        %v629 = vadd.f32 %v628, %v616
        %v630 = vadd.f32 %v627, %v629
        %vm631 = vcmp.gt.f32.partialorder %v630, 0.2
        %v632 = vsel %vm631, 1, 0
        %v633 = vcvt.s32.f32 %v632
        %v634 = vpack.c.bf16 %v633, %v633
        %v636 = vunpack.c.l.b16 %v634
        %v637 = vpack.c.b16 %v636, %v636
        %v638 = vrot.slane %v637, 7
        %640 = vst [vmem:[#allocation6] sm:$0x2] %v638
        %v641 = vld [vmem:[%s606 + $0x4] sm:$0x3]
        %v642 = vmul.f32 %v630, 0.25
        %v643 = vsub.f32 1.0, %v633
        %v644 = vmul.f32 %v642, %v643
        %v645 = vmul.f32 %v641, %v611
        %v646 = vadd.f32 %v645, %v616
        %v647 = vadd.f32 %v644, %v646
        %vm648 = vcmp.gt.f32.partialorder %v647, 0.2
        %v649 = vsel %vm648, 1, 0
        %v650 = vcvt.s32.f32 %v649
        %v651 = vpack.c.bf16 %v650, %v650
        %v653 = vunpack.c.l.b16 %v651
        %v654 = vpack.c.b16 %v653, %v653
        %v655 = vrot.slane %v654, 6
        %657 = vst [vmem:[#allocation6] sm:$0x4] %v655
        %v658 = vld [vmem:[%s606 + $0x6] sm:$0x3]
        %v659 = vmul.f32 %v647, 0.25
        %v660 = vsub.f32 1.0, %v650
        %v661 = vmul.f32 %v659, %v660
        %v662 = vmul.f32 %v658, %v611
        %v663 = vadd.f32 %v662, %v616
        %v664 = vadd.f32 %v661, %v663
        %vm665 = vcmp.gt.f32.partialorder %v664, 0.2
        %v666 = vsel %vm665, 1, 0
        %v667 = vcvt.s32.f32 %v666
        %v668 = vpack.c.bf16 %v667, %v667
        %v670 = vunpack.c.l.b16 %v668
        %v671 = vpack.c.b16 %v670, %v670
        %v672 = vrot.slane %v671, 5
        %674 = vst [vmem:[#allocation6] sm:$0x8] %v672
        %v675 = vld [vmem:[%s606 + $0x8] sm:$0x3]
        %v676 = vmul.f32 %v664, 0.25
        %v677 = vsub.f32 1.0, %v667
        %v678 = vmul.f32 %v676, %v677
        %v679 = vmul.f32 %v675, %v611
        %v680 = vadd.f32 %v679, %v616
        %v681 = vadd.f32 %v678, %v680
        %vm682 = vcmp.gt.f32.partialorder %v681, 0.2
        %v683 = vsel %vm682, 1, 0
        %v684 = vcvt.s32.f32 %v683
        %v685 = vpack.c.bf16 %v684, %v684
        %686 = vst [vmem:[#allocation6 + $0x4] sm:$0x1] %v685
        %v687 = vld [vmem:[%s606 + $0xa] sm:$0x3]
        %v688 = vmul.f32 %v681, 0.25
        %v689 = vsub.f32 1.0, %v684
        %v690 = vmul.f32 %v688, %v689
        %v691 = vmul.f32 %v687, %v611
        %v692 = vadd.f32 %v691, %v616
        %v693 = vadd.f32 %v690, %v692
        %vm694 = vcmp.gt.f32.partialorder %v693, 0.2
        %v695 = vsel %vm694, 1, 0
        %v696 = vcvt.s32.f32 %v695
        %v697 = vpack.c.bf16 %v696, %v696
        %v699 = vunpack.c.l.b16 %v697
        %v700 = vpack.c.b16 %v699, %v699
        %v701 = vrot.slane %v700, 7
        %703 = vst [vmem:[#allocation6 + $0x4] sm:$0x2] %v701
        %v704 = vld [vmem:[%s606 + $0xc] sm:$0x3]
        %v705 = vmul.f32 %v693, 0.25
        %v706 = vsub.f32 1.0, %v696
        %v707 = vmul.f32 %v705, %v706
        %v708 = vmul.f32 %v704, %v611
        %v709 = vadd.f32 %v708, %v616
        %v710 = vadd.f32 %v707, %v709
        %vm711 = vcmp.gt.f32.partialorder %v710, 0.2
        %v712 = vsel %vm711, 1, 0
        %v713 = vcvt.s32.f32 %v712
        %v714 = vpack.c.bf16 %v713, %v713
        %v716 = vunpack.c.l.b16 %v714
        %v717 = vpack.c.b16 %v716, %v716
        %v718 = vrot.slane %v717, 6
        %720 = vst [vmem:[#allocation6 + $0x4] sm:$0x4] %v718
        %v721 = vld [vmem:[%s606 + $0xe] sm:$0x3]
        %v722 = vmul.f32 %v710, 0.25
        %v723 = vsub.f32 1.0, %v713
        %v724 = vmul.f32 %v722, %v723
        %v725 = vmul.f32 %v721, %v611
        %v726 = vadd.f32 %v725, %v616
        %v727 = vadd.f32 %v724, %v726
        %vm728 = vcmp.gt.f32.partialorder %v727, 0.2
        %v729 = vsel %vm728, 1, 0
        %v730 = vcvt.s32.f32 %v729
        %v731 = vpack.c.bf16 %v730, %v730
        %v733 = vunpack.c.l.b16 %v731
        %v734 = vpack.c.b16 %v733, %v733
        %v735 = vrot.slane %v734, 5
        %737 = vst [vmem:[#allocation6 + $0x4] sm:$0x8] %v735
        %v738 = vld [vmem:[#allocation6] sm:$0xf]
        %v739 = vld [vmem:[#allocation6 + $0x4] sm:$0xf]
        %v740 = vld [vmem:[%s3] sm:$0xf]
        %v741 = vld [vmem:[%s3 + $0x4] sm:$0xf]
        %v742 = vld [vmem:[%s3 + $0x8] sm:$0xf]
        %v743 = vld [vmem:[%s3 + $0xc] sm:$0xf]
        %v744 = vld [vmem:[%s3 + $0x10] sm:$0xf]
        %v745 = vld [vmem:[%s3 + $0x14] sm:$0xf]
        %v746 = vld [vmem:[%s3 + $0x18] sm:$0xf]
        %v747 = vld [vmem:[%s3 + $0x1c] sm:$0xf]
        %v748 = vld [vmem:[%s3 + $0x20] sm:$0xf]
        %v749 = vld [vmem:[%s3 + $0x24] sm:$0xf]
        %v750 = vld [vmem:[%s3 + $0x28] sm:$0xf]
        %v751 = vld [vmem:[%s3 + $0x2c] sm:$0xf]
        %v752 = vld [vmem:[%s3 + $0x30] sm:$0xf]
        %v753 = vld [vmem:[%s3 + $0x34] sm:$0xf]
        %v754 = vld [vmem:[%s3 + $0x38] sm:$0xf]
        %v755 = vld [vmem:[%s3 + $0x3c] sm:$0xf]
        %v758 = vunpack.c.l.b16 %v738
        %v759 = vunpack.c.l.b16 %v739
        %v760 = vpack.c.b16 %v759, %v758
        %v778 = vunpack.c.l.b16 %v740
        %v779 = vunpack.c.l.b16 %v741
        %v780 = vunpack.c.l.b16 %v742
        %v781 = vunpack.c.l.b16 %v743
        %v782 = vunpack.c.l.b16 %v744
        %v783 = vunpack.c.l.b16 %v745
        %v784 = vunpack.c.l.b16 %v746
        %v785 = vunpack.c.l.b16 %v747
        %v786 = vunpack.c.l.b16 %v748
        %v787 = vunpack.c.l.b16 %v749
        %v788 = vunpack.c.l.b16 %v750
        %v789 = vunpack.c.l.b16 %v751
        %v790 = vunpack.c.l.b16 %v752
        %v791 = vunpack.c.l.b16 %v753
        %v792 = vunpack.c.l.b16 %v754
        %v793 = vunpack.c.l.b16 %v755
        %v794 = vpack.c.b16 %v779, %v778
        %v795 = vpack.c.b16 %v781, %v780
        %v796 = vpack.c.b16 %v783, %v782
        %v797 = vpack.c.b16 %v785, %v784
        %v798 = vpack.c.b16 %v787, %v786
        %v799 = vpack.c.b16 %v789, %v788
        %v800 = vpack.c.b16 %v791, %v790
        %v801 = vpack.c.b16 %v793, %v792
        %810 = vmatprep.subr.bf16.mxu0 0
        %811 = vmatpush1.bf16.msra.mxu0 %v801
        %812 = vmatprep.subr.bf16.mxu0 0
        %813 = vmatpush1.bf16.msra.mxu0 %v800
        %814 = vmatprep.subr.bf16.mxu0 0
        %815 = vmatpush1.bf16.msra.mxu0 %v799
        %816 = vmatprep.subr.bf16.mxu0 0
        %817 = vmatpush1.bf16.msra.mxu0 %v798
        %818 = vmatprep.subr.bf16.mxu0 0
        %819 = vmatpush1.bf16.msra.mxu0 %v797
        %820 = vmatprep.subr.bf16.mxu0 0
        %821 = vmatpush1.bf16.msra.mxu0 %v796
        %822 = vmatprep.subr.bf16.mxu0 0
        %823 = vmatpush1.bf16.msra.mxu0 %v795
        %824 = vmatprep.subr.bf16.mxu0 0
        %825 = vmatpush1.bf16.msra.mxu0 %v794
        %826 = vmatprep.subr.bf16.mxu0 0
        %827 = vmatpush2.bf16.msra.mxu0 0
        %828 = vmatprep.subr.bf16.mxu0 0
        %829 = vmatpush2.bf16.msra.mxu0 0
        %830 = vmatprep.subr.bf16.mxu0 0
        %831 = vmatpush2.bf16.msra.mxu0 0
        %832 = vmatprep.subr.bf16.mxu0 0
        %833 = vmatpush2.bf16.msra.mxu0 0
        %834 = vmatprep.subr.bf16.mxu0 0
        %835 = vmatpush2.bf16.msra.mxu0 0
        %836 = vmatprep.subr.bf16.mxu0 0
        %837 = vmatpush2.bf16.msra.mxu0 0
        %838 = vmatprep.subr.bf16.mxu0 0
        %839 = vmatpush2.bf16.msra.mxu0 0
        %840 = vmatprep.subr.bf16.mxu0 0
        %841 = vmatpush2.bf16.msra.mxu0 0
        %842 = vmatprep.mubr.bf16.mxu0 0
        %843 = vmatmul.mubr.bf16.gmra.mxu0 %v760
        %v844 = vpop.f32.mrf.mxu0
        %v845 = vadd.f32 0.0, %v844
        %v846 = vpop.f32.mrf.mxu0
        %v847 = vpop.f32.mrf.mxu0
        %v848 = vadd.f32 0.0, %v847
        %v849 = vpop.f32.mrf.mxu0
        %850 = vdwg.mxu0
        // Predicated region
        $region61: #{prior_bernoulli_stbp_forward.1} parent=59 // pred_check
          %p851 = pneg %p310
        $region62: #{prior_bernoulli_stbp_forward.1} parent=59 // pred_check_branch
          %853 = sbr.rel (%p851) target = $region64
        $region63: #{prior_bernoulli_stbp_forward.1} parent=59 // pred_region
          %854 = vst [vmem:[#allocation9] sm:$0x3] 0.0
        $region64: #{prior_bernoulli_stbp_forward.1} parent=59 // pred_fallthru
          _
        %v855 = vadd.f32 %v845, %v848
        %v856 = vrot.slane %v855, 4
        %v857 = vadd.f32 %v855, %v856
        %v858 = vrot.slane %v857, 2
        %v859 = vadd.f32 %v857, %v858
        %v860 = vrot.slane %v859, 1
        %v861 = vadd.f32 %v859, %v860
        %v862 = vmul.f32 %v845, %v845
        %v863 = vmul.f32 %v848, %v848
        %v864 = vadd.f32 %v862, %v863
        %v865 = vrot.slane %v864, 4
        %v866 = vadd.f32 %v864, %v865
        %v867 = vrot.slane %v866, 2
        %v868 = vadd.f32 %v866, %v867
        %v869 = vrot.slane %v868, 1
        %v870 = vadd.f32 %v868, %v869
        %v871 = vld [vmem:[#allocation9] sm:$0x3]
        %vm872 = vcmask 1040384
        %v873 = vsel %vm872, %v861, %v870
        %v874 = vadd.f32 %v871, %v873
        %875 = vst [vmem:[#allocation9] sm:$0x3] %v874
        %s876 = scalar_lea.vmem [#allocation3], %s605
        %877 = vst [vmem:[%s876] sm:$0xff] %v845
        %878 = vst [vmem:[%s876 + $0x8] sm:$0xff] %v848
      $region60: #{prior_bernoulli_stbp_forward.1} parent=47 // pred_fallthru
        _
      %p879 = scmp.eq.s32.totalorder %s22, 2
      // Predicated region
      $region65: #{prior_bernoulli_stbp_forward.1} parent=47 // pred_check
        %p880 = pneg %p879
      $region66: #{prior_bernoulli_stbp_forward.1} parent=47 // pred_check_branch
        %882 = sbr.rel (%p880) target = $region68
      $region67: #{prior_bernoulli_stbp_forward.1} parent=47 // pred_region
        %v883 = vld [vmem:[#allocation9] sm:$0x3]
        %v884 = vmul.f32 %v883, 0.0625
        %v885 = vmul.f32 %v884, %v884
        %v887 = vrot.slane %v885, 7
        %v889 = vsub.f32 %v884, %v887
        %v890 = vmax.f32 %v889, 0.0
        %v891 = vld [vmem:[%s4] sm:$0x1]
        %v892 = vld [vmem:[%s4 + $0x1] sm:$0x1]
        %v893 = vmul.f32 %v891, 0.4
        %v894 = vadd.f32 %v890, 1e-05
        %v895 = vrsqrt.pop %v894
        %v897 = vrot.slane %v895, 1
        %v899 = vmul.f32 %v893, %v897
        %v900 = vmul.f32 %v884, %v899
        %v901 = vsub.f32 %v892, %v900
        %s902 = smul.u32 %s23, 16
        %s903 = scalar_lea.vmem [#allocation3], %s902
        %v904 = vld [vmem:[%s903] sm:$0x3]
        %v905 = vlaneseq
        %v906 = vshrl.u32 %v905, 7
        %v907 = vsub.s32 0, %v906
        %v908 = vrot.slane %v899, %v907
        %v909 = vmul.f32 %v904, %v908
        %v910 = vlaneseq
        %v911 = vshrl.u32 %v910, 7
        %v912 = vsub.s32 0, %v911
        %v913 = vrot.slane %v901, %v912
        %v914 = vadd.f32 %v909, %v913
        %v915 = vadd.f32 %v914, 0.0
        %vm916 = vcmp.gt.f32.partialorder %v915, 0.2
        %v917 = vsel %vm916, 1, 0
        %v918 = vcvt.s32.f32 %v917
        %v919 = vpack.c.bf16 %v918, %v918
        %920 = vst [vmem:[#allocation7] sm:$0x1] %v919
        %v921 = vld [vmem:[%s903 + $0x2] sm:$0x3]
        %v922 = vmul.f32 %v915, 0.25
        %v923 = vsub.f32 1.0, %v918
        %v924 = vmul.f32 %v922, %v923
        %v925 = vmul.f32 %v921, %v908
        %v926 = vadd.f32 %v925, %v913
        %v927 = vadd.f32 %v924, %v926
        %vm928 = vcmp.gt.f32.partialorder %v927, 0.2
        %v929 = vsel %vm928, 1, 0
        %v930 = vcvt.s32.f32 %v929
        %v931 = vpack.c.bf16 %v930, %v930
        %v933 = vunpack.c.l.b16 %v931
        %v934 = vpack.c.b16 %v933, %v933
        %v935 = vrot.slane %v934, 7
        %937 = vst [vmem:[#allocation7] sm:$0x2] %v935
        %v938 = vld [vmem:[%s903 + $0x4] sm:$0x3]
        %v939 = vmul.f32 %v927, 0.25
        %v940 = vsub.f32 1.0, %v930
        %v941 = vmul.f32 %v939, %v940
        %v942 = vmul.f32 %v938, %v908
        %v943 = vadd.f32 %v942, %v913
        %v944 = vadd.f32 %v941, %v943
        %vm945 = vcmp.gt.f32.partialorder %v944, 0.2
        %v946 = vsel %vm945, 1, 0
        %v947 = vcvt.s32.f32 %v946
        %v948 = vpack.c.bf16 %v947, %v947
        %v950 = vunpack.c.l.b16 %v948
        %v951 = vpack.c.b16 %v950, %v950
        %v952 = vrot.slane %v951, 6
        %954 = vst [vmem:[#allocation7] sm:$0x4] %v952
        %v955 = vld [vmem:[%s903 + $0x6] sm:$0x3]
        %v956 = vmul.f32 %v944, 0.25
        %v957 = vsub.f32 1.0, %v947
        %v958 = vmul.f32 %v956, %v957
        %v959 = vmul.f32 %v955, %v908
        %v960 = vadd.f32 %v959, %v913
        %v961 = vadd.f32 %v958, %v960
        %vm962 = vcmp.gt.f32.partialorder %v961, 0.2
        %v963 = vsel %vm962, 1, 0
        %v964 = vcvt.s32.f32 %v963
        %v965 = vpack.c.bf16 %v964, %v964
        %v967 = vunpack.c.l.b16 %v965
        %v968 = vpack.c.b16 %v967, %v967
        %v969 = vrot.slane %v968, 5
        %971 = vst [vmem:[#allocation7] sm:$0x8] %v969
        %v972 = vld [vmem:[%s903 + $0x8] sm:$0x3]
        %v973 = vmul.f32 %v961, 0.25
        %v974 = vsub.f32 1.0, %v964
        %v975 = vmul.f32 %v973, %v974
        %v976 = vmul.f32 %v972, %v908
        %v977 = vadd.f32 %v976, %v913
        %v978 = vadd.f32 %v975, %v977
        %vm979 = vcmp.gt.f32.partialorder %v978, 0.2
        %v980 = vsel %vm979, 1, 0
        %v981 = vcvt.s32.f32 %v980
        %v982 = vpack.c.bf16 %v981, %v981
        %983 = vst [vmem:[#allocation7 + $0x4] sm:$0x1] %v982
        %v984 = vld [vmem:[%s903 + $0xa] sm:$0x3]
        %v985 = vmul.f32 %v978, 0.25
        %v986 = vsub.f32 1.0, %v981
        %v987 = vmul.f32 %v985, %v986
        %v988 = vmul.f32 %v984, %v908
        %v989 = vadd.f32 %v988, %v913
        %v990 = vadd.f32 %v987, %v989
        %vm991 = vcmp.gt.f32.partialorder %v990, 0.2
        %v992 = vsel %vm991, 1, 0
        %v993 = vcvt.s32.f32 %v992
        %v994 = vpack.c.bf16 %v993, %v993
        %v996 = vunpack.c.l.b16 %v994
        %v997 = vpack.c.b16 %v996, %v996
        %v998 = vrot.slane %v997, 7
        %1000 = vst [vmem:[#allocation7 + $0x4] sm:$0x2] %v998
        %v1001 = vld [vmem:[%s903 + $0xc] sm:$0x3]
        %v1002 = vmul.f32 %v990, 0.25
        %v1003 = vsub.f32 1.0, %v993
        %v1004 = vmul.f32 %v1002, %v1003
        %v1005 = vmul.f32 %v1001, %v908
        %v1006 = vadd.f32 %v1005, %v913
        %v1007 = vadd.f32 %v1004, %v1006
        %vm1008 = vcmp.gt.f32.partialorder %v1007, 0.2
        %v1009 = vsel %vm1008, 1, 0
        %v1010 = vcvt.s32.f32 %v1009
        %v1011 = vpack.c.bf16 %v1010, %v1010
        %v1013 = vunpack.c.l.b16 %v1011
        %v1014 = vpack.c.b16 %v1013, %v1013
        %v1015 = vrot.slane %v1014, 6
        %1017 = vst [vmem:[#allocation7 + $0x4] sm:$0x4] %v1015
        %v1018 = vld [vmem:[%s903 + $0xe] sm:$0x3]
        %v1019 = vmul.f32 %v1007, 0.25
        %v1020 = vsub.f32 1.0, %v1010
        %v1021 = vmul.f32 %v1019, %v1020
        %v1022 = vmul.f32 %v1018, %v908
        %v1023 = vadd.f32 %v1022, %v913
        %v1024 = vadd.f32 %v1021, %v1023
        %vm1025 = vcmp.gt.f32.partialorder %v1024, 0.2
        %v1026 = vsel %vm1025, 1, 0
        %v1027 = vcvt.s32.f32 %v1026
        %v1028 = vpack.c.bf16 %v1027, %v1027
        %v1030 = vunpack.c.l.b16 %v1028
        %v1031 = vpack.c.b16 %v1030, %v1030
        %v1032 = vrot.slane %v1031, 5
        %1034 = vst [vmem:[#allocation7 + $0x4] sm:$0x8] %v1032
        %v1035 = vld [vmem:[#allocation7] sm:$0xf]
        %v1036 = vld [vmem:[#allocation7 + $0x4] sm:$0xf]
        %v1037 = vld [vmem:[%s5] sm:$0xff]
        %v1038 = vld [vmem:[%s5 + $0x8] sm:$0xf]
        %v1039 = vld [vmem:[%s5 + $0xc] sm:$0xff]
        %v1040 = vld [vmem:[%s5 + $0x14] sm:$0xf]
        %v1041 = vld [vmem:[%s5 + $0x18] sm:$0xff]
        %v1042 = vld [vmem:[%s5 + $0x20] sm:$0xf]
        %v1043 = vld [vmem:[%s5 + $0x24] sm:$0xff]
        %v1044 = vld [vmem:[%s5 + $0x2c] sm:$0xf]
        %v1045 = vld [vmem:[%s5 + $0x30] sm:$0xff]
        %v1046 = vld [vmem:[%s5 + $0x38] sm:$0xf]
        %v1047 = vld [vmem:[%s5 + $0x3c] sm:$0xff]
        %v1048 = vld [vmem:[%s5 + $0x44] sm:$0xf]
        %v1049 = vld [vmem:[%s5 + $0x48] sm:$0xff]
        %v1050 = vld [vmem:[%s5 + $0x50] sm:$0xf]
        %v1051 = vld [vmem:[%s5 + $0x54] sm:$0xff]
        %v1052 = vld [vmem:[%s5 + $0x5c] sm:$0xf]
        %v1053 = vld [vmem:[%s5 + $0x60] sm:$0xff]
        %v1054 = vld [vmem:[%s5 + $0x68] sm:$0xf]
        %v1055 = vld [vmem:[%s5 + $0x6c] sm:$0xff]
        %v1056 = vld [vmem:[%s5 + $0x74] sm:$0xf]
        %v1057 = vld [vmem:[%s5 + $0x78] sm:$0xff]
        %v1058 = vld [vmem:[%s5 + $0x80] sm:$0xf]
        %v1059 = vld [vmem:[%s5 + $0x84] sm:$0xff]
        %v1060 = vld [vmem:[%s5 + $0x8c] sm:$0xf]
        %v1061 = vld [vmem:[%s5 + $0x90] sm:$0xff]
        %v1062 = vld [vmem:[%s5 + $0x98] sm:$0xf]
        %v1063 = vld [vmem:[%s5 + $0x9c] sm:$0xff]
        %v1064 = vld [vmem:[%s5 + $0xa4] sm:$0xf]
        %v1065 = vld [vmem:[%s5 + $0xa8] sm:$0xff]
        %v1066 = vld [vmem:[%s5 + $0xb0] sm:$0xf]
        %v1067 = vld [vmem:[%s5 + $0xb4] sm:$0xff]
        %v1068 = vld [vmem:[%s5 + $0xbc] sm:$0xf]
        %v1071 = vunpack.c.l.b16 %v1035
        %v1072 = vunpack.c.l.b16 %v1036
        %v1073 = vpack.c.b16 %v1072, %v1071
        %v1107 = vunpack.c.l.b16 %v1037
        %v1108 = vunpack.c.h.b16 %v1037
        %v1109 = vunpack.c.l.b16 %v1038
        %v1110 = vunpack.c.l.b16 %v1039
        %v1111 = vunpack.c.h.b16 %v1039
        %v1112 = vunpack.c.l.b16 %v1040
        %v1113 = vunpack.c.l.b16 %v1041
        %v1114 = vunpack.c.h.b16 %v1041
        %v1115 = vunpack.c.l.b16 %v1042
        %v1116 = vunpack.c.l.b16 %v1043
        %v1117 = vunpack.c.h.b16 %v1043
        %v1118 = vunpack.c.l.b16 %v1044
        %v1119 = vunpack.c.l.b16 %v1045
        %v1120 = vunpack.c.h.b16 %v1045
        %v1121 = vunpack.c.l.b16 %v1046
        %v1122 = vunpack.c.l.b16 %v1047
        %v1123 = vunpack.c.h.b16 %v1047
        %v1124 = vunpack.c.l.b16 %v1048
        %v1125 = vunpack.c.l.b16 %v1049
        %v1126 = vunpack.c.h.b16 %v1049
        %v1127 = vunpack.c.l.b16 %v1050
        %v1128 = vunpack.c.l.b16 %v1051
        %v1129 = vunpack.c.h.b16 %v1051
        %v1130 = vunpack.c.l.b16 %v1052
        %v1131 = vunpack.c.l.b16 %v1053
        %v1132 = vunpack.c.h.b16 %v1053
        %v1133 = vunpack.c.l.b16 %v1054
        %v1134 = vunpack.c.l.b16 %v1055
        %v1135 = vunpack.c.h.b16 %v1055
        %v1136 = vunpack.c.l.b16 %v1056
        %v1137 = vunpack.c.l.b16 %v1057
        %v1138 = vunpack.c.h.b16 %v1057
        %v1139 = vunpack.c.l.b16 %v1058
        %v1140 = vunpack.c.l.b16 %v1059
        %v1141 = vunpack.c.h.b16 %v1059
        %v1142 = vunpack.c.l.b16 %v1060
        %v1143 = vunpack.c.l.b16 %v1061
        %v1144 = vunpack.c.h.b16 %v1061
        %v1145 = vunpack.c.l.b16 %v1062
        %v1146 = vunpack.c.l.b16 %v1063
        %v1147 = vunpack.c.h.b16 %v1063
        %v1148 = vunpack.c.l.b16 %v1064
        %v1149 = vunpack.c.l.b16 %v1065
        %v1150 = vunpack.c.h.b16 %v1065
        %v1151 = vunpack.c.l.b16 %v1066
        %v1152 = vunpack.c.l.b16 %v1067
        %v1153 = vunpack.c.h.b16 %v1067
        %v1154 = vunpack.c.l.b16 %v1068
        %v1155 = vpack.c.b16 %v1110, %v1107
        %v1156 = vpack.c.b16 %v1111, %v1108
        %v1157 = vpack.c.b16 %v1112, %v1109
        %v1158 = vpack.c.b16 %v1116, %v1113
        %v1159 = vpack.c.b16 %v1117, %v1114
        %v1160 = vpack.c.b16 %v1118, %v1115
        %v1161 = vpack.c.b16 %v1122, %v1119
        %v1162 = vpack.c.b16 %v1123, %v1120
        %v1163 = vpack.c.b16 %v1124, %v1121
        %v1164 = vpack.c.b16 %v1128, %v1125
        %v1165 = vpack.c.b16 %v1129, %v1126
        %v1166 = vpack.c.b16 %v1130, %v1127
        %v1167 = vpack.c.b16 %v1134, %v1131
        %v1168 = vpack.c.b16 %v1135, %v1132
        %v1169 = vpack.c.b16 %v1136, %v1133
        %v1170 = vpack.c.b16 %v1140, %v1137
        %v1171 = vpack.c.b16 %v1141, %v1138
        %v1172 = vpack.c.b16 %v1142, %v1139
        %v1173 = vpack.c.b16 %v1146, %v1143
        %v1174 = vpack.c.b16 %v1147, %v1144
        %v1175 = vpack.c.b16 %v1148, %v1145
        %v1176 = vpack.c.b16 %v1152, %v1149
        %v1177 = vpack.c.b16 %v1153, %v1150
        %v1178 = vpack.c.b16 %v1154, %v1151
        %1203 = vmatprep.subr.bf16.mxu0 %v1177
        %1204 = vmatpush1.bf16.msra.mxu0 %v1176
        %1205 = vmatprep.subr.bf16.mxu0 %v1174
        %1206 = vmatpush1.bf16.msra.mxu0 %v1173
        %1207 = vmatprep.subr.bf16.mxu0 %v1171
        %1208 = vmatpush1.bf16.msra.mxu0 %v1170
        %1209 = vmatprep.subr.bf16.mxu0 %v1168
        %1210 = vmatpush1.bf16.msra.mxu0 %v1167
        %1211 = vmatprep.subr.bf16.mxu0 %v1165
        %1212 = vmatpush1.bf16.msra.mxu0 %v1164
        %1213 = vmatprep.subr.bf16.mxu0 %v1162
        %1214 = vmatpush1.bf16.msra.mxu0 %v1161
        %1215 = vmatprep.subr.bf16.mxu0 %v1159
        %1216 = vmatpush1.bf16.msra.mxu0 %v1158
        %1217 = vmatprep.subr.bf16.mxu0 %v1156
        %1218 = vmatpush1.bf16.msra.mxu0 %v1155
        %1219 = vmatprep.subr.bf16.mxu0 0
        %1220 = vmatpush2.bf16.msra.mxu0 0
        %1221 = vmatprep.subr.bf16.mxu0 0
        %1222 = vmatpush2.bf16.msra.mxu0 0
        %1223 = vmatprep.subr.bf16.mxu0 0
        %1224 = vmatpush2.bf16.msra.mxu0 0
        %1225 = vmatprep.subr.bf16.mxu0 0
        %1226 = vmatpush2.bf16.msra.mxu0 0
        %1227 = vmatprep.subr.bf16.mxu0 0
        %1228 = vmatpush2.bf16.msra.mxu0 0
        %1229 = vmatprep.subr.bf16.mxu0 0
        %1230 = vmatpush2.bf16.msra.mxu0 0
        %1231 = vmatprep.subr.bf16.mxu0 0
        %1232 = vmatpush2.bf16.msra.mxu0 0
        %1233 = vmatprep.subr.bf16.mxu0 0
        %1234 = vmatpush2.bf16.msra.mxu0 0
        %1235 = vmatprep.mubr.bf16.mxu0 0
        %1236 = vmatmul.mubr.bf16.gmra.mxu0 %v1073
        %v1237 = vpop.f32.mrf.mxu0
        %v1238 = vadd.f32 0.0, %v1237
        %v1239 = vpop.f32.mrf.mxu0
        %v1240 = vadd.f32 0.0, %v1239
        %v1241 = vpop.f32.mrf.mxu0
        %v1242 = vadd.f32 0.0, %v1241
        %v1243 = vpop.f32.mrf.mxu0
        %v1244 = vadd.f32 0.0, %v1243
        %1245 = vdwg.mxu0
        %1246 = vmatprep.subr.bf16.mxu0 0
        %1247 = vmatpush1.bf16.msra.mxu0 %v1178
        %1248 = vmatprep.subr.bf16.mxu0 0
        %1249 = vmatpush1.bf16.msra.mxu0 %v1175
        %1250 = vmatprep.subr.bf16.mxu0 0
        %1251 = vmatpush1.bf16.msra.mxu0 %v1172
        %1252 = vmatprep.subr.bf16.mxu0 0
        %1253 = vmatpush1.bf16.msra.mxu0 %v1169
        %1254 = vmatprep.subr.bf16.mxu0 0
        %1255 = vmatpush1.bf16.msra.mxu0 %v1166
        %1256 = vmatprep.subr.bf16.mxu0 0
        %1257 = vmatpush1.bf16.msra.mxu0 %v1163
        %1258 = vmatprep.subr.bf16.mxu0 0
        %1259 = vmatpush1.bf16.msra.mxu0 %v1160
        %1260 = vmatprep.subr.bf16.mxu0 0
        %1261 = vmatpush1.bf16.msra.mxu0 %v1157
        %1262 = vmatprep.subr.bf16.mxu0 0
        %1263 = vmatpush2.bf16.msra.mxu0 0
        %1264 = vmatprep.subr.bf16.mxu0 0
        %1265 = vmatpush2.bf16.msra.mxu0 0
        %1266 = vmatprep.subr.bf16.mxu0 0
        %1267 = vmatpush2.bf16.msra.mxu0 0
        %1268 = vmatprep.subr.bf16.mxu0 0
        %1269 = vmatpush2.bf16.msra.mxu0 0
        %1270 = vmatprep.subr.bf16.mxu0 0
        %1271 = vmatpush2.bf16.msra.mxu0 0
        %1272 = vmatprep.subr.bf16.mxu0 0
        %1273 = vmatpush2.bf16.msra.mxu0 0
        %1274 = vmatprep.subr.bf16.mxu0 0
        %1275 = vmatpush2.bf16.msra.mxu0 0
        %1276 = vmatprep.subr.bf16.mxu0 0
        %1277 = vmatpush2.bf16.msra.mxu0 0
        %1278 = vmatprep.mubr.bf16.mxu0 0
        %1279 = vmatmul.mubr.bf16.gmra.mxu0 %v1073
        %v1280 = vpop.f32.mrf.mxu0
        %v1281 = vadd.f32 0.0, %v1280
        %v1282 = vpop.f32.mrf.mxu0
        %v1283 = vpop.f32.mrf.mxu0
        %v1284 = vadd.f32 0.0, %v1283
        %v1285 = vpop.f32.mrf.mxu0
        %1286 = vdwg.mxu0
        // Predicated region
        $region69: #{prior_bernoulli_stbp_forward.1} parent=67 // pred_check
          %p1287 = pneg %p310
        $region70: #{prior_bernoulli_stbp_forward.1} parent=67 // pred_check_branch
          %1289 = sbr.rel (%p1287) target = $region72
        $region71: #{prior_bernoulli_stbp_forward.1} parent=67 // pred_region
          %1290 = vst [vmem:[#allocation10] sm:$0x3f] 0.0
        $region72: #{prior_bernoulli_stbp_forward.1} parent=67 // pred_fallthru
          _
        %v1291 = vadd.f32 %v1238, %v1242
        %v1292 = vrot.slane %v1291, 4
        %v1293 = vadd.f32 %v1291, %v1292
        %v1294 = vrot.slane %v1293, 2
        %v1295 = vadd.f32 %v1293, %v1294
        %v1296 = vrot.slane %v1295, 1
        %v1297 = vadd.f32 %v1295, %v1296
        %v1298 = vadd.f32 %v1240, %v1244
        %v1299 = vrot.slane %v1298, 4
        %v1300 = vadd.f32 %v1298, %v1299
        %v1301 = vrot.slane %v1300, 2
        %v1302 = vadd.f32 %v1300, %v1301
        %v1303 = vrot.slane %v1302, 1
        %v1304 = vadd.f32 %v1302, %v1303
        %v1305 = vadd.f32 %v1281, %v1284
        %v1306 = vrot.slane %v1305, 4
        %v1307 = vadd.f32 %v1305, %v1306
        %v1308 = vrot.slane %v1307, 2
        %v1309 = vadd.f32 %v1307, %v1308
        %v1310 = vrot.slane %v1309, 1
        %v1311 = vadd.f32 %v1309, %v1310
        %v1312 = vmul.f32 %v1238, %v1238
        %v1313 = vmul.f32 %v1240, %v1240
        %v1314 = vmul.f32 %v1281, %v1281
        %v1315 = vmul.f32 %v1242, %v1242
        %v1316 = vmul.f32 %v1244, %v1244
        %v1317 = vmul.f32 %v1284, %v1284
        %v1318 = vadd.f32 %v1312, %v1315
        %v1319 = vrot.slane %v1318, 4
        %v1320 = vadd.f32 %v1318, %v1319
        %v1321 = vrot.slane %v1320, 2
        %v1322 = vadd.f32 %v1320, %v1321
        %v1323 = vrot.slane %v1322, 1
        %v1324 = vadd.f32 %v1322, %v1323
        %v1325 = vadd.f32 %v1313, %v1316
        %v1326 = vrot.slane %v1325, 4
        %v1327 = vadd.f32 %v1325, %v1326
        %v1328 = vrot.slane %v1327, 2
        %v1329 = vadd.f32 %v1327, %v1328
        %v1330 = vrot.slane %v1329, 1
        %v1331 = vadd.f32 %v1329, %v1330
        %v1332 = vadd.f32 %v1314, %v1317
        %v1333 = vrot.slane %v1332, 4
        %v1334 = vadd.f32 %v1332, %v1333
        %v1335 = vrot.slane %v1334, 2
        %v1336 = vadd.f32 %v1334, %v1335
        %v1337 = vrot.slane %v1336, 1
        %v1338 = vadd.f32 %v1336, %v1337
        %v1339 = vld [vmem:[#allocation10] sm:$0x3f]
        %vm1340 = vcmask 1040384
        %v1341 = vsel %vm1340, %v1297, %v1324
        %v1342 = vsel %vm1340, %v1304, %v1331
        %v1343 = vsel %vm1340, %v1311, %v1338
        %v1347 = vcombine.low %v1341, %v1342
        %v1349 = vunpack.c.l.s4 1983009808
        %v1350 = vunpack.c.0.s8 %v1349
        %v1351 = vlaneseq
        %v1352 = vshrl.u32 %v1351, 7
        %v1353 = vsub.s32 %v1350, %v1352
        %v1354 = vrot.slane %v1347, %v1353
        %v1356 = vunpack.c.l.s4 1983009808
        %v1357 = vunpack.c.0.s8 %v1356
        %v1358 = vlaneseq
        %v1359 = vshrl.u32 %v1358, 7
        %v1360 = vsub.s32 %v1357, %v1359
        %v1361 = vrot.slane %v1343, %v1360
        %v1362 = vcombine.low %v1354, %v1361
        %v1364 = vadd.f32 %v1339, %v1362
        %1365 = vst [vmem:[#allocation10] sm:$0x3f] %v1364
        %s1366 = smul.u32 %s23, 6
        %s1367 = smul.addr %s1366, 8
        %s1368 = scalar_lea.vmem [#allocation4], %s1367
        %1369 = vst [vmem:[%s1368] sm:$0xff] %v1238
        %1370 = vst [vmem:[%s1368 + $0x8] sm:$0xff] %v1240
        %1371 = vst [vmem:[%s1368 + $0x10] sm:$0xff] %v1281
        %1372 = vst [vmem:[%s1368 + $0x18] sm:$0xff] %v1242
        %1373 = vst [vmem:[%s1368 + $0x20] sm:$0xff] %v1244
        %1374 = vst [vmem:[%s1368 + $0x28] sm:$0xff] %v1284
      $region68: #{prior_bernoulli_stbp_forward.1} parent=47 // pred_fallthru
        _
      %p1375 = scmp.eq.s32.totalorder %s22, 3
      // Predicated region
      $region73: #{prior_bernoulli_stbp_forward.1} parent=47 // pred_check
        %p1376 = pneg %p1375
      $region74: #{prior_bernoulli_stbp_forward.1} parent=47 // pred_check_branch
        %1378 = sbr.rel (%p1376) target = $region76
      $region75: #{prior_bernoulli_stbp_forward.1} parent=47 // pred_region
        %v1379 = vld [vmem:[#allocation10] sm:$0x3f]
        %v1380 = vmul.f32 %v1379, 0.0625
        %v1381 = vmul.f32 %v1380, %v1380
        %v1383 = vrot.slane %v1381, 7
        %v1385 = vsub.f32 %v1380, %v1383
        %v1386 = vmax.f32 %v1385, 0.0
        %v1387 = vld [vmem:[%s6] ss:$2 sm:$0x7]
        %s1388 = scalar_lea.vmem %s6, 1
        %v1389 = vld [vmem:[%s1388] ss:$2 sm:$0x7]
        %v1390 = vmul.f32 %v1387, 0.4
        %v1391 = vadd.f32 %v1386, 1e-05
        %v1392 = vrsqrt.pop %v1391
        %v1395 = vunpack.c.l.s4 1966171168
        %v1396 = vunpack.c.0.s8 %v1395
        %v1397 = vlaneseq
        %v1398 = vshrl.u32 %v1397, 7
        %v1399 = vsub.s32 %v1396, %v1398
        %v1400 = vrot.slane %v1392, %v1399
        %v1401 = vcombine.high %v1400, %v1400
        %v1403 = vmul.f32 %v1390, %v1401
        %v1406 = vunpack.c.l.s4 857870592
        %v1407 = vunpack.c.0.s8 %v1406
        %v1408 = vlaneseq
        %v1409 = vshrl.u32 %v1408, 7
        %v1410 = vsub.s32 %v1407, %v1409
        %v1411 = vrot.slane %v1403, %v1410
        %v1413 = vmul.f32 %v1380, %v1411
        %v1416 = vunpack.c.l.s4 1966171168
        %v1417 = vunpack.c.0.s8 %v1416
        %v1418 = vlaneseq
        %v1419 = vshrl.u32 %v1418, 7
        %v1420 = vsub.s32 %v1417, %v1419
        %v1421 = vrot.slane %v1413, %v1420
        %v1423 = vsub.f32 %v1389, %v1421
        %s1424 = smul.u32 %s23, 6
        %s1425 = smul.addr %s1424, 8
        %s1426 = scalar_lea.vmem [#allocation4], %s1425
        %v1427 = vld [vmem:[%s1426] sm:$0x3]
        %v1428 = vld [vmem:[%s1426 + $0x8] sm:$0x3]
        %v1429 = vld [vmem:[%s1426 + $0x10] sm:$0x3]
        %v1430 = vlaneseq
        %v1431 = vshrl.u32 %v1430, 7
        %v1432 = vsub.s32 0, %v1431
        %v1433 = vrot.slane %v1403, %v1432
        %v1434 = vlaneseq
        %v1435 = vshrl.u32 %v1434, 7
        %v1436 = vsub.s32 1, %v1435
        %v1437 = vrot.slane %v1403, %v1436
        %v1438 = vlaneseq
        %v1439 = vshrl.u32 %v1438, 7
        %v1440 = vsub.s32 2, %v1439
        %v1441 = vrot.slane %v1403, %v1440
        %v1445 = vmul.f32 %v1427, %v1433
        %v1446 = vmul.f32 %v1428, %v1437
        %v1447 = vmul.f32 %v1429, %v1441
        %v1449 = vlaneseq
        %v1450 = vshrl.u32 %v1449, 7
        %v1451 = vsub.s32 0, %v1450
        %v1452 = vrot.slane %v1423, %v1451
        %v1453 = vlaneseq
        %v1454 = vshrl.u32 %v1453, 7
        %v1455 = vsub.s32 1, %v1454
        %v1456 = vrot.slane %v1423, %v1455
        %v1457 = vlaneseq
        %v1458 = vshrl.u32 %v1457, 7
        %v1459 = vsub.s32 2, %v1458
        %v1460 = vrot.slane %v1423, %v1459
        %v1464 = vadd.f32 %v1445, %v1452
        %v1465 = vadd.f32 %v1446, %v1456
        %v1466 = vadd.f32 %v1447, %v1460
        %v1467 = vadd.f32 %v1464, 0.0
        %v1468 = vadd.f32 %v1465, 0.0
        %v1469 = vadd.f32 %v1466, 0.0
        %vm1470 = vcmp.gt.f32.partialorder %v1467, 0.2
        %vm1471 = vcmp.gt.f32.partialorder %v1468, 0.2
        %vm1472 = vcmp.gt.f32.partialorder %v1469, 0.2
        %v1473 = vsel %vm1470, 1, 0
        %v1474 = vsel %vm1471, 1, 0
        %v1475 = vsel %vm1472, 1, 0
        %v1476 = vcvt.s32.f32 %v1473
        %v1477 = vcvt.s32.f32 %v1474
        %v1478 = vcvt.s32.f32 %v1475
        %v1482 = vcombine.low %v1476, %v1477
        %v1484 = vunpack.c.l.s4 1983009808
        %v1485 = vunpack.c.0.s8 %v1484
        %v1486 = vlaneseq
        %v1487 = vshrl.u32 %v1486, 7
        %v1488 = vsub.s32 %v1485, %v1487
        %v1489 = vrot.slane %v1482, %v1488
        %v1491 = vunpack.c.l.s4 1983009808
        %v1492 = vunpack.c.0.s8 %v1491
        %v1493 = vlaneseq
        %v1494 = vshrl.u32 %v1493, 7
        %v1495 = vsub.s32 %v1492, %v1494
        %v1496 = vrot.slane %v1478, %v1495
        %v1497 = vcombine.low %v1489, %v1496
        %1499 = vst [vmem:[%s306] sm:$0x3f] %v1497
        %v1500 = vld [vmem:[%s1426] sm:$0xc]
        %v1501 = vld [vmem:[%s1426 + $0x8] sm:$0xc]
        %v1502 = vld [vmem:[%s1426 + $0x10] sm:$0xc]
        %v1503 = vmul.f32 %v1467, 0.25
        %v1504 = vmul.f32 %v1468, 0.25
        %v1505 = vmul.f32 %v1469, 0.25
        %v1506 = vsub.f32 1.0, %v1476
        %v1507 = vsub.f32 1.0, %v1477
        %v1508 = vsub.f32 1.0, %v1478
        %v1509 = vmul.f32 %v1503, %v1506
        %v1510 = vmul.f32 %v1504, %v1507
        %v1511 = vmul.f32 %v1505, %v1508
        %v1512 = vmul.f32 %v1500, %v1433
        %v1513 = vmul.f32 %v1501, %v1437
        %v1514 = vmul.f32 %v1502, %v1441
        %v1515 = vadd.f32 %v1512, %v1452
        %v1516 = vadd.f32 %v1513, %v1456
        %v1517 = vadd.f32 %v1514, %v1460
        %v1521 = vrot.slane %v1515, 2
        %v1522 = vrot.slane %v1516, 2
        %v1523 = vrot.slane %v1517, 2
        %v1527 = vadd.f32 %v1509, %v1521
        %v1528 = vadd.f32 %v1510, %v1522
        %v1529 = vadd.f32 %v1511, %v1523
        %vm1530 = vcmp.gt.f32.partialorder %v1527, 0.2
        %vm1531 = vcmp.gt.f32.partialorder %v1528, 0.2
        %vm1532 = vcmp.gt.f32.partialorder %v1529, 0.2
        %v1533 = vsel %vm1530, 1, 0
        %v1534 = vsel %vm1531, 1, 0
        %v1535 = vsel %vm1532, 1, 0
        %v1536 = vcvt.s32.f32 %v1533
        %v1537 = vcvt.s32.f32 %v1534
        %v1538 = vcvt.s32.f32 %v1535
        %v1542 = vcombine.low %v1536, %v1537
        %v1544 = vunpack.c.l.s4 1983009808
        %v1545 = vunpack.c.0.s8 %v1544
        %v1546 = vlaneseq
        %v1547 = vshrl.u32 %v1546, 7
        %v1548 = vsub.s32 %v1545, %v1547
        %v1549 = vrot.slane %v1542, %v1548
        %v1551 = vunpack.c.l.s4 1983009808
        %v1552 = vunpack.c.0.s8 %v1551
        %v1553 = vlaneseq
        %v1554 = vshrl.u32 %v1553, 7
        %v1555 = vsub.s32 %v1552, %v1554
        %v1556 = vrot.slane %v1538, %v1555
        %v1557 = vcombine.low %v1549, %v1556
        %s1559 = scalar_lea.vmem %s306, 6
        %1560 = vst [vmem:[%s1559] sm:$0x3f] %v1557
        %v1561 = vld [vmem:[%s1426] sm:$0x30]
        %v1562 = vld [vmem:[%s1426 + $0x8] sm:$0x30]
        %v1563 = vld [vmem:[%s1426 + $0x10] sm:$0x30]
        %v1564 = vmul.f32 %v1527, 0.25
        %v1565 = vmul.f32 %v1528, 0.25
        %v1566 = vmul.f32 %v1529, 0.25
        %v1567 = vsub.f32 1.0, %v1536
        %v1568 = vsub.f32 1.0, %v1537
        %v1569 = vsub.f32 1.0, %v1538
        %v1570 = vmul.f32 %v1564, %v1567
        %v1571 = vmul.f32 %v1565, %v1568
        %v1572 = vmul.f32 %v1566, %v1569
        %v1573 = vmul.f32 %v1561, %v1433
        %v1574 = vmul.f32 %v1562, %v1437
        %v1575 = vmul.f32 %v1563, %v1441
        %v1576 = vadd.f32 %v1573, %v1452
        %v1577 = vadd.f32 %v1574, %v1456
        %v1578 = vadd.f32 %v1575, %v1460
        %v1582 = vrot.slane %v1576, 4
        %v1583 = vrot.slane %v1577, 4
        %v1584 = vrot.slane %v1578, 4
        %v1588 = vadd.f32 %v1570, %v1582
        %v1589 = vadd.f32 %v1571, %v1583
        %v1590 = vadd.f32 %v1572, %v1584
        %vm1591 = vcmp.gt.f32.partialorder %v1588, 0.2
        %vm1592 = vcmp.gt.f32.partialorder %v1589, 0.2
        %vm1593 = vcmp.gt.f32.partialorder %v1590, 0.2
        %v1594 = vsel %vm1591, 1, 0
        %v1595 = vsel %vm1592, 1, 0
        %v1596 = vsel %vm1593, 1, 0
        %v1597 = vcvt.s32.f32 %v1594
        %v1598 = vcvt.s32.f32 %v1595
        %v1599 = vcvt.s32.f32 %v1596
        %v1603 = vcombine.low %v1597, %v1598
        %v1605 = vunpack.c.l.s4 1983009808
        %v1606 = vunpack.c.0.s8 %v1605
        %v1607 = vlaneseq
        %v1608 = vshrl.u32 %v1607, 7
        %v1609 = vsub.s32 %v1606, %v1608
        %v1610 = vrot.slane %v1603, %v1609
        %v1612 = vunpack.c.l.s4 1983009808
        %v1613 = vunpack.c.0.s8 %v1612
        %v1614 = vlaneseq
        %v1615 = vshrl.u32 %v1614, 7
        %v1616 = vsub.s32 %v1613, %v1615
        %v1617 = vrot.slane %v1599, %v1616
        %v1618 = vcombine.low %v1610, %v1617
        %s1620 = scalar_lea.vmem %s306, 12
        %1621 = vst [vmem:[%s1620] sm:$0x3f] %v1618
        %v1622 = vld [vmem:[%s1426] sm:$0xc0]
        %v1623 = vld [vmem:[%s1426 + $0x8] sm:$0xc0]
        %v1624 = vld [vmem:[%s1426 + $0x10] sm:$0xc0]
        %v1625 = vmul.f32 %v1588, 0.25
        %v1626 = vmul.f32 %v1589, 0.25
        %v1627 = vmul.f32 %v1590, 0.25
        %v1628 = vsub.f32 1.0, %v1597
        %v1629 = vsub.f32 1.0, %v1598
        %v1630 = vsub.f32 1.0, %v1599
        %v1631 = vmul.f32 %v1625, %v1628
        %v1632 = vmul.f32 %v1626, %v1629
        %v1633 = vmul.f32 %v1627, %v1630
        %v1634 = vmul.f32 %v1622, %v1433
        %v1635 = vmul.f32 %v1623, %v1437
        %v1636 = vmul.f32 %v1624, %v1441
        %v1637 = vadd.f32 %v1634, %v1452
        %v1638 = vadd.f32 %v1635, %v1456
        %v1639 = vadd.f32 %v1636, %v1460
        %v1643 = vrot.slane %v1637, 6
        %v1644 = vrot.slane %v1638, 6
        %v1645 = vrot.slane %v1639, 6
        %v1649 = vadd.f32 %v1631, %v1643
        %v1650 = vadd.f32 %v1632, %v1644
        %v1651 = vadd.f32 %v1633, %v1645
        %vm1652 = vcmp.gt.f32.partialorder %v1649, 0.2
        %vm1653 = vcmp.gt.f32.partialorder %v1650, 0.2
        %vm1654 = vcmp.gt.f32.partialorder %v1651, 0.2
        %v1655 = vsel %vm1652, 1, 0
        %v1656 = vsel %vm1653, 1, 0
        %v1657 = vsel %vm1654, 1, 0
        %v1658 = vcvt.s32.f32 %v1655
        %v1659 = vcvt.s32.f32 %v1656
        %v1660 = vcvt.s32.f32 %v1657
        %v1664 = vcombine.low %v1658, %v1659
        %v1666 = vunpack.c.l.s4 1983009808
        %v1667 = vunpack.c.0.s8 %v1666
        %v1668 = vlaneseq
        %v1669 = vshrl.u32 %v1668, 7
        %v1670 = vsub.s32 %v1667, %v1669
        %v1671 = vrot.slane %v1664, %v1670
        %v1673 = vunpack.c.l.s4 1983009808
        %v1674 = vunpack.c.0.s8 %v1673
        %v1675 = vlaneseq
        %v1676 = vshrl.u32 %v1675, 7
        %v1677 = vsub.s32 %v1674, %v1676
        %v1678 = vrot.slane %v1660, %v1677
        %v1679 = vcombine.low %v1671, %v1678
        %s1681 = scalar_lea.vmem %s306, 18
        %1682 = vst [vmem:[%s1681] sm:$0x3f] %v1679
        %v1683 = vld [vmem:[%s1426 + $0x18] sm:$0x3]
        %v1684 = vld [vmem:[%s1426 + $0x20] sm:$0x3]
        %v1685 = vld [vmem:[%s1426 + $0x28] sm:$0x3]
        %v1686 = vmul.f32 %v1649, 0.25
        %v1687 = vmul.f32 %v1650, 0.25
        %v1688 = vmul.f32 %v1651, 0.25
        %v1689 = vsub.f32 1.0, %v1658
        %v1690 = vsub.f32 1.0, %v1659
        %v1691 = vsub.f32 1.0, %v1660
        %v1692 = vmul.f32 %v1686, %v1689
        %v1693 = vmul.f32 %v1687, %v1690
        %v1694 = vmul.f32 %v1688, %v1691
        %v1695 = vmul.f32 %v1683, %v1433
        %v1696 = vmul.f32 %v1684, %v1437
        %v1697 = vmul.f32 %v1685, %v1441
        %v1698 = vadd.f32 %v1695, %v1452
        %v1699 = vadd.f32 %v1696, %v1456
        %v1700 = vadd.f32 %v1697, %v1460
        %v1701 = vadd.f32 %v1692, %v1698
        %v1702 = vadd.f32 %v1693, %v1699
        %v1703 = vadd.f32 %v1694, %v1700
        %vm1704 = vcmp.gt.f32.partialorder %v1701, 0.2
        %vm1705 = vcmp.gt.f32.partialorder %v1702, 0.2
        %vm1706 = vcmp.gt.f32.partialorder %v1703, 0.2
        %v1707 = vsel %vm1704, 1, 0
        %v1708 = vsel %vm1705, 1, 0
        %v1709 = vsel %vm1706, 1, 0
        %v1710 = vcvt.s32.f32 %v1707
        %v1711 = vcvt.s32.f32 %v1708
        %v1712 = vcvt.s32.f32 %v1709
        %v1716 = vcombine.low %v1710, %v1711
        %v1718 = vunpack.c.l.s4 1983009808
        %v1719 = vunpack.c.0.s8 %v1718
        %v1720 = vlaneseq
        %v1721 = vshrl.u32 %v1720, 7
        %v1722 = vsub.s32 %v1719, %v1721
        %v1723 = vrot.slane %v1716, %v1722
        %v1725 = vunpack.c.l.s4 1983009808
        %v1726 = vunpack.c.0.s8 %v1725
        %v1727 = vlaneseq
        %v1728 = vshrl.u32 %v1727, 7
        %v1729 = vsub.s32 %v1726, %v1728
        %v1730 = vrot.slane %v1712, %v1729
        %v1731 = vcombine.low %v1723, %v1730
        %s1733 = scalar_lea.vmem %s306, 24
        %1734 = vst [vmem:[%s1733] sm:$0x3f] %v1731
        %v1735 = vld [vmem:[%s1426 + $0x18] sm:$0xc]
        %v1736 = vld [vmem:[%s1426 + $0x20] sm:$0xc]
        %v1737 = vld [vmem:[%s1426 + $0x28] sm:$0xc]
        %v1738 = vmul.f32 %v1701, 0.25
        %v1739 = vmul.f32 %v1702, 0.25
        %v1740 = vmul.f32 %v1703, 0.25
        %v1741 = vsub.f32 1.0, %v1710
        %v1742 = vsub.f32 1.0, %v1711
        %v1743 = vsub.f32 1.0, %v1712
        %v1744 = vmul.f32 %v1738, %v1741
        %v1745 = vmul.f32 %v1739, %v1742
        %v1746 = vmul.f32 %v1740, %v1743
        %v1747 = vmul.f32 %v1735, %v1433
        %v1748 = vmul.f32 %v1736, %v1437
        %v1749 = vmul.f32 %v1737, %v1441
        %v1750 = vadd.f32 %v1747, %v1452
        %v1751 = vadd.f32 %v1748, %v1456
        %v1752 = vadd.f32 %v1749, %v1460
        %v1756 = vrot.slane %v1750, 2
        %v1757 = vrot.slane %v1751, 2
        %v1758 = vrot.slane %v1752, 2
        %v1762 = vadd.f32 %v1744, %v1756
        %v1763 = vadd.f32 %v1745, %v1757
        %v1764 = vadd.f32 %v1746, %v1758
        %vm1765 = vcmp.gt.f32.partialorder %v1762, 0.2
        %vm1766 = vcmp.gt.f32.partialorder %v1763, 0.2
        %vm1767 = vcmp.gt.f32.partialorder %v1764, 0.2
        %v1768 = vsel %vm1765, 1, 0
        %v1769 = vsel %vm1766, 1, 0
        %v1770 = vsel %vm1767, 1, 0
        %v1771 = vcvt.s32.f32 %v1768
        %v1772 = vcvt.s32.f32 %v1769
        %v1773 = vcvt.s32.f32 %v1770
        %v1777 = vcombine.low %v1771, %v1772
        %v1779 = vunpack.c.l.s4 1983009808
        %v1780 = vunpack.c.0.s8 %v1779
        %v1781 = vlaneseq
        %v1782 = vshrl.u32 %v1781, 7
        %v1783 = vsub.s32 %v1780, %v1782
        %v1784 = vrot.slane %v1777, %v1783
        %v1786 = vunpack.c.l.s4 1983009808
        %v1787 = vunpack.c.0.s8 %v1786
        %v1788 = vlaneseq
        %v1789 = vshrl.u32 %v1788, 7
        %v1790 = vsub.s32 %v1787, %v1789
        %v1791 = vrot.slane %v1773, %v1790
        %v1792 = vcombine.low %v1784, %v1791
        %s1794 = scalar_lea.vmem %s306, 30
        %1795 = vst [vmem:[%s1794] sm:$0x3f] %v1792
        %v1796 = vld [vmem:[%s1426 + $0x18] sm:$0x30]
        %v1797 = vld [vmem:[%s1426 + $0x20] sm:$0x30]
        %v1798 = vld [vmem:[%s1426 + $0x28] sm:$0x30]
        %v1799 = vmul.f32 %v1762, 0.25
        %v1800 = vmul.f32 %v1763, 0.25
        %v1801 = vmul.f32 %v1764, 0.25
        %v1802 = vsub.f32 1.0, %v1771
        %v1803 = vsub.f32 1.0, %v1772
        %v1804 = vsub.f32 1.0, %v1773
        %v1805 = vmul.f32 %v1799, %v1802
        %v1806 = vmul.f32 %v1800, %v1803
        %v1807 = vmul.f32 %v1801, %v1804
        %v1808 = vmul.f32 %v1796, %v1433
        %v1809 = vmul.f32 %v1797, %v1437
        %v1810 = vmul.f32 %v1798, %v1441
        %v1811 = vadd.f32 %v1808, %v1452
        %v1812 = vadd.f32 %v1809, %v1456
        %v1813 = vadd.f32 %v1810, %v1460
        %v1817 = vrot.slane %v1811, 4
        %v1818 = vrot.slane %v1812, 4
        %v1819 = vrot.slane %v1813, 4
        %v1823 = vadd.f32 %v1805, %v1817
        %v1824 = vadd.f32 %v1806, %v1818
        %v1825 = vadd.f32 %v1807, %v1819
        %vm1826 = vcmp.gt.f32.partialorder %v1823, 0.2
        %vm1827 = vcmp.gt.f32.partialorder %v1824, 0.2
        %vm1828 = vcmp.gt.f32.partialorder %v1825, 0.2
        %v1829 = vsel %vm1826, 1, 0
        %v1830 = vsel %vm1827, 1, 0
        %v1831 = vsel %vm1828, 1, 0
        %v1832 = vcvt.s32.f32 %v1829
        %v1833 = vcvt.s32.f32 %v1830
        %v1834 = vcvt.s32.f32 %v1831
        %v1838 = vcombine.low %v1832, %v1833
        %v1840 = vunpack.c.l.s4 1983009808
        %v1841 = vunpack.c.0.s8 %v1840
        %v1842 = vlaneseq
        %v1843 = vshrl.u32 %v1842, 7
        %v1844 = vsub.s32 %v1841, %v1843
        %v1845 = vrot.slane %v1838, %v1844
        %v1847 = vunpack.c.l.s4 1983009808
        %v1848 = vunpack.c.0.s8 %v1847
        %v1849 = vlaneseq
        %v1850 = vshrl.u32 %v1849, 7
        %v1851 = vsub.s32 %v1848, %v1850
        %v1852 = vrot.slane %v1834, %v1851
        %v1853 = vcombine.low %v1845, %v1852
        %s1855 = scalar_lea.vmem %s306, 36
        %1856 = vst [vmem:[%s1855] sm:$0x3f] %v1853
        %v1857 = vld [vmem:[%s1426 + $0x18] sm:$0xc0]
        %v1858 = vld [vmem:[%s1426 + $0x20] sm:$0xc0]
        %v1859 = vld [vmem:[%s1426 + $0x28] sm:$0xc0]
        %v1860 = vmul.f32 %v1823, 0.25
        %v1861 = vmul.f32 %v1824, 0.25
        %v1862 = vmul.f32 %v1825, 0.25
        %v1863 = vsub.f32 1.0, %v1832
        %v1864 = vsub.f32 1.0, %v1833
        %v1865 = vsub.f32 1.0, %v1834
        %v1866 = vmul.f32 %v1860, %v1863
        %v1867 = vmul.f32 %v1861, %v1864
        %v1868 = vmul.f32 %v1862, %v1865
        %v1869 = vmul.f32 %v1857, %v1433
        %v1870 = vmul.f32 %v1858, %v1437
        %v1871 = vmul.f32 %v1859, %v1441
        %v1872 = vadd.f32 %v1869, %v1452
        %v1873 = vadd.f32 %v1870, %v1456
        %v1874 = vadd.f32 %v1871, %v1460
        %v1878 = vrot.slane %v1872, 6
        %v1879 = vrot.slane %v1873, 6
        %v1880 = vrot.slane %v1874, 6
        %v1884 = vadd.f32 %v1866, %v1878
        %v1885 = vadd.f32 %v1867, %v1879
        %v1886 = vadd.f32 %v1868, %v1880
        %vm1887 = vcmp.gt.f32.partialorder %v1884, 0.2
        %vm1888 = vcmp.gt.f32.partialorder %v1885, 0.2
        %vm1889 = vcmp.gt.f32.partialorder %v1886, 0.2
        %v1890 = vsel %vm1887, 1, 0
        %v1891 = vsel %vm1888, 1, 0
        %v1892 = vsel %vm1889, 1, 0
        %v1893 = vcvt.s32.f32 %v1890
        %v1894 = vcvt.s32.f32 %v1891
        %v1895 = vcvt.s32.f32 %v1892
        %v1899 = vcombine.low %v1893, %v1894
        %v1901 = vunpack.c.l.s4 1983009808
        %v1902 = vunpack.c.0.s8 %v1901
        %v1903 = vlaneseq
        %v1904 = vshrl.u32 %v1903, 7
        %v1905 = vsub.s32 %v1902, %v1904
        %v1906 = vrot.slane %v1899, %v1905
        %v1908 = vunpack.c.l.s4 1983009808
        %v1909 = vunpack.c.0.s8 %v1908
        %v1910 = vlaneseq
        %v1911 = vshrl.u32 %v1910, 7
        %v1912 = vsub.s32 %v1909, %v1911
        %v1913 = vrot.slane %v1895, %v1912
        %v1914 = vcombine.low %v1906, %v1913
        %s1916 = scalar_lea.vmem %s306, 42
        %1917 = vst [vmem:[%s1916] sm:$0x3f] %v1914
      $region76: #{prior_bernoulli_stbp_forward.1} parent=47 // pred_fallthru
        _
      %p1918 = scmp.eq.s32.totalorder %s22, 3
      %s1919 = scalar_select %p1918, %s23, 0
      %p1920 = scmp.lt.s32.totalorder %s1919, 0
      %s1921 = scalar_select %p1920, %s1919, 0
      %s1922 = smul.addr %s1921, 3
      %s1923 = smul.addr %s1922, 2
      %s1924 = scalar_lea.vmem %s7, %s1923
      // Predicated region
      $region77: #{prior_bernoulli_stbp_forward.1} parent=47 // pred_check
        %p1925 = pneg %p208
      $region78: #{prior_bernoulli_stbp_forward.1} parent=47 // pred_check_branch
        %1927 = sbr.rel (%p1925) target = $region80
      $region79: #{prior_bernoulli_stbp_forward.1} parent=47 // pred_region
        %p1928 = scmp.eq.s32.totalorder %s22, 3
        %s1929 = scalar_select %p1928, %s23, 0
      $region80: #{prior_bernoulli_stbp_forward.1} parent=47 // pred_fallthru
        _
    $region48: #{prior_bernoulli_stbp_forward.1} parent=5 // pred_fallthru
      _
    %p1930 = scmp.le.s32.totalorder 2, %s13
    // Predicated region
    $region81: #{prior_bernoulli_stbp_forward.1} parent=5 // pred_check
      %p1931 = pneg %p1930
    $region82: #{prior_bernoulli_stbp_forward.1} parent=5 // pred_check_branch
      %1933 = sbr.rel (%p1931) target = $region84
    $region83: #{prior_bernoulli_stbp_forward.1} parent=5 // pred_region
      %s1934 = ssub.s32 %s13, 2
      // Predicated region
      $region85: #{prior_bernoulli_stbp_forward.1} parent=83 // pred_check
        %p1935 = pneg %p214
      $region86: #{prior_bernoulli_stbp_forward.1} parent=83 // pred_check_branch
        %1937 = sbr.rel (%p1935) target = $region88
      $region87: #{prior_bernoulli_stbp_forward.1} parent=83 // pred_region
        %p1938 = scmp.eq.s32.totalorder %s24, 3
        %s1939 = scalar_select %p1938, %s25, 0
        %p1940 = scmp.lt.s32.totalorder %s1939, 0
        %s1941 = scalar_select %p1940, %s1939, 0
        %s1942 = smul.addr %s1941, 3
        %s1943 = smul.addr %s1942, 2
        %s1944 = scalar_lea.vmem %s7, %s1943
      $region88: #{prior_bernoulli_stbp_forward.1} parent=83 // pred_fallthru
        _
    $region84: #{prior_bernoulli_stbp_forward.1} parent=5 // pred_fallthru
      _
  $region6: #{prior_bernoulli_stbp_forward.1} parent=0 // loop_footer
    %s17 = sadd.s32 1, %s13
  $region7: #{prior_bernoulli_stbp_forward.1} parent=0 // loop_footer_branch
    %12 = sbr.rel target = $region3
  $region8: #{prior_bernoulli_stbp_forward.1} parent=0 // loop_exit
    _

</llo_original>
